<compile_context>
chip_gen: v7x
topology: tpu7x:2x2x1
jax: 0.10.0
libtpu: 0.0.40
codegen_flags: <defaults>
</compile_context>

<pallas_src>
import jax
import jax.numpy as jnp
from jax.experimental import pallas as pl
from jax.experimental.pallas import tpu as pltpu

OUT_HW = 224   # cv2.resize target in draw_features
MAX_BLK = 32   # cap on images per grid step


def _bilinear_matrix(out_size: int, in_size: int) -> jnp.ndarray:
    """Interpolation matrix M (out_size, in_size): resized = M @ signal.

    cv2 INTER_LINEAR half-pixel mapping src = (dst+0.5)*scale - 0.5 with
    border replication (clamp).
    """
    o = jnp.arange(out_size, dtype=jnp.float32)
    src = (o + 0.5) * (in_size / out_size) - 0.5
    src = jnp.clip(src, 0.0, float(in_size - 1))
    i0 = jnp.floor(src).astype(jnp.int32)
    i1 = jnp.minimum(i0 + 1, in_size - 1)
    w1 = src - i0.astype(jnp.float32)
    w0 = 1.0 - w1
    m0 = jax.nn.one_hot(i0, in_size, dtype=jnp.float32) * w0[:, None]
    m1 = jax.nn.one_hot(i1, in_size, dtype=jnp.float32) * w1[:, None]
    return m0 + m1


def _choose_blk(g: int) -> int:
    """Images per grid step: multiple of 8, >=2 grid steps when possible, <=MAX_BLK."""
    half = pl.cdiv(g, 2)
    blk = pl.cdiv(half, 8) * 8
    return max(8, min(MAX_BLK, blk))


def _resize_kernel(rh_ref, rwt_ref, x_ref, o_ref):
    """Resize a block of BLK (H, W) feature maps to (OUT_HW, OUT_HW) each."""
    blk, h, w = x_ref.shape
    # bf16 operands keep the MXU in single-pass mode; accumulation stays f32.
    x = x_ref[...].astype(jnp.bfloat16)                                # (B, H, W)

    # W-resize as one fat matmul: M = B*H, K = W, N = 224.
    tmp = jnp.dot(x.reshape(blk * h, w), rwt_ref[...],
                  preferred_element_type=jnp.float32)                  # (B*H, 224) f32
    tmp = tmp.reshape(blk, h, OUT_HW).astype(jnp.bfloat16)             # (B, H, 224) bf16

    # H-resize: per-image 2-D dot stored directly into o_ref[i]; avoids
    # broadcasting R_h across the batch and a (B, 224, 224) f32 intermediate.
    rh = rh_ref[...]                                                   # (224, H) bf16
    for i in range(blk):
        o_ref[i] = jnp.dot(rh, tmp[i],
                           preferred_element_type=jnp.float32).astype(o_ref.dtype)


def vis_block_forward(x: jnp.ndarray, savename: str = "unused") -> jnp.ndarray:
    """Pallas equivalent of VisBlock.forward / draw_features.

    Args:
      x: [N, C, T, H, W] activations (PyTorch NCTHW layout), f32 or bf16.
      savename: ignored (no disk I/O in the kernel).

    Returns:
      [C, T, 224, 224] bfloat16: the bilinearly-resized feature maps of batch 0
      (the images draw_features would have written to disk).
    """
    del savename  # TODO(synk): host-side file writing not representable in Pallas.
    N, C, T, H, W = x.shape
    G = C * T

    blk = _choose_blk(G)
    n_blocks = pl.cdiv(G, blk)
    g_pad = n_blocks * blk

    # Glue: slice batch 0 (as draw_features does), flatten (C, T) -> G, and
    # zero-pad G up to a multiple of blk so every grid step is full.
    slab = x[0].reshape(G, H, W)
    if g_pad != G:
        slab = jnp.pad(slab, ((0, g_pad - G), (0, 0), (0, 0)))

    # Interpolation matrices (deterministic "parameters" of the resize), bf16.
    rh = _bilinear_matrix(OUT_HW, H).astype(jnp.bfloat16)      # (224, H)
    rwt = _bilinear_matrix(OUT_HW, W).T.astype(jnp.bfloat16)   # (W, 224)

    out = pl.pallas_call(
        _resize_kernel,
        out_shape=jax.ShapeDtypeStruct((g_pad, OUT_HW, OUT_HW), jnp.bfloat16),
        grid_spec=pltpu.PrefetchScalarGridSpec(
            num_scalar_prefetch=0,
            grid=(n_blocks,),
            in_specs=[
                pl.BlockSpec((OUT_HW, H), lambda g: (0, 0)),       # R_h, resident
                pl.BlockSpec((W, OUT_HW), lambda g: (0, 0)),       # R_w^T, resident
                pl.BlockSpec((blk, H, W), lambda g: (g, 0, 0)),    # blk feature maps
            ],
            out_specs=pl.BlockSpec((blk, OUT_HW, OUT_HW), lambda g: (g, 0, 0)),
        ),
        compiler_params=pltpu.CompilerParams(
            dimension_semantics=("parallel",),        # megacore sharding on v7x
            vmem_limit_bytes=32 * 1024 * 1024,        # ~8 MiB actual; headroom on v7x
        ),
    )(rh, rwt, slab)

    return out[:G].reshape(C, T, OUT_HW, OUT_HW)


def _reference(x: jnp.ndarray) -> jnp.ndarray:
    """Pure-JAX reference mirroring the kernel's bf16-operand / f32-accum path."""
    N, C, T, H, W = x.shape
    rh = _bilinear_matrix(OUT_HW, H).astype(jnp.bfloat16)
    rwt = _bilinear_matrix(OUT_HW, W).T.astype(jnp.bfloat16)
    slab = x[0].reshape(C * T, H, W).astype(jnp.bfloat16)
    tmp = jnp.einsum("ghw,wp->ghp", slab, rwt,
                     preferred_element_type=jnp.float32).astype(jnp.bfloat16)
    out = jnp.einsum("oh,ghp->gop", rh, tmp,
                     preferred_element_type=jnp.float32).astype(jnp.bfloat16)
    return out.reshape(C, T, OUT_HW, OUT_HW)


if __name__ == "__main__":
    key = jax.random.PRNGKey(0)
    # Small 5-D input consistent with draw_features indexing x[0, i, j, :, :]:
    # [batch=2, channels=4, clips=3, H=16, W=16]
    x = jax.random.normal(key, (2, 4, 3, 16, 16), dtype=jnp.float32)

    out = vis_block_forward(x, "vis_out/")
    out = jax.block_until_ready(out)

    ref = _reference(x)
    assert out.shape == (4, 3, OUT_HW, OUT_HW), out.shape
    assert out.dtype == jnp.bfloat16, out.dtype
    assert jnp.allclose(out.astype(jnp.float32), ref.astype(jnp.float32),
                        atol=5e-2, rtol=5e-2), "mismatch vs reference"

    print("KERNEL_OK")
</pallas_src>

<mosaic_0001>
module attributes {stable_mosaic.version = 11 : i64} {
  func.func @_resize_kernel(%arg0: i32, %arg1: memref<224x16xbf16, #tpu.memory_space<vmem>>, %arg2: memref<16x224xbf16, #tpu.memory_space<vmem>>, %arg3: memref<8x16x16xf32, #tpu.memory_space<vmem>>, %arg4: memref<8x224x224xbf16, #tpu.memory_space<vmem>>) attributes {dimension_semantics = [#tpu.dimension_semantics<parallel>], iteration_bounds = array<i64: 2>, scalar_prefetch = 0 : i64, scratch_operands = 0 : i64, tpu.core_type = #tpu.core_type<tc>, window_params = [{pipeline_mode = #tpu.pipeline_mode<synchronous>, transform_indices = @transform_0, window_bounds = array<i64: 224, 16>}, {pipeline_mode = #tpu.pipeline_mode<synchronous>, transform_indices = @transform_1, window_bounds = array<i64: 16, 224>}, {transform_indices = @transform_2, window_bounds = array<i64: 8, 16, 16>}, {transform_indices = @transform_3, window_bounds = array<i64: 8, 224, 224>}]} {
    %c0 = arith.constant 0 : index
    %c0_0 = arith.constant 0 : index
    %c0_1 = arith.constant 0 : index
    %0 = vector.load %arg3[%c0, %c0_0, %c0_1] : memref<8x16x16xf32, #tpu.memory_space<vmem>>, vector<8x16x16xf32>
    %1 = arith.truncf %0 : vector<8x16x16xf32> to vector<8x16x16xbf16>
    %2 = vector.shape_cast %1 : vector<8x16x16xbf16> to vector<128x16xbf16>
    %c0_2 = arith.constant 0 : index
    %c0_3 = arith.constant 0 : index
    %3 = vector.load %arg2[%c0_2, %c0_3] : memref<16x224xbf16, #tpu.memory_space<vmem>>, vector<16x224xbf16>
    %cst = arith.constant dense<0.000000e+00> : vector<128x224xf32>
    %4 = tpu.matmul %2, %3, %cst {dimension_numbers = #tpu.dot_dimension_numbers<[1], [0], [0], [1], [0, 0, 1, 1], [], []>} : vector<128x16xbf16>, vector<16x224xbf16>, vector<128x224xf32> -> vector<128x224xf32>
    %5 = vector.shape_cast %4 : vector<128x224xf32> to vector<8x16x224xf32>
    %6 = arith.truncf %5 : vector<8x16x224xf32> to vector<8x16x224xbf16>
    %c0_4 = arith.constant 0 : index
    %c0_5 = arith.constant 0 : index
    %7 = vector.load %arg1[%c0_4, %c0_5] : memref<224x16xbf16, #tpu.memory_space<vmem>>, vector<224x16xbf16>
    %8 = vector.extract_strided_slice %6 {offsets = [0, 0, 0], sizes = [1, 16, 224], strides = [1, 1, 1]} : vector<8x16x224xbf16> to vector<1x16x224xbf16>
    %9 = vector.shape_cast %8 : vector<1x16x224xbf16> to vector<16x224xbf16>
    %cst_6 = arith.constant dense<0.000000e+00> : vector<224x224xf32>
    %10 = tpu.matmul %7, %9, %cst_6 {dimension_numbers = #tpu.dot_dimension_numbers<[1], [0], [0], [1], [0, 0, 1, 1], [], []>} : vector<224x16xbf16>, vector<16x224xbf16>, vector<224x224xf32> -> vector<224x224xf32>
    %11 = arith.truncf %10 : vector<224x224xf32> to vector<224x224xbf16>
    %c0_7 = arith.constant 0 : index
    %c0_8 = arith.constant 0 : index
    %c0_9 = arith.constant 0 : index
    %12 = vector.load %arg4[%c0_7, %c0_8, %c0_9] : memref<8x224x224xbf16, #tpu.memory_space<vmem>>, vector<1x224x224xbf16>
    %13 = vector.shape_cast %12 : vector<1x224x224xbf16> to vector<224x224xbf16>
    %14 = vector.shape_cast %11 : vector<224x224xbf16> to vector<1x224x224xbf16>
    tpu.vector_store %arg4[%c0_7, %c0_8, %c0_9], %14 {strides = array<i32>} : memref<8x224x224xbf16, #tpu.memory_space<vmem>>, vector<1x224x224xbf16>,
    %15 = vector.extract_strided_slice %6 {offsets = [1, 0, 0], sizes = [1, 16, 224], strides = [1, 1, 1]} : vector<8x16x224xbf16> to vector<1x16x224xbf16>
    %16 = vector.shape_cast %15 : vector<1x16x224xbf16> to vector<16x224xbf16>
    %cst_10 = arith.constant dense<0.000000e+00> : vector<224x224xf32>
    %17 = tpu.matmul %7, %16, %cst_10 {dimension_numbers = #tpu.dot_dimension_numbers<[1], [0], [0], [1], [0, 0, 1, 1], [], []>} : vector<224x16xbf16>, vector<16x224xbf16>, vector<224x224xf32> -> vector<224x224xf32>
    %18 = arith.truncf %17 : vector<224x224xf32> to vector<224x224xbf16>
    %c1 = arith.constant 1 : index
    %c0_11 = arith.constant 0 : index
    %c0_12 = arith.constant 0 : index
    %19 = vector.load %arg4[%c1, %c0_11, %c0_12] : memref<8x224x224xbf16, #tpu.memory_space<vmem>>, vector<1x224x224xbf16>
    %20 = vector.shape_cast %19 : vector<1x224x224xbf16> to vector<224x224xbf16>
    %21 = vector.shape_cast %18 : vector<224x224xbf16> to vector<1x224x224xbf16>
    tpu.vector_store %arg4[%c1, %c0_11, %c0_12], %21 {strides = array<i32>} : memref<8x224x224xbf16, #tpu.memory_space<vmem>>, vector<1x224x224xbf16>,
    %22 = vector.extract_strided_slice %6 {offsets = [2, 0, 0], sizes = [1, 16, 224], strides = [1, 1, 1]} : vector<8x16x224xbf16> to vector<1x16x224xbf16>
    %23 = vector.shape_cast %22 : vector<1x16x224xbf16> to vector<16x224xbf16>
    %cst_13 = arith.constant dense<0.000000e+00> : vector<224x224xf32>
    %24 = tpu.matmul %7, %23, %cst_13 {dimension_numbers = #tpu.dot_dimension_numbers<[1], [0], [0], [1], [0, 0, 1, 1], [], []>} : vector<224x16xbf16>, vector<16x224xbf16>, vector<224x224xf32> -> vector<224x224xf32>
    %25 = arith.truncf %24 : vector<224x224xf32> to vector<224x224xbf16>
    %c2 = arith.constant 2 : index
    %c0_14 = arith.constant 0 : index
    %c0_15 = arith.constant 0 : index
    %26 = vector.load %arg4[%c2, %c0_14, %c0_15] : memref<8x224x224xbf16, #tpu.memory_space<vmem>>, vector<1x224x224xbf16>
    %27 = vector.shape_cast %26 : vector<1x224x224xbf16> to vector<224x224xbf16>
    %28 = vector.shape_cast %25 : vector<224x224xbf16> to vector<1x224x224xbf16>
    tpu.vector_store %arg4[%c2, %c0_14, %c0_15], %28 {strides = array<i32>} : memref<8x224x224xbf16, #tpu.memory_space<vmem>>, vector<1x224x224xbf16>,
    %29 = vector.extract_strided_slice %6 {offsets = [3, 0, 0], sizes = [1, 16, 224], strides = [1, 1, 1]} : vector<8x16x224xbf16> to vector<1x16x224xbf16>
    %30 = vector.shape_cast %29 : vector<1x16x224xbf16> to vector<16x224xbf16>
    %cst_16 = arith.constant dense<0.000000e+00> : vector<224x224xf32>
    %31 = tpu.matmul %7, %30, %cst_16 {dimension_numbers = #tpu.dot_dimension_numbers<[1], [0], [0], [1], [0, 0, 1, 1], [], []>} : vector<224x16xbf16>, vector<16x224xbf16>, vector<224x224xf32> -> vector<224x224xf32>
    %32 = arith.truncf %31 : vector<224x224xf32> to vector<224x224xbf16>
    %c3 = arith.constant 3 : index
    %c0_17 = arith.constant 0 : index
    %c0_18 = arith.constant 0 : index
    %33 = vector.load %arg4[%c3, %c0_17, %c0_18] : memref<8x224x224xbf16, #tpu.memory_space<vmem>>, vector<1x224x224xbf16>
    %34 = vector.shape_cast %33 : vector<1x224x224xbf16> to vector<224x224xbf16>
    %35 = vector.shape_cast %32 : vector<224x224xbf16> to vector<1x224x224xbf16>
    tpu.vector_store %arg4[%c3, %c0_17, %c0_18], %35 {strides = array<i32>} : memref<8x224x224xbf16, #tpu.memory_space<vmem>>, vector<1x224x224xbf16>,
    %36 = vector.extract_strided_slice %6 {offsets = [4, 0, 0], sizes = [1, 16, 224], strides = [1, 1, 1]} : vector<8x16x224xbf16> to vector<1x16x224xbf16>
    %37 = vector.shape_cast %36 : vector<1x16x224xbf16> to vector<16x224xbf16>
    %cst_19 = arith.constant dense<0.000000e+00> : vector<224x224xf32>
    %38 = tpu.matmul %7, %37, %cst_19 {dimension_numbers = #tpu.dot_dimension_numbers<[1], [0], [0], [1], [0, 0, 1, 1], [], []>} : vector<224x16xbf16>, vector<16x224xbf16>, vector<224x224xf32> -> vector<224x224xf32>
    %39 = arith.truncf %38 : vector<224x224xf32> to vector<224x224xbf16>
    %c4 = arith.constant 4 : index
    %c0_20 = arith.constant 0 : index
    %c0_21 = arith.constant 0 : index
    %40 = vector.load %arg4[%c4, %c0_20, %c0_21] : memref<8x224x224xbf16, #tpu.memory_space<vmem>>, vector<1x224x224xbf16>
    %41 = vector.shape_cast %40 : vector<1x224x224xbf16> to vector<224x224xbf16>
    %42 = vector.shape_cast %39 : vector<224x224xbf16> to vector<1x224x224xbf16>
    tpu.vector_store %arg4[%c4, %c0_20, %c0_21], %42 {strides = array<i32>} : memref<8x224x224xbf16, #tpu.memory_space<vmem>>, vector<1x224x224xbf16>,
    %43 = vector.extract_strided_slice %6 {offsets = [5, 0, 0], sizes = [1, 16, 224], strides = [1, 1, 1]} : vector<8x16x224xbf16> to vector<1x16x224xbf16>
    %44 = vector.shape_cast %43 : vector<1x16x224xbf16> to vector<16x224xbf16>
    %cst_22 = arith.constant dense<0.000000e+00> : vector<224x224xf32>
    %45 = tpu.matmul %7, %44, %cst_22 {dimension_numbers = #tpu.dot_dimension_numbers<[1], [0], [0], [1], [0, 0, 1, 1], [], []>} : vector<224x16xbf16>, vector<16x224xbf16>, vector<224x224xf32> -> vector<224x224xf32>
    %46 = arith.truncf %45 : vector<224x224xf32> to vector<224x224xbf16>
    %c5 = arith.constant 5 : index
    %c0_23 = arith.constant 0 : index
    %c0_24 = arith.constant 0 : index
    %47 = vector.load %arg4[%c5, %c0_23, %c0_24] : memref<8x224x224xbf16, #tpu.memory_space<vmem>>, vector<1x224x224xbf16>
    %48 = vector.shape_cast %47 : vector<1x224x224xbf16> to vector<224x224xbf16>
    %49 = vector.shape_cast %46 : vector<224x224xbf16> to vector<1x224x224xbf16>
    tpu.vector_store %arg4[%c5, %c0_23, %c0_24], %49 {strides = array<i32>} : memref<8x224x224xbf16, #tpu.memory_space<vmem>>, vector<1x224x224xbf16>,
    %50 = vector.extract_strided_slice %6 {offsets = [6, 0, 0], sizes = [1, 16, 224], strides = [1, 1, 1]} : vector<8x16x224xbf16> to vector<1x16x224xbf16>
    %51 = vector.shape_cast %50 : vector<1x16x224xbf16> to vector<16x224xbf16>
    %cst_25 = arith.constant dense<0.000000e+00> : vector<224x224xf32>
    %52 = tpu.matmul %7, %51, %cst_25 {dimension_numbers = #tpu.dot_dimension_numbers<[1], [0], [0], [1], [0, 0, 1, 1], [], []>} : vector<224x16xbf16>, vector<16x224xbf16>, vector<224x224xf32> -> vector<224x224xf32>
    %53 = arith.truncf %52 : vector<224x224xf32> to vector<224x224xbf16>
    %c6 = arith.constant 6 : index
    %c0_26 = arith.constant 0 : index
    %c0_27 = arith.constant 0 : index
    %54 = vector.load %arg4[%c6, %c0_26, %c0_27] : memref<8x224x224xbf16, #tpu.memory_space<vmem>>, vector<1x224x224xbf16>
    %55 = vector.shape_cast %54 : vector<1x224x224xbf16> to vector<224x224xbf16>
    %56 = vector.shape_cast %53 : vector<224x224xbf16> to vector<1x224x224xbf16>
    tpu.vector_store %arg4[%c6, %c0_26, %c0_27], %56 {strides = array<i32>} : memref<8x224x224xbf16, #tpu.memory_space<vmem>>, vector<1x224x224xbf16>,
    %57 = vector.extract_strided_slice %6 {offsets = [7, 0, 0], sizes = [1, 16, 224], strides = [1, 1, 1]} : vector<8x16x224xbf16> to vector<1x16x224xbf16>
    %58 = vector.shape_cast %57 : vector<1x16x224xbf16> to vector<16x224xbf16>
    %cst_28 = arith.constant dense<0.000000e+00> : vector<224x224xf32>
    %59 = tpu.matmul %7, %58, %cst_28 {dimension_numbers = #tpu.dot_dimension_numbers<[1], [0], [0], [1], [0, 0, 1, 1], [], []>} : vector<224x16xbf16>, vector<16x224xbf16>, vector<224x224xf32> -> vector<224x224xf32>
    %60 = arith.truncf %59 : vector<224x224xf32> to vector<224x224xbf16>
    %c7 = arith.constant 7 : index
    %c0_29 = arith.constant 0 : index
    %c0_30 = arith.constant 0 : index
    %61 = vector.load %arg4[%c7, %c0_29, %c0_30] : memref<8x224x224xbf16, #tpu.memory_space<vmem>>, vector<1x224x224xbf16>
    %62 = vector.shape_cast %61 : vector<1x224x224xbf16> to vector<224x224xbf16>
    %63 = vector.shape_cast %60 : vector<224x224xbf16> to vector<1x224x224xbf16>
    tpu.vector_store %arg4[%c7, %c0_29, %c0_30], %63 {strides = array<i32>} : memref<8x224x224xbf16, #tpu.memory_space<vmem>>, vector<1x224x224xbf16>,
    return
  }
  func.func @transform_0(%arg0: i32) -> (i32, i32) {
    %c0_i32 = arith.constant 0 : i32
    %c0_i32_0 = arith.constant 0 : i32
    %c0_i32_1 = arith.constant 0 : i32
    return %c0_i32, %c0_i32_0 : i32, i32
  }
  func.func @transform_1(%arg0: i32) -> (i32, i32) {
    %c0_i32 = arith.constant 0 : i32
    %c0_i32_0 = arith.constant 0 : i32
    %c0_i32_1 = arith.constant 0 : i32
    return %c0_i32, %c0_i32_0 : i32, i32
  }
  func.func @transform_2(%arg0: i32) -> (i32, i32, i32) {
    %c0_i32 = arith.constant 0 : i32
    %c0_i32_0 = arith.constant 0 : i32
    %c0_i32_1 = arith.constant 0 : i32
    return %arg0, %c0_i32, %c0_i32_0 : i32, i32, i32
  }
  func.func @transform_3(%arg0: i32) -> (i32, i32, i32) {
    %c0_i32 = arith.constant 0 : i32
    %c0_i32_0 = arith.constant 0 : i32
    %c0_i32_1 = arith.constant 0 : i32
    return %arg0, %c0_i32, %c0_i32_0 : i32, i32, i32
  }
}

</mosaic_0001>

<llo_original>
// kernel: tpu_custom_call.1
$region0: #{tpu_custom_call.1}
  #allocation0 [shape = 'u32[]', space=smem, size = 0x4, offset = 0x4, fixed_abs, tag = 'smem constant byte address 0x4 - core index']
  #allocation1 [shape = 'u32[144,128]{1,0:T(1,128)}', space=vmem, size = 0x12000, scoped, tag = 'internal scratch']
  %s0 = inlined_call_operand.vmem [shape: bf16[224,16], index: 0, kind: input, shape index: {}]
  %s1 = inlined_call_operand.hbm [shape: bf16[16,224], index: 1, kind: input, shape index: {}]
  %s2 = inlined_call_operand.hbm [shape: f32[16,16,16], index: 2, kind: input, shape index: {}]
  %s3 = inlined_call_operand.hbm [shape: bf16[16,224,224], index: 3, kind: output, shape index: {}]
  %s4 = sld [smem:[#allocation0]]
  $region53: #{tpu_custom_call.1} parent=0
    _
  %s6 = ssub.s32 1, %s4
  %s7 = scalar_select 0, %s6, %s4
  $region1: #{tpu_custom_call.1} parent=0
    #allocation2 [shape = 'u8[8192]{0}', space=vmem, size = 0x2000, scoped, tag = 'input window, operand 1, single buffered']
    #allocation3 [shape = 's32[2]{0}', space=sflag, size = 0x8, scoped, tag = 'scoped memory for tpu_custom_call.1']
    #allocation4 [shape = 's32[2]{0}', space=sflag, size = 0x8, scoped, tag = 'scoped memory for tpu_custom_call.1']
    #allocation5 [shape = 'u8[131072]{0}', space=vmem, size = 0x20000, scoped, tag = 'input window, operand 2']
    #allocation6 [shape = 's32[2]{0}', space=sflag, size = 0x8, scoped, tag = 'scoped memory for tpu_custom_call.1']
    #allocation7 [shape = 'u8[1835008]{0}', space=vmem, size = 0x1c0000, scoped, tag = 'output window, operand 0']
    %8 = vsyncpa [#allocation3], 0
    %9 = vsyncpa [#allocation6], 0
    %s10 = scalar_lea.sflag [#allocation6], 1
    %11 = vsyncpa %s10, 0
    %12 = vsyncpa [#allocation4], 0
    %s13 = scalar_lea.sflag [#allocation4], 1
    %14 = vsyncpa %s13, 0
    loop: start=0, step=1, limit=4
    $region2: #{tpu_custom_call.1} parent=1 // loop_pre_header
      _
    $region3: #{tpu_custom_call.1} parent=1 // loop_header
      %s16 = sphi 0, %s20
      %p17 = scmp.ge.s32.totalorder %s16, 4
      %s24 = sphi 0, %s24
      %s26 = sphi 0, %s24
      %s27 = sphi 0, %s26
      %s41 = sphi 0, %s27
      %s45 = sphi 0, %s45
      %s47 = sphi 0, %s45
      %s48 = sphi 0, %s47
      %s62 = sphi 0, %s48
      %s68 = sphi 0, %s70
      %s71 = sphi 0, %s68
      %s72 = sphi 0, %s71
      %s88 = sphi 0, %s72
      %s94 = sphi 0, %s96
      %s97 = sphi 0, %s94
      %s98 = sphi 0, %s97
      %s114 = sphi 0, %s98
    $region4: #{tpu_custom_call.1} parent=1 // loop_header_branch
      %19 = sbr.rel (%p17) target = $region8
    $region5: #{tpu_custom_call.1} parent=1 // loop_body
      %s21 = ssub.s32 %s16, 1
      %s22 = ssub.s32 %s16, 2
      %s23 = sadd.s32 %s16, 1
      %s25 = sadd.s32 %s24, 1
      %p28 = scmp.eq.s32.totalorder %s16, 1
      %p29 = scmp.ne.s32.totalorder %s24, %s26
      %p30 = scmp.eq.s32.totalorder %s16, 0
      %p31 = por %p29, %p30
      %p32 = scmp.ne.s32.totalorder %s24, %s26
      %p33 = scmp.eq.s32.totalorder %s21, 1
      %p34 = por %p32, %p33
      %p35 = scmp.ne.s32.totalorder %s26, %s27
      %p36 = scmp.eq.s32.totalorder %s21, 0
      %p37 = por %p35, %p36
      %p38 = scmp.ne.s32.totalorder %s26, %s27
      %p39 = scmp.eq.s32.totalorder %s22, 1
      %p40 = por %p38, %p39
      %p42 = scmp.ne.s32.totalorder %s27, %s41
      %p43 = scmp.eq.s32.totalorder %s22, 0
      %p44 = por %p42, %p43
      %s46 = sadd.s32 %s45, 1
      %p49 = scmp.eq.s32.totalorder %s16, 1
      %p50 = scmp.ne.s32.totalorder %s45, %s47
      %p51 = scmp.eq.s32.totalorder %s16, 0
      %p52 = por %p50, %p51
      %p53 = scmp.ne.s32.totalorder %s45, %s47
      %p54 = scmp.eq.s32.totalorder %s21, 1
      %p55 = por %p53, %p54
      %p56 = scmp.ne.s32.totalorder %s47, %s48
      %p57 = scmp.eq.s32.totalorder %s21, 0
      %p58 = por %p56, %p57
      %p59 = scmp.ne.s32.totalorder %s47, %s48
      %p60 = scmp.eq.s32.totalorder %s22, 1
      %p61 = por %p59, %p60
      %p63 = scmp.ne.s32.totalorder %s48, %s62
      %p64 = scmp.eq.s32.totalorder %s22, 0
      %p65 = por %p63, %p64
      %s66 = ssub.s32 %s16, %s23
      %p67 = scmp.eq.s32.totalorder %s66, 0
      %s69 = sadd.s32 %s68, 1
      %s70 = scalar_select %p67, %s68, %s69
      %p73 = pneg %p67
      %p74 = scmp.eq.s32.totalorder %s16, 1
      %p75 = por %p73, %p74
      %p76 = scmp.ne.s32.totalorder %s68, %s71
      %p77 = scmp.eq.s32.totalorder %s16, 0
      %p78 = por %p76, %p77
      %p79 = scmp.ne.s32.totalorder %s68, %s71
      %p80 = scmp.eq.s32.totalorder %s21, 1
      %p81 = por %p79, %p80
      %p82 = scmp.ne.s32.totalorder %s71, %s72
      %p83 = scmp.eq.s32.totalorder %s21, 0
      %p84 = por %p82, %p83
      %p85 = scmp.ne.s32.totalorder %s71, %s72
      %p86 = scmp.eq.s32.totalorder %s22, 1
      %p87 = por %p85, %p86
      %p89 = scmp.ne.s32.totalorder %s72, %s88
      %p90 = scmp.eq.s32.totalorder %s22, 0
      %p91 = por %p89, %p90
      %s92 = ssub.s32 %s16, %s23
      %p93 = scmp.eq.s32.totalorder %s92, 0
      %s95 = sadd.s32 %s94, 1
      %s96 = scalar_select %p93, %s94, %s95
      %p99 = pneg %p93
      %p100 = scmp.eq.s32.totalorder %s16, 1
      %p101 = por %p99, %p100
      %p102 = scmp.ne.s32.totalorder %s94, %s97
      %p103 = scmp.eq.s32.totalorder %s16, 0
      %p104 = por %p102, %p103
      %p105 = scmp.ne.s32.totalorder %s94, %s97
      %p106 = scmp.eq.s32.totalorder %s21, 1
      %p107 = por %p105, %p106
      %p108 = scmp.ne.s32.totalorder %s97, %s98
      %p109 = scmp.eq.s32.totalorder %s21, 0
      %p110 = por %p108, %p109
      %p111 = scmp.ne.s32.totalorder %s97, %s98
      %p112 = scmp.eq.s32.totalorder %s22, 1
      %p113 = por %p111, %p112
      %p115 = scmp.ne.s32.totalorder %s98, %s114
      %p116 = scmp.eq.s32.totalorder %s22, 0
      %p117 = por %p115, %p116
      %p118 = scmp.le.s32.totalorder 1, %s16
      %p119 = scmp.lt.s32.totalorder %s16, 3
      %p120 = pnand %p118, %p119
      %p121 = pneg %p120
      // Predicated region
      $region9: #{tpu_custom_call.1} parent=5 // pred_check
        _
      $region10: #{tpu_custom_call.1} parent=5 // pred_check_branch
        %123 = sbr.rel (%p120) target = $region12
      $region11: #{tpu_custom_call.1} parent=5 // pred_region
        %s124 = ssub.s32 %s16, 1
        // Predicated region
        $region13: #{tpu_custom_call.1} parent=11 // pred_check
          %p125 = pneg %p37
        $region14: #{tpu_custom_call.1} parent=11 // pred_check_branch
          %127 = sbr.rel (%p125) target = $region16
        $region15: #{tpu_custom_call.1} parent=11 // pred_region
          _
        $region16: #{tpu_custom_call.1} parent=11 // pred_fallthru
          _
        // Predicated region
        $region17: #{tpu_custom_call.1} parent=11 // pred_check
          %p128 = pneg %p58
        $region18: #{tpu_custom_call.1} parent=11 // pred_check_branch
          %130 = sbr.rel (%p128) target = $region20
        $region19: #{tpu_custom_call.1} parent=11 // pred_region
          %s132 = ssub.s32 256, 256
          %133 = vsyncadd [#allocation3], %s132
          %s134 = sshll.u32 [#allocation2], 4
          %s135 = int_to_ptr.vmem [resolvable:$true] %s134
          %140 = dma.hbm_to_vmem [thread:$0]  %s1, 256, %s135, [#allocation3], 128, 128, 8
        $region20: #{tpu_custom_call.1} parent=11 // pred_fallthru
          _
      $region12: #{tpu_custom_call.1} parent=5 // pred_fallthru
        _
      %p141 = scmp.lt.s32.totalorder %s16, 2
      // Predicated region
      $region21: #{tpu_custom_call.1} parent=5 // pred_check
        %p142 = pneg %p141
      $region22: #{tpu_custom_call.1} parent=5 // pred_check_branch
        %144 = sbr.rel (%p142) target = $region24
      $region23: #{tpu_custom_call.1} parent=5 // pred_region
        // Predicated region
        $region25: #{tpu_custom_call.1} parent=23 // pred_check
          %p145 = pneg %p78
        $region26: #{tpu_custom_call.1} parent=23 // pred_check_branch
          %147 = sbr.rel (%p145) target = $region28
        $region27: #{tpu_custom_call.1} parent=23 // pred_region
          %s148 = sand.u32 %s68, 1
          %s149 = scalar_lea.sflag [#allocation6], %s148
          %s150 = sand.u32 %s68, 1
          %s151 = smul.addr %s150, 128
          %s152 = scalar_lea.vmem [#allocation5], %s151
          %s153 = smul.u32 8, %s16
          %s155 = ssub.s32 2048, 2048
          %156 = vsyncadd %s149, %s155
          %s157 = smul.addr %s153, 2
          %s158 = smul.addr %s157, 128
          %s159 = scalar_lea.hbm %s2, %s158
          %s160 = sshll.u32 %s152, 4
          %s161 = int_to_ptr.vmem [resolvable:$true] %s160
          %166 = dma.hbm_to_vmem [thread:$0]  %s159, 2048, %s161, %s149, 128, 128, 8
        $region28: #{tpu_custom_call.1} parent=23 // pred_fallthru
          _
      $region24: #{tpu_custom_call.1} parent=5 // pred_fallthru
        _
      %p167 = scmp.le.s32.totalorder 1, %s16
      %p168 = scmp.lt.s32.totalorder %s16, 3
      %p169 = pnand %p167, %p168
      %p170 = pneg %p169
      // Predicated region
      $region29: #{tpu_custom_call.1} parent=5 // pred_check
        _
      $region30: #{tpu_custom_call.1} parent=5 // pred_check_branch
        %172 = sbr.rel (%p169) target = $region32
      $region31: #{tpu_custom_call.1} parent=5 // pred_region
        %s173 = ssub.s32 %s16, 1
        // Predicated region
        $region33: #{tpu_custom_call.1} parent=31 // pred_check
          %p174 = pneg %p58
        $region34: #{tpu_custom_call.1} parent=31 // pred_check_branch
          %176 = sbr.rel (%p174) target = $region36
        $region35: #{tpu_custom_call.1} parent=31 // pred_region
          %177 = dma.done [#allocation3], 256
        $region36: #{tpu_custom_call.1} parent=31 // pred_fallthru
          _
        %s178 = sand.u32 %s71, 1
        %s179 = scalar_lea.sflag [#allocation6], %s178
        %s180 = sand.u32 %s71, 1
        %s181 = smul.addr %s180, 128
        %s182 = scalar_lea.vmem [#allocation5], %s181
        // Predicated region
        $region37: #{tpu_custom_call.1} parent=31 // pred_check
          %p183 = pneg %p84
        $region38: #{tpu_custom_call.1} parent=31 // pred_check_branch
          %185 = sbr.rel (%p183) target = $region40
        $region39: #{tpu_custom_call.1} parent=31 // pred_region
          %186 = dma.done %s179, 2048
        $region40: #{tpu_custom_call.1} parent=31 // pred_fallthru
          _
        %p187 = pneg %p37
        %p188 = pneg %p34
        %p189 = pneg %p58
        %p190 = pneg %p55
        %s191 = sand.u32 %s71, 1
        %s192 = scalar_lea.sflag [#allocation6], %s191
        %s193 = sand.u32 %s71, 1
        %s194 = smul.addr %s193, 128
        %s195 = scalar_lea.vmem [#allocation5], %s194
        %p196 = pneg %p84
        %p197 = pneg %p81
        %p198 = pneg %p110
        %p199 = pneg %p107
        %s200 = sand.u32 %s97, 1
        %s201 = scalar_lea.sflag [#allocation4], %s200
        %s202 = sand.u32 %s97, 1
        %s203 = smul.addr %s202, 1792
        %s204 = scalar_lea.vmem [#allocation7], %s203
        %s205 = smul.u32 8, %s21
        %s206 = smul.u32 8, %s21
        %v208 = vld [vmem:[%s182] sm:$0xff]
        %v209 = vld [vmem:[%s182 + $0x8] sm:$0xff]
        %v210 = vld [vmem:[%s182 + $0x10] sm:$0xff]
        %v211 = vld [vmem:[%s182 + $0x18] sm:$0xff]
        %v212 = vld [vmem:[%s182 + $0x20] sm:$0xff]
        %v213 = vld [vmem:[%s182 + $0x28] sm:$0xff]
        %v214 = vld [vmem:[%s182 + $0x30] sm:$0xff]
        %v215 = vld [vmem:[%s182 + $0x38] sm:$0xff]
        %v216 = vld [vmem:[%s182 + $0x40] sm:$0xff]
        %v217 = vld [vmem:[%s182 + $0x48] sm:$0xff]
        %v218 = vld [vmem:[%s182 + $0x50] sm:$0xff]
        %v219 = vld [vmem:[%s182 + $0x58] sm:$0xff]
        %v220 = vld [vmem:[%s182 + $0x60] sm:$0xff]
        %v221 = vld [vmem:[%s182 + $0x68] sm:$0xff]
        %v222 = vld [vmem:[%s182 + $0x70] sm:$0xff]
        %v223 = vld [vmem:[%s182 + $0x78] sm:$0xff]
        %v224 = vpack.c.bf16 %v209, %v208
        %v225 = vpack.c.bf16 %v211, %v210
        %v226 = vpack.c.bf16 %v213, %v212
        %v227 = vpack.c.bf16 %v215, %v214
        %v228 = vpack.c.bf16 %v217, %v216
        %v229 = vpack.c.bf16 %v219, %v218
        %v230 = vpack.c.bf16 %v221, %v220
        %v231 = vpack.c.bf16 %v223, %v222
        %v232 = vld [vmem:[#allocation2] sm:$0xff]
        %v233 = vld [vmem:[#allocation2 + $0x8] sm:$0xff]
        %v236 = vunpack.c.l.b16 %v232
        %v237 = vunpack.c.h.b16 %v232
        %v238 = vunpack.c.l.b16 %v233
        %v239 = vunpack.c.h.b16 %v233
        %v240 = vpack.c.b16 %v238, %v236
        %v241 = vpack.c.b16 %v239, %v237
        %vm244 = vcmask 130048
        %v246 = vsel %vm244, %v224, 0
        %v249 = vsel %vm244, %v225, 0
        %v252 = vsel %vm244, %v226, 0
        %v255 = vsel %vm244, %v227, 0
        %v258 = vsel %vm244, %v228, 0
        %v261 = vsel %vm244, %v229, 0
        %v264 = vsel %vm244, %v230, 0
        %v267 = vsel %vm244, %v231, 0
        %269 = vmatprep.subr.bf16.mxu0 %v241
        %270 = vmatpush1.bf16.msra.mxu0 %v240
        %271 = vmatprep.subr.bf16.mxu0 0
        %272 = vmatpush1.bf16.msra.mxu0 0
        %273 = vmatprep.subr.bf16.mxu0 0
        %274 = vmatpush1.bf16.msra.mxu0 0
        %275 = vmatprep.subr.bf16.mxu0 0
        %276 = vmatpush1.bf16.msra.mxu0 0
        %277 = vmatprep.subr.bf16.mxu0 0
        %278 = vmatpush1.bf16.msra.mxu0 0
        %279 = vmatprep.subr.bf16.mxu0 0
        %280 = vmatpush1.bf16.msra.mxu0 0
        %281 = vmatprep.subr.bf16.mxu0 0
        %282 = vmatpush1.bf16.msra.mxu0 0
        %283 = vmatprep.subr.bf16.mxu0 0
        %284 = vmatpush1.bf16.msra.mxu0 0
        %285 = vmatprep.subr.bf16.mxu0 0
        %286 = vmatpush1.bf16.msra.mxu0 0
        %287 = vmatprep.subr.bf16.mxu0 0
        %288 = vmatpush1.bf16.msra.mxu0 0
        %289 = vmatprep.subr.bf16.mxu0 0
        %290 = vmatpush1.bf16.msra.mxu0 0
        %291 = vmatprep.subr.bf16.mxu0 0
        %292 = vmatpush1.bf16.msra.mxu0 0
        %293 = vmatprep.subr.bf16.mxu0 0
        %294 = vmatpush1.bf16.msra.mxu0 0
        %295 = vmatprep.subr.bf16.mxu0 0
        %296 = vmatpush1.bf16.msra.mxu0 0
        %297 = vmatprep.subr.bf16.mxu0 0
        %298 = vmatpush1.bf16.msra.mxu0 0
        %299 = vmatprep.subr.bf16.mxu0 0
        %300 = vmatpush1.bf16.msra.mxu0 0
        %301 = vmatprep.mubr.bf16.mxu0 0
        %302 = vmatmul.mubr.bf16.gmra.mrb[0].mxu0 %v246
        %v303 = vpop.f32.mrb[0].mxu0
        %v304 = vadd.f32 0.0, %v303
        %v305 = vpop.f32.mrb[0].mxu0
        %v306 = vadd.f32 0.0, %v305
        %v307 = vpop.f32.mrb[0].mxu0
        %v308 = vadd.f32 0.0, %v307
        %v309 = vpop.f32.mrb[0].mxu0
        %v310 = vadd.f32 0.0, %v309
        %311 = vmatprep.mubr.bf16.mxu0 0
        %312 = vmatmul.mubr.bf16.gmra.mrb[0].mxu0 %v249
        %v313 = vpop.f32.mrb[0].mxu0
        %v314 = vadd.f32 0.0, %v313
        %v315 = vpop.f32.mrb[0].mxu0
        %v316 = vadd.f32 0.0, %v315
        %v317 = vpop.f32.mrb[0].mxu0
        %v318 = vadd.f32 0.0, %v317
        %v319 = vpop.f32.mrb[0].mxu0
        %v320 = vadd.f32 0.0, %v319
        %321 = vmatprep.mubr.bf16.mxu0 0
        %322 = vmatmul.mubr.bf16.gmra.mrb[0].mxu0 %v252
        %v323 = vpop.f32.mrb[0].mxu0
        %v324 = vadd.f32 0.0, %v323
        %v325 = vpop.f32.mrb[0].mxu0
        %v326 = vadd.f32 0.0, %v325
        %v327 = vpop.f32.mrb[0].mxu0
        %v328 = vadd.f32 0.0, %v327
        %v329 = vpop.f32.mrb[0].mxu0
        %v330 = vadd.f32 0.0, %v329
        %331 = vmatprep.mubr.bf16.mxu0 0
        %332 = vmatmul.mubr.bf16.gmra.mrb[0].mxu0 %v255
        %v333 = vpop.f32.mrb[0].mxu0
        %v334 = vadd.f32 0.0, %v333
        %v335 = vpop.f32.mrb[0].mxu0
        %v336 = vadd.f32 0.0, %v335
        %v337 = vpop.f32.mrb[0].mxu0
        %v338 = vadd.f32 0.0, %v337
        %v339 = vpop.f32.mrb[0].mxu0
        %v340 = vadd.f32 0.0, %v339
        %341 = vmatprep.mubr.bf16.mxu0 0
        %342 = vmatmul.mubr.bf16.gmra.mrb[0].mxu0 %v258
        %v343 = vpop.f32.mrb[0].mxu0
        %v344 = vadd.f32 0.0, %v343
        %v345 = vpop.f32.mrb[0].mxu0
        %v346 = vadd.f32 0.0, %v345
        %v347 = vpop.f32.mrb[0].mxu0
        %v348 = vadd.f32 0.0, %v347
        %v349 = vpop.f32.mrb[0].mxu0
        %v350 = vadd.f32 0.0, %v349
        %351 = vmatprep.mubr.bf16.mxu0 0
        %352 = vmatmul.mubr.bf16.gmra.mrb[0].mxu0 %v261
        %v353 = vpop.f32.mrb[0].mxu0
        %v354 = vadd.f32 0.0, %v353
        %v355 = vpop.f32.mrb[0].mxu0
        %v356 = vadd.f32 0.0, %v355
        %v357 = vpop.f32.mrb[0].mxu0
        %v358 = vadd.f32 0.0, %v357
        %v359 = vpop.f32.mrb[0].mxu0
        %v360 = vadd.f32 0.0, %v359
        %361 = vmatprep.mubr.bf16.mxu0 0
        %362 = vmatmul.mubr.bf16.gmra.mrb[0].mxu0 %v264
        %v363 = vpop.f32.mrb[0].mxu0
        %v364 = vadd.f32 0.0, %v363
        %v365 = vpop.f32.mrb[0].mxu0
        %v366 = vadd.f32 0.0, %v365
        %v367 = vpop.f32.mrb[0].mxu0
        %v368 = vadd.f32 0.0, %v367
        %v369 = vpop.f32.mrb[0].mxu0
        %v370 = vadd.f32 0.0, %v369
        %371 = vmatprep.mubr.bf16.mxu0 0
        %372 = vmatmul.mubr.bf16.gmra.mrb[0].mxu0 %v267
        %v373 = vpop.f32.mrb[0].mxu0
        %v374 = vadd.f32 0.0, %v373
        %v375 = vpop.f32.mrb[0].mxu0
        %v376 = vadd.f32 0.0, %v375
        %v377 = vpop.f32.mrb[0].mxu0
        %v378 = vadd.f32 0.0, %v377
        %v379 = vpop.f32.mrb[0].mxu0
        %v380 = vadd.f32 0.0, %v379
        %381 = vdwg.mxu0
        %v382 = vpack.c.bf16 %v308, %v304
        %v383 = vpack.c.bf16 %v310, %v306
        %v384 = vpack.c.bf16 %v318, %v314
        %v385 = vpack.c.bf16 %v320, %v316
        %v386 = vpack.c.bf16 %v328, %v324
        %v387 = vpack.c.bf16 %v330, %v326
        %v388 = vpack.c.bf16 %v338, %v334
        %v389 = vpack.c.bf16 %v340, %v336
        %v390 = vpack.c.bf16 %v348, %v344
        %v391 = vpack.c.bf16 %v350, %v346
        %v392 = vpack.c.bf16 %v358, %v354
        %v393 = vpack.c.bf16 %v360, %v356
        %v394 = vpack.c.bf16 %v368, %v364
        %v395 = vpack.c.bf16 %v370, %v366
        %v396 = vpack.c.bf16 %v378, %v374
        %v397 = vpack.c.bf16 %v380, %v376
        %v398 = vld [vmem:[%s0] sm:$0xf]
        %v399 = vld [vmem:[%s0 + $0x4] sm:$0xf]
        %v400 = vld [vmem:[%s0 + $0x8] sm:$0xf]
        %v401 = vld [vmem:[%s0 + $0xc] sm:$0xf]
        %v402 = vld [vmem:[%s0 + $0x10] sm:$0xf]
        %v403 = vld [vmem:[%s0 + $0x14] sm:$0xf]
        %v404 = vld [vmem:[%s0 + $0x18] sm:$0xf]
        %v405 = vld [vmem:[%s0 + $0x1c] sm:$0xf]
        %v406 = vld [vmem:[%s0 + $0x20] sm:$0xf]
        %v407 = vld [vmem:[%s0 + $0x24] sm:$0xf]
        %v408 = vld [vmem:[%s0 + $0x28] sm:$0xf]
        %v409 = vld [vmem:[%s0 + $0x2c] sm:$0xf]
        %v410 = vld [vmem:[%s0 + $0x30] sm:$0xf]
        %v411 = vld [vmem:[%s0 + $0x34] sm:$0xf]
        %v412 = vld [vmem:[%s0 + $0x38] sm:$0xf]
        %v413 = vld [vmem:[%s0 + $0x3c] sm:$0xf]
        %v414 = vld [vmem:[%s0 + $0x40] sm:$0xf]
        %v415 = vld [vmem:[%s0 + $0x44] sm:$0xf]
        %v416 = vld [vmem:[%s0 + $0x48] sm:$0xf]
        %v417 = vld [vmem:[%s0 + $0x4c] sm:$0xf]
        %v418 = vld [vmem:[%s0 + $0x50] sm:$0xf]
        %v419 = vld [vmem:[%s0 + $0x54] sm:$0xf]
        %v420 = vld [vmem:[%s0 + $0x58] sm:$0xf]
        %v421 = vld [vmem:[%s0 + $0x5c] sm:$0xf]
        %v422 = vld [vmem:[%s0 + $0x60] sm:$0xf]
        %v423 = vld [vmem:[%s0 + $0x64] sm:$0xf]
        %v424 = vld [vmem:[%s0 + $0x68] sm:$0xf]
        %v425 = vld [vmem:[%s0 + $0x6c] sm:$0xf]
        %v454 = vunpack.c.l.b16 %v398
        %v455 = vunpack.c.l.b16 %v399
        %v456 = vunpack.c.l.b16 %v400
        %v457 = vunpack.c.l.b16 %v401
        %v458 = vunpack.c.l.b16 %v402
        %v459 = vunpack.c.l.b16 %v403
        %v460 = vunpack.c.l.b16 %v404
        %v461 = vunpack.c.l.b16 %v405
        %v462 = vunpack.c.l.b16 %v406
        %v463 = vunpack.c.l.b16 %v407
        %v464 = vunpack.c.l.b16 %v408
        %v465 = vunpack.c.l.b16 %v409
        %v466 = vunpack.c.l.b16 %v410
        %v467 = vunpack.c.l.b16 %v411
        %v468 = vunpack.c.l.b16 %v412
        %v469 = vunpack.c.l.b16 %v413
        %v470 = vunpack.c.l.b16 %v414
        %v471 = vunpack.c.l.b16 %v415
        %v472 = vunpack.c.l.b16 %v416
        %v473 = vunpack.c.l.b16 %v417
        %v474 = vunpack.c.l.b16 %v418
        %v475 = vunpack.c.l.b16 %v419
        %v476 = vunpack.c.l.b16 %v420
        %v477 = vunpack.c.l.b16 %v421
        %v478 = vunpack.c.l.b16 %v422
        %v479 = vunpack.c.l.b16 %v423
        %v480 = vunpack.c.l.b16 %v424
        %v481 = vunpack.c.l.b16 %v425
        %v482 = vpack.c.b16 %v455, %v454
        %v483 = vpack.c.b16 %v457, %v456
        %v484 = vpack.c.b16 %v459, %v458
        %v485 = vpack.c.b16 %v461, %v460
        %v486 = vpack.c.b16 %v463, %v462
        %v487 = vpack.c.b16 %v465, %v464
        %v488 = vpack.c.b16 %v467, %v466
        %v489 = vpack.c.b16 %v469, %v468
        %v490 = vpack.c.b16 %v471, %v470
        %v491 = vpack.c.b16 %v473, %v472
        %v492 = vpack.c.b16 %v475, %v474
        %v493 = vpack.c.b16 %v477, %v476
        %v494 = vpack.c.b16 %v479, %v478
        %v495 = vpack.c.b16 %v481, %v480
        %v497 = vsel %vm244, %v482, 0
        %v500 = vsel %vm244, %v483, 0
        %v503 = vsel %vm244, %v484, 0
        %v506 = vsel %vm244, %v485, 0
        %v509 = vsel %vm244, %v486, 0
        %v512 = vsel %vm244, %v487, 0
        %v515 = vsel %vm244, %v488, 0
        %v518 = vsel %vm244, %v489, 0
        %v521 = vsel %vm244, %v490, 0
        %v524 = vsel %vm244, %v491, 0
        %v527 = vsel %vm244, %v492, 0
        %v530 = vsel %vm244, %v493, 0
        %v533 = vsel %vm244, %v494, 0
        %v536 = vsel %vm244, %v495, 0
        %538 = vmatprep.subr.bf16.mxu0 %v383
        %539 = vmatpush1.bf16.msra.mxu0 %v382
        %540 = vmatprep.subr.bf16.mxu0 0
        %541 = vmatpush1.bf16.msra.mxu0 0
        %542 = vmatprep.subr.bf16.mxu0 0
        %543 = vmatpush1.bf16.msra.mxu0 0
        %544 = vmatprep.subr.bf16.mxu0 0
        %545 = vmatpush1.bf16.msra.mxu0 0
        %546 = vmatprep.subr.bf16.mxu0 0
        %547 = vmatpush1.bf16.msra.mxu0 0
        %548 = vmatprep.subr.bf16.mxu0 0
        %549 = vmatpush1.bf16.msra.mxu0 0
        %550 = vmatprep.subr.bf16.mxu0 0
        %551 = vmatpush1.bf16.msra.mxu0 0
        %552 = vmatprep.subr.bf16.mxu0 0
        %553 = vmatpush1.bf16.msra.mxu0 0
        %554 = vmatprep.subr.bf16.mxu0 0
        %555 = vmatpush1.bf16.msra.mxu0 0
        %556 = vmatprep.subr.bf16.mxu0 0
        %557 = vmatpush1.bf16.msra.mxu0 0
        %558 = vmatprep.subr.bf16.mxu0 0
        %559 = vmatpush1.bf16.msra.mxu0 0
        %560 = vmatprep.subr.bf16.mxu0 0
        %561 = vmatpush1.bf16.msra.mxu0 0
        %562 = vmatprep.subr.bf16.mxu0 0
        %563 = vmatpush1.bf16.msra.mxu0 0
        %564 = vmatprep.subr.bf16.mxu0 0
        %565 = vmatpush1.bf16.msra.mxu0 0
        %566 = vmatprep.subr.bf16.mxu0 0
        %567 = vmatpush1.bf16.msra.mxu0 0
        %568 = vmatprep.subr.bf16.mxu0 0
        %569 = vmatpush1.bf16.msra.mxu0 0
        %570 = vmatprep.mubr.bf16.mxu0 0
        %571 = vmatmul.mubr.bf16.gmra.mrb[0].mxu0 %v497
        %v572 = vpop.f32.mrb[0].mxu0
        %v573 = vadd.f32 0.0, %v572
        %v574 = vpop.f32.mrb[0].mxu0
        %v575 = vadd.f32 0.0, %v574
        %v576 = vpop.f32.mrb[0].mxu0
        %v577 = vadd.f32 0.0, %v576
        %v578 = vpop.f32.mrb[0].mxu0
        %v579 = vadd.f32 0.0, %v578
        %580 = vmatprep.mubr.bf16.mxu0 0
        %581 = vmatmul.mubr.bf16.gmra.mrb[0].mxu0 %v500
        %v582 = vpop.f32.mrb[0].mxu0
        %v583 = vadd.f32 0.0, %v582
        %v584 = vpop.f32.mrb[0].mxu0
        %v585 = vadd.f32 0.0, %v584
        %v586 = vpop.f32.mrb[0].mxu0
        %v587 = vadd.f32 0.0, %v586
        %v588 = vpop.f32.mrb[0].mxu0
        %v589 = vadd.f32 0.0, %v588
        %590 = vmatprep.mubr.bf16.mxu0 0
        %591 = vmatmul.mubr.bf16.gmra.mrb[0].mxu0 %v503
        %v592 = vpop.f32.mrb[0].mxu0
        %v593 = vadd.f32 0.0, %v592
        %v594 = vpop.f32.mrb[0].mxu0
        %v595 = vadd.f32 0.0, %v594
        %v596 = vpop.f32.mrb[0].mxu0
        %v597 = vadd.f32 0.0, %v596
        %v598 = vpop.f32.mrb[0].mxu0
        %v599 = vadd.f32 0.0, %v598
        %600 = vmatprep.mubr.bf16.mxu0 0
        %601 = vmatmul.mubr.bf16.gmra.mrb[0].mxu0 %v506
        %v602 = vpop.f32.mrb[0].mxu0
        %v603 = vadd.f32 0.0, %v602
        %v604 = vpop.f32.mrb[0].mxu0
        %v605 = vadd.f32 0.0, %v604
        %v606 = vpop.f32.mrb[0].mxu0
        %v607 = vadd.f32 0.0, %v606
        %v608 = vpop.f32.mrb[0].mxu0
        %v609 = vadd.f32 0.0, %v608
        %610 = vmatprep.mubr.bf16.mxu0 0
        %611 = vmatmul.mubr.bf16.gmra.mrb[0].mxu0 %v509
        %v612 = vpop.f32.mrb[0].mxu0
        %v613 = vadd.f32 0.0, %v612
        %v614 = vpop.f32.mrb[0].mxu0
        %v615 = vadd.f32 0.0, %v614
        %v616 = vpop.f32.mrb[0].mxu0
        %v617 = vadd.f32 0.0, %v616
        %v618 = vpop.f32.mrb[0].mxu0
        %v619 = vadd.f32 0.0, %v618
        %620 = vmatprep.mubr.bf16.mxu0 0
        %621 = vmatmul.mubr.bf16.gmra.mrb[0].mxu0 %v512
        %v622 = vpop.f32.mrb[0].mxu0
        %v623 = vadd.f32 0.0, %v622
        %v624 = vpop.f32.mrb[0].mxu0
        %v625 = vadd.f32 0.0, %v624
        %v626 = vpop.f32.mrb[0].mxu0
        %v627 = vadd.f32 0.0, %v626
        %v628 = vpop.f32.mrb[0].mxu0
        %v629 = vadd.f32 0.0, %v628
        %630 = vmatprep.mubr.bf16.mxu0 0
        %631 = vmatmul.mubr.bf16.gmra.mrb[0].mxu0 %v515
        %v632 = vpop.f32.mrb[0].mxu0
        %v633 = vadd.f32 0.0, %v632
        %v634 = vpop.f32.mrb[0].mxu0
        %v635 = vadd.f32 0.0, %v634
        %v636 = vpop.f32.mrb[0].mxu0
        %v637 = vadd.f32 0.0, %v636
        %v638 = vpop.f32.mrb[0].mxu0
        %v639 = vadd.f32 0.0, %v638
        %640 = vmatprep.mubr.bf16.mxu0 0
        %641 = vmatmul.mubr.bf16.gmra.mrb[0].mxu0 %v518
        %v642 = vpop.f32.mrb[0].mxu0
        %v643 = vadd.f32 0.0, %v642
        %v644 = vpop.f32.mrb[0].mxu0
        %v645 = vadd.f32 0.0, %v644
        %v646 = vpop.f32.mrb[0].mxu0
        %v647 = vadd.f32 0.0, %v646
        %v648 = vpop.f32.mrb[0].mxu0
        %v649 = vadd.f32 0.0, %v648
        %650 = vmatprep.mubr.bf16.mxu0 0
        %651 = vmatmul.mubr.bf16.gmra.mrb[0].mxu0 %v521
        %v652 = vpop.f32.mrb[0].mxu0
        %v653 = vadd.f32 0.0, %v652
        %v654 = vpop.f32.mrb[0].mxu0
        %v655 = vadd.f32 0.0, %v654
        %v656 = vpop.f32.mrb[0].mxu0
        %v657 = vadd.f32 0.0, %v656
        %v658 = vpop.f32.mrb[0].mxu0
        %v659 = vadd.f32 0.0, %v658
        %660 = vmatprep.mubr.bf16.mxu0 0
        %661 = vmatmul.mubr.bf16.gmra.mrb[0].mxu0 %v524
        %v662 = vpop.f32.mrb[0].mxu0
        %v663 = vadd.f32 0.0, %v662
        %v664 = vpop.f32.mrb[0].mxu0
        %v665 = vadd.f32 0.0, %v664
        %v666 = vpop.f32.mrb[0].mxu0
        %v667 = vadd.f32 0.0, %v666
        %v668 = vpop.f32.mrb[0].mxu0
        %v669 = vadd.f32 0.0, %v668
        %670 = vmatprep.mubr.bf16.mxu0 0
        %671 = vmatmul.mubr.bf16.gmra.mrb[0].mxu0 %v527
        %v672 = vpop.f32.mrb[0].mxu0
        %v673 = vadd.f32 0.0, %v672
        %v674 = vpop.f32.mrb[0].mxu0
        %v675 = vadd.f32 0.0, %v674
        %v676 = vpop.f32.mrb[0].mxu0
        %v677 = vadd.f32 0.0, %v676
        %v678 = vpop.f32.mrb[0].mxu0
        %v679 = vadd.f32 0.0, %v678
        %680 = vmatprep.mubr.bf16.mxu0 0
        %681 = vmatmul.mubr.bf16.gmra.mrb[0].mxu0 %v530
        %v682 = vpop.f32.mrb[0].mxu0
        %v683 = vadd.f32 0.0, %v682
        %v684 = vpop.f32.mrb[0].mxu0
        %v685 = vadd.f32 0.0, %v684
        %v686 = vpop.f32.mrb[0].mxu0
        %v687 = vadd.f32 0.0, %v686
        %v688 = vpop.f32.mrb[0].mxu0
        %v689 = vadd.f32 0.0, %v688
        %690 = vmatprep.mubr.bf16.mxu0 0
        %691 = vmatmul.mubr.bf16.gmra.mrb[0].mxu0 %v533
        %v692 = vpop.f32.mrb[0].mxu0
        %v693 = vadd.f32 0.0, %v692
        %v694 = vpop.f32.mrb[0].mxu0
        %v695 = vadd.f32 0.0, %v694
        %v696 = vpop.f32.mrb[0].mxu0
        %v697 = vadd.f32 0.0, %v696
        %v698 = vpop.f32.mrb[0].mxu0
        %v699 = vadd.f32 0.0, %v698
        %700 = vmatprep.mubr.bf16.mxu0 0
        %701 = vmatmul.mubr.bf16.gmra.mrb[0].mxu0 %v536
        %v702 = vpop.f32.mrb[0].mxu0
        %v703 = vadd.f32 0.0, %v702
        %v704 = vpop.f32.mrb[0].mxu0
        %v705 = vadd.f32 0.0, %v704
        %v706 = vpop.f32.mrb[0].mxu0
        %v707 = vadd.f32 0.0, %v706
        %v708 = vpop.f32.mrb[0].mxu0
        %v709 = vadd.f32 0.0, %v708
        %710 = vdwg.mxu0
        %v711 = vpack.c.bf16 %v577, %v573
        %v712 = vpack.c.bf16 %v579, %v575
        %v713 = vpack.c.bf16 %v587, %v583
        %v714 = vpack.c.bf16 %v589, %v585
        %v715 = vpack.c.bf16 %v597, %v593
        %v716 = vpack.c.bf16 %v599, %v595
        %v717 = vpack.c.bf16 %v607, %v603
        %v718 = vpack.c.bf16 %v609, %v605
        %v719 = vpack.c.bf16 %v617, %v613
        %v720 = vpack.c.bf16 %v619, %v615
        %v721 = vpack.c.bf16 %v627, %v623
        %v722 = vpack.c.bf16 %v629, %v625
        %v723 = vpack.c.bf16 %v637, %v633
        %v724 = vpack.c.bf16 %v639, %v635
        %v725 = vpack.c.bf16 %v647, %v643
        %v726 = vpack.c.bf16 %v649, %v645
        %v727 = vpack.c.bf16 %v657, %v653
        %v728 = vpack.c.bf16 %v659, %v655
        %v729 = vpack.c.bf16 %v667, %v663
        %v730 = vpack.c.bf16 %v669, %v665
        %v731 = vpack.c.bf16 %v677, %v673
        %v732 = vpack.c.bf16 %v679, %v675
        %v733 = vpack.c.bf16 %v687, %v683
        %v734 = vpack.c.bf16 %v689, %v685
        %v735 = vpack.c.bf16 %v697, %v693
        %v736 = vpack.c.bf16 %v699, %v695
        %v737 = vpack.c.bf16 %v707, %v703
        %v738 = vpack.c.bf16 %v709, %v705
        %v767 = vunpack.c.l.b16 %v711
        %v768 = vunpack.c.l.b16 %v712
        %v769 = vunpack.c.h.b16 %v711
        %v770 = vunpack.c.h.b16 %v712
        %v771 = vunpack.c.l.b16 %v713
        %v772 = vunpack.c.l.b16 %v714
        %v773 = vunpack.c.h.b16 %v713
        %v774 = vunpack.c.h.b16 %v714
        %v775 = vunpack.c.l.b16 %v715
        %v776 = vunpack.c.l.b16 %v716
        %v777 = vunpack.c.h.b16 %v715
        %v778 = vunpack.c.h.b16 %v716
        %v779 = vunpack.c.l.b16 %v717
        %v780 = vunpack.c.l.b16 %v718
        %v781 = vunpack.c.h.b16 %v717
        %v782 = vunpack.c.h.b16 %v718
        %v783 = vunpack.c.l.b16 %v719
        %v784 = vunpack.c.l.b16 %v720
        %v785 = vunpack.c.h.b16 %v719
        %v786 = vunpack.c.h.b16 %v720
        %v787 = vunpack.c.l.b16 %v721
        %v788 = vunpack.c.l.b16 %v722
        %v789 = vunpack.c.h.b16 %v721
        %v790 = vunpack.c.h.b16 %v722
        %v791 = vunpack.c.l.b16 %v723
        %v792 = vunpack.c.l.b16 %v724
        %v793 = vunpack.c.h.b16 %v723
        %v794 = vunpack.c.h.b16 %v724
        %v795 = vunpack.c.l.b16 %v725
        %v796 = vunpack.c.l.b16 %v726
        %v797 = vunpack.c.h.b16 %v725
        %v798 = vunpack.c.h.b16 %v726
        %v799 = vunpack.c.l.b16 %v727
        %v800 = vunpack.c.l.b16 %v728
        %v801 = vunpack.c.h.b16 %v727
        %v802 = vunpack.c.h.b16 %v728
        %v803 = vunpack.c.l.b16 %v729
        %v804 = vunpack.c.l.b16 %v730
        %v805 = vunpack.c.h.b16 %v729
        %v806 = vunpack.c.h.b16 %v730
        %v807 = vunpack.c.l.b16 %v731
        %v808 = vunpack.c.l.b16 %v732
        %v809 = vunpack.c.h.b16 %v731
        %v810 = vunpack.c.h.b16 %v732
        %v811 = vunpack.c.l.b16 %v733
        %v812 = vunpack.c.l.b16 %v734
        %v813 = vunpack.c.h.b16 %v733
        %v814 = vunpack.c.h.b16 %v734
        %v815 = vunpack.c.l.b16 %v735
        %v816 = vunpack.c.l.b16 %v736
        %v817 = vunpack.c.h.b16 %v735
        %v818 = vunpack.c.h.b16 %v736
        %v819 = vunpack.c.l.b16 %v737
        %v820 = vunpack.c.l.b16 %v738
        %v821 = vunpack.c.h.b16 %v737
        %v822 = vunpack.c.h.b16 %v738
        %v823 = vpack.c.b16 %v768, %v767
        %v824 = vpack.c.b16 %v770, %v769
        %v825 = vpack.c.b16 %v772, %v771
        %v826 = vpack.c.b16 %v774, %v773
        %v827 = vpack.c.b16 %v776, %v775
        %v828 = vpack.c.b16 %v778, %v777
        %v829 = vpack.c.b16 %v780, %v779
        %v830 = vpack.c.b16 %v782, %v781
        %v831 = vpack.c.b16 %v784, %v783
        %v832 = vpack.c.b16 %v786, %v785
        %v833 = vpack.c.b16 %v788, %v787
        %v834 = vpack.c.b16 %v790, %v789
        %v835 = vpack.c.b16 %v792, %v791
        %v836 = vpack.c.b16 %v794, %v793
        %v837 = vpack.c.b16 %v796, %v795
        %v838 = vpack.c.b16 %v798, %v797
        %v839 = vpack.c.b16 %v800, %v799
        %v840 = vpack.c.b16 %v802, %v801
        %v841 = vpack.c.b16 %v804, %v803
        %v842 = vpack.c.b16 %v806, %v805
        %v843 = vpack.c.b16 %v808, %v807
        %v844 = vpack.c.b16 %v810, %v809
        %v845 = vpack.c.b16 %v812, %v811
        %v846 = vpack.c.b16 %v814, %v813
        %v847 = vpack.c.b16 %v816, %v815
        %v848 = vpack.c.b16 %v818, %v817
        %v849 = vpack.c.b16 %v820, %v819
        %v850 = vpack.c.b16 %v822, %v821
        %vm879 = vcmask 1043456
        %vm880 = vcmask 785412
        %vm881 = vmor %vm880, %vm879
        %882 = vst.msk [vmem:[%s204] sm:$0xff] %vm881, %v823
        %883 = vst.msk [vmem:[%s204 + $0x8] sm:$0xff] %vm881, %v824
        %884 = vst.msk [vmem:[%s204 + $0x10] sm:$0xff] %vm881, %v825
        %885 = vst.msk [vmem:[%s204 + $0x18] sm:$0xff] %vm881, %v826
        %886 = vst.msk [vmem:[%s204 + $0x20] sm:$0xff] %vm881, %v827
        %887 = vst.msk [vmem:[%s204 + $0x28] sm:$0xff] %vm881, %v828
        %888 = vst.msk [vmem:[%s204 + $0x30] sm:$0xff] %vm881, %v829
        %889 = vst.msk [vmem:[%s204 + $0x38] sm:$0xff] %vm881, %v830
        %890 = vst.msk [vmem:[%s204 + $0x40] sm:$0xff] %vm881, %v831
        %891 = vst.msk [vmem:[%s204 + $0x48] sm:$0xff] %vm881, %v832
        %892 = vst.msk [vmem:[%s204 + $0x50] sm:$0xff] %vm881, %v833
        %893 = vst.msk [vmem:[%s204 + $0x58] sm:$0xff] %vm881, %v834
        %894 = vst.msk [vmem:[%s204 + $0x60] sm:$0xff] %vm881, %v835
        %895 = vst.msk [vmem:[%s204 + $0x68] sm:$0xff] %vm881, %v836
        %896 = vst.msk [vmem:[%s204 + $0x70] sm:$0xff] %vm881, %v837
        %897 = vst.msk [vmem:[%s204 + $0x78] sm:$0xff] %vm881, %v838
        %898 = vst.msk [vmem:[%s204 + $0x80] sm:$0xff] %vm881, %v839
        %899 = vst.msk [vmem:[%s204 + $0x88] sm:$0xff] %vm881, %v840
        %900 = vst.msk [vmem:[%s204 + $0x90] sm:$0xff] %vm881, %v841
        %901 = vst.msk [vmem:[%s204 + $0x98] sm:$0xff] %vm881, %v842
        %902 = vst.msk [vmem:[%s204 + $0xa0] sm:$0xff] %vm881, %v843
        %903 = vst.msk [vmem:[%s204 + $0xa8] sm:$0xff] %vm881, %v844
        %904 = vst.msk [vmem:[%s204 + $0xb0] sm:$0xff] %vm881, %v845
        %905 = vst.msk [vmem:[%s204 + $0xb8] sm:$0xff] %vm881, %v846
        %906 = vst.msk [vmem:[%s204 + $0xc0] sm:$0xff] %vm881, %v847
        %907 = vst.msk [vmem:[%s204 + $0xc8] sm:$0xff] %vm881, %v848
        %908 = vst.msk [vmem:[%s204 + $0xd0] sm:$0xff] %vm881, %v849
        %909 = vst.msk [vmem:[%s204 + $0xd8] sm:$0xff] %vm881, %v850
        %910 = vmatprep.subr.bf16.mxu0 %v385
        %911 = vmatpush1.bf16.msra.mxu0 %v384
        %912 = vmatprep.subr.bf16.mxu0 0
        %913 = vmatpush1.bf16.msra.mxu0 0
        %914 = vmatprep.subr.bf16.mxu0 0
        %915 = vmatpush1.bf16.msra.mxu0 0
        %916 = vmatprep.subr.bf16.mxu0 0
        %917 = vmatpush1.bf16.msra.mxu0 0
        %918 = vmatprep.subr.bf16.mxu0 0
        %919 = vmatpush1.bf16.msra.mxu0 0
        %920 = vmatprep.subr.bf16.mxu0 0
        %921 = vmatpush1.bf16.msra.mxu0 0
        %922 = vmatprep.subr.bf16.mxu0 0
        %923 = vmatpush1.bf16.msra.mxu0 0
        %924 = vmatprep.subr.bf16.mxu0 0
        %925 = vmatpush1.bf16.msra.mxu0 0
        %926 = vmatprep.subr.bf16.mxu0 0
        %927 = vmatpush1.bf16.msra.mxu0 0
        %928 = vmatprep.subr.bf16.mxu0 0
        %929 = vmatpush1.bf16.msra.mxu0 0
        %930 = vmatprep.subr.bf16.mxu0 0
        %931 = vmatpush1.bf16.msra.mxu0 0
        %932 = vmatprep.subr.bf16.mxu0 0
        %933 = vmatpush1.bf16.msra.mxu0 0
        %934 = vmatprep.subr.bf16.mxu0 0
        %935 = vmatpush1.bf16.msra.mxu0 0
        %936 = vmatprep.subr.bf16.mxu0 0
        %937 = vmatpush1.bf16.msra.mxu0 0
        %938 = vmatprep.subr.bf16.mxu0 0
        %939 = vmatpush1.bf16.msra.mxu0 0
        %940 = vmatprep.subr.bf16.mxu0 0
        %941 = vmatpush1.bf16.msra.mxu0 0
        %942 = vmatprep.mubr.bf16.mxu0 0
        %943 = vmatmul.mubr.bf16.gmra.mrb[0].mxu0 %v497
        %v944 = vpop.f32.mrb[0].mxu0
        %v945 = vadd.f32 0.0, %v944
        %v946 = vpop.f32.mrb[0].mxu0
        %v947 = vadd.f32 0.0, %v946
        %v948 = vpop.f32.mrb[0].mxu0
        %v949 = vadd.f32 0.0, %v948
        %v950 = vpop.f32.mrb[0].mxu0
        %v951 = vadd.f32 0.0, %v950
        %952 = vmatprep.mubr.bf16.mxu0 0
        %953 = vmatmul.mubr.bf16.gmra.mrb[0].mxu0 %v500
        %v954 = vpop.f32.mrb[0].mxu0
        %v955 = vadd.f32 0.0, %v954
        %v956 = vpop.f32.mrb[0].mxu0
        %v957 = vadd.f32 0.0, %v956
        %v958 = vpop.f32.mrb[0].mxu0
        %v959 = vadd.f32 0.0, %v958
        %v960 = vpop.f32.mrb[0].mxu0
        %v961 = vadd.f32 0.0, %v960
        %962 = vmatprep.mubr.bf16.mxu0 0
        %963 = vmatmul.mubr.bf16.gmra.mrb[0].mxu0 %v503
        %v964 = vpop.f32.mrb[0].mxu0
        %v965 = vadd.f32 0.0, %v964
        %v966 = vpop.f32.mrb[0].mxu0
        %v967 = vadd.f32 0.0, %v966
        %v968 = vpop.f32.mrb[0].mxu0
        %v969 = vadd.f32 0.0, %v968
        %v970 = vpop.f32.mrb[0].mxu0
        %v971 = vadd.f32 0.0, %v970
        %972 = vmatprep.mubr.bf16.mxu0 0
        %973 = vmatmul.mubr.bf16.gmra.mrb[0].mxu0 %v506
        %v974 = vpop.f32.mrb[0].mxu0
        %v975 = vadd.f32 0.0, %v974
        %v976 = vpop.f32.mrb[0].mxu0
        %v977 = vadd.f32 0.0, %v976
        %v978 = vpop.f32.mrb[0].mxu0
        %v979 = vadd.f32 0.0, %v978
        %v980 = vpop.f32.mrb[0].mxu0
        %v981 = vadd.f32 0.0, %v980
        %982 = vmatprep.mubr.bf16.mxu0 0
        %983 = vmatmul.mubr.bf16.gmra.mrb[0].mxu0 %v509
        %v984 = vpop.f32.mrb[0].mxu0
        %v985 = vadd.f32 0.0, %v984
        %v986 = vpop.f32.mrb[0].mxu0
        %v987 = vadd.f32 0.0, %v986
        %v988 = vpop.f32.mrb[0].mxu0
        %v989 = vadd.f32 0.0, %v988
        %v990 = vpop.f32.mrb[0].mxu0
        %v991 = vadd.f32 0.0, %v990
        %992 = vmatprep.mubr.bf16.mxu0 0
        %993 = vmatmul.mubr.bf16.gmra.mrb[0].mxu0 %v512
        %v994 = vpop.f32.mrb[0].mxu0
        %v995 = vadd.f32 0.0, %v994
        %v996 = vpop.f32.mrb[0].mxu0
        %v997 = vadd.f32 0.0, %v996
        %v998 = vpop.f32.mrb[0].mxu0
        %v999 = vadd.f32 0.0, %v998
        %v1000 = vpop.f32.mrb[0].mxu0
        %v1001 = vadd.f32 0.0, %v1000
        %1002 = vmatprep.mubr.bf16.mxu0 0
        %1003 = vmatmul.mubr.bf16.gmra.mrb[0].mxu0 %v515
        %v1004 = vpop.f32.mrb[0].mxu0
        %v1005 = vadd.f32 0.0, %v1004
        %v1006 = vpop.f32.mrb[0].mxu0
        %v1007 = vadd.f32 0.0, %v1006
        %v1008 = vpop.f32.mrb[0].mxu0
        %v1009 = vadd.f32 0.0, %v1008
        %v1010 = vpop.f32.mrb[0].mxu0
        %v1011 = vadd.f32 0.0, %v1010
        %1012 = vmatprep.mubr.bf16.mxu0 0
        %1013 = vmatmul.mubr.bf16.gmra.mrb[0].mxu0 %v518
        %v1014 = vpop.f32.mrb[0].mxu0
        %v1015 = vadd.f32 0.0, %v1014
        %v1016 = vpop.f32.mrb[0].mxu0
        %v1017 = vadd.f32 0.0, %v1016
        %v1018 = vpop.f32.mrb[0].mxu0
        %v1019 = vadd.f32 0.0, %v1018
        %v1020 = vpop.f32.mrb[0].mxu0
        %v1021 = vadd.f32 0.0, %v1020
        %1022 = vmatprep.mubr.bf16.mxu0 0
        %1023 = vmatmul.mubr.bf16.gmra.mrb[0].mxu0 %v521
        %v1024 = vpop.f32.mrb[0].mxu0
        %v1025 = vadd.f32 0.0, %v1024
        %v1026 = vpop.f32.mrb[0].mxu0
        %v1027 = vadd.f32 0.0, %v1026
        %v1028 = vpop.f32.mrb[0].mxu0
        %v1029 = vadd.f32 0.0, %v1028
        %v1030 = vpop.f32.mrb[0].mxu0
        %v1031 = vadd.f32 0.0, %v1030
        %1032 = vmatprep.mubr.bf16.mxu0 0
        %1033 = vmatmul.mubr.bf16.gmra.mrb[0].mxu0 %v524
        %v1034 = vpop.f32.mrb[0].mxu0
        %v1035 = vadd.f32 0.0, %v1034
        %v1036 = vpop.f32.mrb[0].mxu0
        %v1037 = vadd.f32 0.0, %v1036
        %v1038 = vpop.f32.mrb[0].mxu0
        %v1039 = vadd.f32 0.0, %v1038
        %v1040 = vpop.f32.mrb[0].mxu0
        %v1041 = vadd.f32 0.0, %v1040
        %1042 = vmatprep.mubr.bf16.mxu0 0
        %1043 = vmatmul.mubr.bf16.gmra.mrb[0].mxu0 %v527
        %v1044 = vpop.f32.mrb[0].mxu0
        %v1045 = vadd.f32 0.0, %v1044
        %v1046 = vpop.f32.mrb[0].mxu0
        %v1047 = vadd.f32 0.0, %v1046
        %v1048 = vpop.f32.mrb[0].mxu0
        %v1049 = vadd.f32 0.0, %v1048
        %v1050 = vpop.f32.mrb[0].mxu0
        %v1051 = vadd.f32 0.0, %v1050
        %1052 = vmatprep.mubr.bf16.mxu0 0
        %1053 = vmatmul.mubr.bf16.gmra.mrb[0].mxu0 %v530
        %v1054 = vpop.f32.mrb[0].mxu0
        %v1055 = vadd.f32 0.0, %v1054
        %v1056 = vpop.f32.mrb[0].mxu0
        %v1057 = vadd.f32 0.0, %v1056
        %v1058 = vpop.f32.mrb[0].mxu0
        %v1059 = vadd.f32 0.0, %v1058
        %v1060 = vpop.f32.mrb[0].mxu0
        %v1061 = vadd.f32 0.0, %v1060
        %1062 = vmatprep.mubr.bf16.mxu0 0
        %1063 = vmatmul.mubr.bf16.gmra.mrb[0].mxu0 %v533
        %v1064 = vpop.f32.mrb[0].mxu0
        %v1065 = vadd.f32 0.0, %v1064
        %v1066 = vpop.f32.mrb[0].mxu0
        %v1067 = vadd.f32 0.0, %v1066
        %v1068 = vpop.f32.mrb[0].mxu0
        %v1069 = vadd.f32 0.0, %v1068
        %v1070 = vpop.f32.mrb[0].mxu0
        %v1071 = vadd.f32 0.0, %v1070
        %1072 = vmatprep.mubr.bf16.mxu0 0
        %1073 = vmatmul.mubr.bf16.gmra.mrb[0].mxu0 %v536
        %v1074 = vpop.f32.mrb[0].mxu0
        %v1075 = vadd.f32 0.0, %v1074
        %v1076 = vpop.f32.mrb[0].mxu0
        %v1077 = vadd.f32 0.0, %v1076
        %v1078 = vpop.f32.mrb[0].mxu0
        %v1079 = vadd.f32 0.0, %v1078
        %v1080 = vpop.f32.mrb[0].mxu0
        %v1081 = vadd.f32 0.0, %v1080
        %1082 = vdwg.mxu0
        %v1083 = vpack.c.bf16 %v949, %v945
        %v1084 = vpack.c.bf16 %v951, %v947
        %v1085 = vpack.c.bf16 %v959, %v955
        %v1086 = vpack.c.bf16 %v961, %v957
        %v1087 = vpack.c.bf16 %v969, %v965
        %v1088 = vpack.c.bf16 %v971, %v967
        %v1089 = vpack.c.bf16 %v979, %v975
        %v1090 = vpack.c.bf16 %v981, %v977
        %v1091 = vpack.c.bf16 %v989, %v985
        %v1092 = vpack.c.bf16 %v991, %v987
        %v1093 = vpack.c.bf16 %v999, %v995
        %v1094 = vpack.c.bf16 %v1001, %v997
        %v1095 = vpack.c.bf16 %v1009, %v1005
        %v1096 = vpack.c.bf16 %v1011, %v1007
        %v1097 = vpack.c.bf16 %v1019, %v1015
        %v1098 = vpack.c.bf16 %v1021, %v1017
        %v1099 = vpack.c.bf16 %v1029, %v1025
        %v1100 = vpack.c.bf16 %v1031, %v1027
        %v1101 = vpack.c.bf16 %v1039, %v1035
        %v1102 = vpack.c.bf16 %v1041, %v1037
        %v1103 = vpack.c.bf16 %v1049, %v1045
        %v1104 = vpack.c.bf16 %v1051, %v1047
        %v1105 = vpack.c.bf16 %v1059, %v1055
        %v1106 = vpack.c.bf16 %v1061, %v1057
        %v1107 = vpack.c.bf16 %v1069, %v1065
        %v1108 = vpack.c.bf16 %v1071, %v1067
        %v1109 = vpack.c.bf16 %v1079, %v1075
        %v1110 = vpack.c.bf16 %v1081, %v1077
        %v1139 = vunpack.c.l.b16 %v1083
        %v1140 = vunpack.c.l.b16 %v1084
        %v1141 = vunpack.c.h.b16 %v1083
        %v1142 = vunpack.c.h.b16 %v1084
        %v1143 = vunpack.c.l.b16 %v1085
        %v1144 = vunpack.c.l.b16 %v1086
        %v1145 = vunpack.c.h.b16 %v1085
        %v1146 = vunpack.c.h.b16 %v1086
        %v1147 = vunpack.c.l.b16 %v1087
        %v1148 = vunpack.c.l.b16 %v1088
        %v1149 = vunpack.c.h.b16 %v1087
        %v1150 = vunpack.c.h.b16 %v1088
        %v1151 = vunpack.c.l.b16 %v1089
        %v1152 = vunpack.c.l.b16 %v1090
        %v1153 = vunpack.c.h.b16 %v1089
        %v1154 = vunpack.c.h.b16 %v1090
        %v1155 = vunpack.c.l.b16 %v1091
        %v1156 = vunpack.c.l.b16 %v1092
        %v1157 = vunpack.c.h.b16 %v1091
        %v1158 = vunpack.c.h.b16 %v1092
        %v1159 = vunpack.c.l.b16 %v1093
        %v1160 = vunpack.c.l.b16 %v1094
        %v1161 = vunpack.c.h.b16 %v1093
        %v1162 = vunpack.c.h.b16 %v1094
        %v1163 = vunpack.c.l.b16 %v1095
        %v1164 = vunpack.c.l.b16 %v1096
        %v1165 = vunpack.c.h.b16 %v1095
        %v1166 = vunpack.c.h.b16 %v1096
        %v1167 = vunpack.c.l.b16 %v1097
        %v1168 = vunpack.c.l.b16 %v1098
        %v1169 = vunpack.c.h.b16 %v1097
        %v1170 = vunpack.c.h.b16 %v1098
        %v1171 = vunpack.c.l.b16 %v1099
        %v1172 = vunpack.c.l.b16 %v1100
        %v1173 = vunpack.c.h.b16 %v1099
        %v1174 = vunpack.c.h.b16 %v1100
        %v1175 = vunpack.c.l.b16 %v1101
        %v1176 = vunpack.c.l.b16 %v1102
        %v1177 = vunpack.c.h.b16 %v1101
        %v1178 = vunpack.c.h.b16 %v1102
        %v1179 = vunpack.c.l.b16 %v1103
        %v1180 = vunpack.c.l.b16 %v1104
        %v1181 = vunpack.c.h.b16 %v1103
        %v1182 = vunpack.c.h.b16 %v1104
        %v1183 = vunpack.c.l.b16 %v1105
        %v1184 = vunpack.c.l.b16 %v1106
        %v1185 = vunpack.c.h.b16 %v1105
        %v1186 = vunpack.c.h.b16 %v1106
        %v1187 = vunpack.c.l.b16 %v1107
        %v1188 = vunpack.c.l.b16 %v1108
        %v1189 = vunpack.c.h.b16 %v1107
        %v1190 = vunpack.c.h.b16 %v1108
        %v1191 = vunpack.c.l.b16 %v1109
        %v1192 = vunpack.c.l.b16 %v1110
        %v1193 = vunpack.c.h.b16 %v1109
        %v1194 = vunpack.c.h.b16 %v1110
        %v1195 = vpack.c.b16 %v1140, %v1139
        %v1196 = vpack.c.b16 %v1142, %v1141
        %v1197 = vpack.c.b16 %v1144, %v1143
        %v1198 = vpack.c.b16 %v1146, %v1145
        %v1199 = vpack.c.b16 %v1148, %v1147
        %v1200 = vpack.c.b16 %v1150, %v1149
        %v1201 = vpack.c.b16 %v1152, %v1151
        %v1202 = vpack.c.b16 %v1154, %v1153
        %v1203 = vpack.c.b16 %v1156, %v1155
        %v1204 = vpack.c.b16 %v1158, %v1157
        %v1205 = vpack.c.b16 %v1160, %v1159
        %v1206 = vpack.c.b16 %v1162, %v1161
        %v1207 = vpack.c.b16 %v1164, %v1163
        %v1208 = vpack.c.b16 %v1166, %v1165
        %v1209 = vpack.c.b16 %v1168, %v1167
        %v1210 = vpack.c.b16 %v1170, %v1169
        %v1211 = vpack.c.b16 %v1172, %v1171
        %v1212 = vpack.c.b16 %v1174, %v1173
        %v1213 = vpack.c.b16 %v1176, %v1175
        %v1214 = vpack.c.b16 %v1178, %v1177
        %v1215 = vpack.c.b16 %v1180, %v1179
        %v1216 = vpack.c.b16 %v1182, %v1181
        %v1217 = vpack.c.b16 %v1184, %v1183
        %v1218 = vpack.c.b16 %v1186, %v1185
        %v1219 = vpack.c.b16 %v1188, %v1187
        %v1220 = vpack.c.b16 %v1190, %v1189
        %v1221 = vpack.c.b16 %v1192, %v1191
        %v1222 = vpack.c.b16 %v1194, %v1193
        %s1251 = scalar_lea.vmem %s204, 224 [#allocation7]
        %1252 = vst.msk [vmem:[%s1251] sm:$0xff] %vm881, %v1195
        %1253 = vst.msk [vmem:[%s1251 + $0x8] sm:$0xff] %vm881, %v1196
        %1254 = vst.msk [vmem:[%s1251 + $0x10] sm:$0xff] %vm881, %v1197
        %1255 = vst.msk [vmem:[%s1251 + $0x18] sm:$0xff] %vm881, %v1198
        %1256 = vst.msk [vmem:[%s1251 + $0x20] sm:$0xff] %vm881, %v1199
        %1257 = vst.msk [vmem:[%s1251 + $0x28] sm:$0xff] %vm881, %v1200
        %1258 = vst.msk [vmem:[%s1251 + $0x30] sm:$0xff] %vm881, %v1201
        %1259 = vst.msk [vmem:[%s1251 + $0x38] sm:$0xff] %vm881, %v1202
        %1260 = vst.msk [vmem:[%s1251 + $0x40] sm:$0xff] %vm881, %v1203
        %1261 = vst.msk [vmem:[%s1251 + $0x48] sm:$0xff] %vm881, %v1204
        %1262 = vst.msk [vmem:[%s1251 + $0x50] sm:$0xff] %vm881, %v1205
        %1263 = vst.msk [vmem:[%s1251 + $0x58] sm:$0xff] %vm881, %v1206
        %1264 = vst.msk [vmem:[%s1251 + $0x60] sm:$0xff] %vm881, %v1207
        %1265 = vst.msk [vmem:[%s1251 + $0x68] sm:$0xff] %vm881, %v1208
        %1266 = vst.msk [vmem:[%s1251 + $0x70] sm:$0xff] %vm881, %v1209
        %1267 = vst.msk [vmem:[%s1251 + $0x78] sm:$0xff] %vm881, %v1210
        %1268 = vst.msk [vmem:[%s1251 + $0x80] sm:$0xff] %vm881, %v1211
        %1269 = vst.msk [vmem:[%s1251 + $0x88] sm:$0xff] %vm881, %v1212
        %1270 = vst.msk [vmem:[%s1251 + $0x90] sm:$0xff] %vm881, %v1213
        %1271 = vst.msk [vmem:[%s1251 + $0x98] sm:$0xff] %vm881, %v1214
        %1272 = vst.msk [vmem:[%s1251 + $0xa0] sm:$0xff] %vm881, %v1215
        %1273 = vst.msk [vmem:[%s1251 + $0xa8] sm:$0xff] %vm881, %v1216
        %1274 = vst.msk [vmem:[%s1251 + $0xb0] sm:$0xff] %vm881, %v1217
        %1275 = vst.msk [vmem:[%s1251 + $0xb8] sm:$0xff] %vm881, %v1218
        %1276 = vst.msk [vmem:[%s1251 + $0xc0] sm:$0xff] %vm881, %v1219
        %1277 = vst.msk [vmem:[%s1251 + $0xc8] sm:$0xff] %vm881, %v1220
        %1278 = vst.msk [vmem:[%s1251 + $0xd0] sm:$0xff] %vm881, %v1221
        %1279 = vst.msk [vmem:[%s1251 + $0xd8] sm:$0xff] %vm881, %v1222
        %1280 = vmatprep.subr.bf16.mxu0 %v387
        %1281 = vmatpush1.bf16.msra.mxu0 %v386
        %1282 = vmatprep.subr.bf16.mxu0 0
        %1283 = vmatpush1.bf16.msra.mxu0 0
        %1284 = vmatprep.subr.bf16.mxu0 0
        %1285 = vmatpush1.bf16.msra.mxu0 0
        %1286 = vmatprep.subr.bf16.mxu0 0
        %1287 = vmatpush1.bf16.msra.mxu0 0
        %1288 = vmatprep.subr.bf16.mxu0 0
        %1289 = vmatpush1.bf16.msra.mxu0 0
        %1290 = vmatprep.subr.bf16.mxu0 0
        %1291 = vmatpush1.bf16.msra.mxu0 0
        %1292 = vmatprep.subr.bf16.mxu0 0
        %1293 = vmatpush1.bf16.msra.mxu0 0
        %1294 = vmatprep.subr.bf16.mxu0 0
        %1295 = vmatpush1.bf16.msra.mxu0 0
        %1296 = vmatprep.subr.bf16.mxu0 0
        %1297 = vmatpush1.bf16.msra.mxu0 0
        %1298 = vmatprep.subr.bf16.mxu0 0
        %1299 = vmatpush1.bf16.msra.mxu0 0
        %1300 = vmatprep.subr.bf16.mxu0 0
        %1301 = vmatpush1.bf16.msra.mxu0 0
        %1302 = vmatprep.subr.bf16.mxu0 0
        %1303 = vmatpush1.bf16.msra.mxu0 0
        %1304 = vmatprep.subr.bf16.mxu0 0
        %1305 = vmatpush1.bf16.msra.mxu0 0
        %1306 = vmatprep.subr.bf16.mxu0 0
        %1307 = vmatpush1.bf16.msra.mxu0 0
        %1308 = vmatprep.subr.bf16.mxu0 0
        %1309 = vmatpush1.bf16.msra.mxu0 0
        %1310 = vmatprep.subr.bf16.mxu0 0
        %1311 = vmatpush1.bf16.msra.mxu0 0
        %1312 = vmatprep.mubr.bf16.mxu0 0
        %1313 = vmatmul.mubr.bf16.gmra.mrb[0].mxu0 %v497
        %v1314 = vpop.f32.mrb[0].mxu0
        %v1315 = vadd.f32 0.0, %v1314
        %v1316 = vpop.f32.mrb[0].mxu0
        %v1317 = vadd.f32 0.0, %v1316
        %v1318 = vpop.f32.mrb[0].mxu0
        %v1319 = vadd.f32 0.0, %v1318
        %v1320 = vpop.f32.mrb[0].mxu0
        %v1321 = vadd.f32 0.0, %v1320
        %1322 = vmatprep.mubr.bf16.mxu0 0
        %1323 = vmatmul.mubr.bf16.gmra.mrb[0].mxu0 %v500
        %v1324 = vpop.f32.mrb[0].mxu0
        %v1325 = vadd.f32 0.0, %v1324
        %v1326 = vpop.f32.mrb[0].mxu0
        %v1327 = vadd.f32 0.0, %v1326
        %v1328 = vpop.f32.mrb[0].mxu0
        %v1329 = vadd.f32 0.0, %v1328
        %v1330 = vpop.f32.mrb[0].mxu0
        %v1331 = vadd.f32 0.0, %v1330
        %1332 = vmatprep.mubr.bf16.mxu0 0
        %1333 = vmatmul.mubr.bf16.gmra.mrb[0].mxu0 %v503
        %v1334 = vpop.f32.mrb[0].mxu0
        %v1335 = vadd.f32 0.0, %v1334
        %v1336 = vpop.f32.mrb[0].mxu0
        %v1337 = vadd.f32 0.0, %v1336
        %v1338 = vpop.f32.mrb[0].mxu0
        %v1339 = vadd.f32 0.0, %v1338
        %v1340 = vpop.f32.mrb[0].mxu0
        %v1341 = vadd.f32 0.0, %v1340
        %1342 = vmatprep.mubr.bf16.mxu0 0
        %1343 = vmatmul.mubr.bf16.gmra.mrb[0].mxu0 %v506
        %v1344 = vpop.f32.mrb[0].mxu0
        %v1345 = vadd.f32 0.0, %v1344
        %v1346 = vpop.f32.mrb[0].mxu0
        %v1347 = vadd.f32 0.0, %v1346
        %v1348 = vpop.f32.mrb[0].mxu0
        %v1349 = vadd.f32 0.0, %v1348
        %v1350 = vpop.f32.mrb[0].mxu0
        %v1351 = vadd.f32 0.0, %v1350
        %1352 = vmatprep.mubr.bf16.mxu0 0
        %1353 = vmatmul.mubr.bf16.gmra.mrb[0].mxu0 %v509
        %v1354 = vpop.f32.mrb[0].mxu0
        %v1355 = vadd.f32 0.0, %v1354
        %v1356 = vpop.f32.mrb[0].mxu0
        %v1357 = vadd.f32 0.0, %v1356
        %v1358 = vpop.f32.mrb[0].mxu0
        %v1359 = vadd.f32 0.0, %v1358
        %v1360 = vpop.f32.mrb[0].mxu0
        %v1361 = vadd.f32 0.0, %v1360
        %1362 = vmatprep.mubr.bf16.mxu0 0
        %1363 = vmatmul.mubr.bf16.gmra.mrb[0].mxu0 %v512
        %v1364 = vpop.f32.mrb[0].mxu0
        %v1365 = vadd.f32 0.0, %v1364
        %v1366 = vpop.f32.mrb[0].mxu0
        %v1367 = vadd.f32 0.0, %v1366
        %v1368 = vpop.f32.mrb[0].mxu0
        %v1369 = vadd.f32 0.0, %v1368
        %v1370 = vpop.f32.mrb[0].mxu0
        %v1371 = vadd.f32 0.0, %v1370
        %1372 = vmatprep.mubr.bf16.mxu0 0
        %1373 = vmatmul.mubr.bf16.gmra.mrb[0].mxu0 %v515
        %v1374 = vpop.f32.mrb[0].mxu0
        %v1375 = vadd.f32 0.0, %v1374
        %v1376 = vpop.f32.mrb[0].mxu0
        %v1377 = vadd.f32 0.0, %v1376
        %v1378 = vpop.f32.mrb[0].mxu0
        %v1379 = vadd.f32 0.0, %v1378
        %v1380 = vpop.f32.mrb[0].mxu0
        %v1381 = vadd.f32 0.0, %v1380
        %1382 = vmatprep.mubr.bf16.mxu0 0
        %1383 = vmatmul.mubr.bf16.gmra.mrb[0].mxu0 %v518
        %v1384 = vpop.f32.mrb[0].mxu0
        %v1385 = vadd.f32 0.0, %v1384
        %v1386 = vpop.f32.mrb[0].mxu0
        %v1387 = vadd.f32 0.0, %v1386
        %v1388 = vpop.f32.mrb[0].mxu0
        %v1389 = vadd.f32 0.0, %v1388
        %v1390 = vpop.f32.mrb[0].mxu0
        %v1391 = vadd.f32 0.0, %v1390
        %1392 = vmatprep.mubr.bf16.mxu0 0
        %1393 = vmatmul.mubr.bf16.gmra.mrb[0].mxu0 %v521
        %v1394 = vpop.f32.mrb[0].mxu0
        %v1395 = vadd.f32 0.0, %v1394
        %v1396 = vpop.f32.mrb[0].mxu0
        %v1397 = vadd.f32 0.0, %v1396
        %v1398 = vpop.f32.mrb[0].mxu0
        %v1399 = vadd.f32 0.0, %v1398
        %v1400 = vpop.f32.mrb[0].mxu0
        %v1401 = vadd.f32 0.0, %v1400
        %1402 = vmatprep.mubr.bf16.mxu0 0
        %1403 = vmatmul.mubr.bf16.gmra.mrb[0].mxu0 %v524
        %v1404 = vpop.f32.mrb[0].mxu0
        %v1405 = vadd.f32 0.0, %v1404
        %v1406 = vpop.f32.mrb[0].mxu0
        %v1407 = vadd.f32 0.0, %v1406
        %v1408 = vpop.f32.mrb[0].mxu0
        %v1409 = vadd.f32 0.0, %v1408
        %v1410 = vpop.f32.mrb[0].mxu0
        %v1411 = vadd.f32 0.0, %v1410
        %1412 = vmatprep.mubr.bf16.mxu0 0
        %1413 = vmatmul.mubr.bf16.gmra.mrb[0].mxu0 %v527
        %v1414 = vpop.f32.mrb[0].mxu0
        %v1415 = vadd.f32 0.0, %v1414
        %v1416 = vpop.f32.mrb[0].mxu0
        %v1417 = vadd.f32 0.0, %v1416
        %v1418 = vpop.f32.mrb[0].mxu0
        %v1419 = vadd.f32 0.0, %v1418
        %v1420 = vpop.f32.mrb[0].mxu0
        %v1421 = vadd.f32 0.0, %v1420
        %1422 = vmatprep.mubr.bf16.mxu0 0
        %1423 = vmatmul.mubr.bf16.gmra.mrb[0].mxu0 %v530
        %v1424 = vpop.f32.mrb[0].mxu0
        %v1425 = vadd.f32 0.0, %v1424
        %v1426 = vpop.f32.mrb[0].mxu0
        %v1427 = vadd.f32 0.0, %v1426
        %v1428 = vpop.f32.mrb[0].mxu0
        %v1429 = vadd.f32 0.0, %v1428
        %v1430 = vpop.f32.mrb[0].mxu0
        %v1431 = vadd.f32 0.0, %v1430
        %1432 = vmatprep.mubr.bf16.mxu0 0
        %1433 = vmatmul.mubr.bf16.gmra.mrb[0].mxu0 %v533
        %v1434 = vpop.f32.mrb[0].mxu0
        %v1435 = vadd.f32 0.0, %v1434
        %v1436 = vpop.f32.mrb[0].mxu0
        %v1437 = vadd.f32 0.0, %v1436
        %v1438 = vpop.f32.mrb[0].mxu0
        %v1439 = vadd.f32 0.0, %v1438
        %v1440 = vpop.f32.mrb[0].mxu0
        %v1441 = vadd.f32 0.0, %v1440
        %1442 = vmatprep.mubr.bf16.mxu0 0
        %1443 = vmatmul.mubr.bf16.gmra.mrb[0].mxu0 %v536
        %v1444 = vpop.f32.mrb[0].mxu0
        %v1445 = vadd.f32 0.0, %v1444
        %v1446 = vpop.f32.mrb[0].mxu0
        %v1447 = vadd.f32 0.0, %v1446
        %v1448 = vpop.f32.mrb[0].mxu0
        %v1449 = vadd.f32 0.0, %v1448
        %v1450 = vpop.f32.mrb[0].mxu0
        %v1451 = vadd.f32 0.0, %v1450
        %1452 = vdwg.mxu0
        %v1453 = vpack.c.bf16 %v1319, %v1315
        %v1454 = vpack.c.bf16 %v1321, %v1317
        %v1455 = vpack.c.bf16 %v1329, %v1325
        %v1456 = vpack.c.bf16 %v1331, %v1327
        %v1457 = vpack.c.bf16 %v1339, %v1335
        %v1458 = vpack.c.bf16 %v1341, %v1337
        %v1459 = vpack.c.bf16 %v1349, %v1345
        %v1460 = vpack.c.bf16 %v1351, %v1347
        %v1461 = vpack.c.bf16 %v1359, %v1355
        %v1462 = vpack.c.bf16 %v1361, %v1357
        %v1463 = vpack.c.bf16 %v1369, %v1365
        %v1464 = vpack.c.bf16 %v1371, %v1367
        %v1465 = vpack.c.bf16 %v1379, %v1375
        %v1466 = vpack.c.bf16 %v1381, %v1377
        %v1467 = vpack.c.bf16 %v1389, %v1385
        %v1468 = vpack.c.bf16 %v1391, %v1387
        %v1469 = vpack.c.bf16 %v1399, %v1395
        %v1470 = vpack.c.bf16 %v1401, %v1397
        %v1471 = vpack.c.bf16 %v1409, %v1405
        %v1472 = vpack.c.bf16 %v1411, %v1407
        %v1473 = vpack.c.bf16 %v1419, %v1415
        %v1474 = vpack.c.bf16 %v1421, %v1417
        %v1475 = vpack.c.bf16 %v1429, %v1425
        %v1476 = vpack.c.bf16 %v1431, %v1427
        %v1477 = vpack.c.bf16 %v1439, %v1435
        %v1478 = vpack.c.bf16 %v1441, %v1437
        %v1479 = vpack.c.bf16 %v1449, %v1445
        %v1480 = vpack.c.bf16 %v1451, %v1447
        %v1509 = vunpack.c.l.b16 %v1453
        %v1510 = vunpack.c.l.b16 %v1454
        %v1511 = vunpack.c.h.b16 %v1453
        %v1512 = vunpack.c.h.b16 %v1454
        %v1513 = vunpack.c.l.b16 %v1455
        %v1514 = vunpack.c.l.b16 %v1456
        %v1515 = vunpack.c.h.b16 %v1455
        %v1516 = vunpack.c.h.b16 %v1456
        %v1517 = vunpack.c.l.b16 %v1457
        %v1518 = vunpack.c.l.b16 %v1458
        %v1519 = vunpack.c.h.b16 %v1457
        %v1520 = vunpack.c.h.b16 %v1458
        %v1521 = vunpack.c.l.b16 %v1459
        %v1522 = vunpack.c.l.b16 %v1460
        %v1523 = vunpack.c.h.b16 %v1459
        %v1524 = vunpack.c.h.b16 %v1460
        %v1525 = vunpack.c.l.b16 %v1461
        %v1526 = vunpack.c.l.b16 %v1462
        %v1527 = vunpack.c.h.b16 %v1461
        %v1528 = vunpack.c.h.b16 %v1462
        %v1529 = vunpack.c.l.b16 %v1463
        %v1530 = vunpack.c.l.b16 %v1464
        %v1531 = vunpack.c.h.b16 %v1463
        %v1532 = vunpack.c.h.b16 %v1464
        %v1533 = vunpack.c.l.b16 %v1465
        %v1534 = vunpack.c.l.b16 %v1466
        %v1535 = vunpack.c.h.b16 %v1465
        %v1536 = vunpack.c.h.b16 %v1466
        %v1537 = vunpack.c.l.b16 %v1467
        %v1538 = vunpack.c.l.b16 %v1468
        %v1539 = vunpack.c.h.b16 %v1467
        %v1540 = vunpack.c.h.b16 %v1468
        %v1541 = vunpack.c.l.b16 %v1469
        %v1542 = vunpack.c.l.b16 %v1470
        %v1543 = vunpack.c.h.b16 %v1469
        %v1544 = vunpack.c.h.b16 %v1470
        %v1545 = vunpack.c.l.b16 %v1471
        %v1546 = vunpack.c.l.b16 %v1472
        %v1547 = vunpack.c.h.b16 %v1471
        %v1548 = vunpack.c.h.b16 %v1472
        %v1549 = vunpack.c.l.b16 %v1473
        %v1550 = vunpack.c.l.b16 %v1474
        %v1551 = vunpack.c.h.b16 %v1473
        %v1552 = vunpack.c.h.b16 %v1474
        %v1553 = vunpack.c.l.b16 %v1475
        %v1554 = vunpack.c.l.b16 %v1476
        %v1555 = vunpack.c.h.b16 %v1475
        %v1556 = vunpack.c.h.b16 %v1476
        %v1557 = vunpack.c.l.b16 %v1477
        %v1558 = vunpack.c.l.b16 %v1478
        %v1559 = vunpack.c.h.b16 %v1477
        %v1560 = vunpack.c.h.b16 %v1478
        %v1561 = vunpack.c.l.b16 %v1479
        %v1562 = vunpack.c.l.b16 %v1480
        %v1563 = vunpack.c.h.b16 %v1479
        %v1564 = vunpack.c.h.b16 %v1480
        %v1565 = vpack.c.b16 %v1510, %v1509
        %v1566 = vpack.c.b16 %v1512, %v1511
        %v1567 = vpack.c.b16 %v1514, %v1513
        %v1568 = vpack.c.b16 %v1516, %v1515
        %v1569 = vpack.c.b16 %v1518, %v1517
        %v1570 = vpack.c.b16 %v1520, %v1519
        %v1571 = vpack.c.b16 %v1522, %v1521
        %v1572 = vpack.c.b16 %v1524, %v1523
        %v1573 = vpack.c.b16 %v1526, %v1525
        %v1574 = vpack.c.b16 %v1528, %v1527
        %v1575 = vpack.c.b16 %v1530, %v1529
        %v1576 = vpack.c.b16 %v1532, %v1531
        %v1577 = vpack.c.b16 %v1534, %v1533
        %v1578 = vpack.c.b16 %v1536, %v1535
        %v1579 = vpack.c.b16 %v1538, %v1537
        %v1580 = vpack.c.b16 %v1540, %v1539
        %v1581 = vpack.c.b16 %v1542, %v1541
        %v1582 = vpack.c.b16 %v1544, %v1543
        %v1583 = vpack.c.b16 %v1546, %v1545
        %v1584 = vpack.c.b16 %v1548, %v1547
        %v1585 = vpack.c.b16 %v1550, %v1549
        %v1586 = vpack.c.b16 %v1552, %v1551
        %v1587 = vpack.c.b16 %v1554, %v1553
        %v1588 = vpack.c.b16 %v1556, %v1555
        %v1589 = vpack.c.b16 %v1558, %v1557
        %v1590 = vpack.c.b16 %v1560, %v1559
        %v1591 = vpack.c.b16 %v1562, %v1561
        %v1592 = vpack.c.b16 %v1564, %v1563
        %s1621 = scalar_lea.vmem %s204, 448 [#allocation7]
        %1622 = vst.msk [vmem:[%s1621] sm:$0xff] %vm881, %v1565
        %1623 = vst.msk [vmem:[%s1621 + $0x8] sm:$0xff] %vm881, %v1566
        %1624 = vst.msk [vmem:[%s1621 + $0x10] sm:$0xff] %vm881, %v1567
        %1625 = vst.msk [vmem:[%s1621 + $0x18] sm:$0xff] %vm881, %v1568
        %1626 = vst.msk [vmem:[%s1621 + $0x20] sm:$0xff] %vm881, %v1569
        %1627 = vst.msk [vmem:[%s1621 + $0x28] sm:$0xff] %vm881, %v1570
        %1628 = vst.msk [vmem:[%s1621 + $0x30] sm:$0xff] %vm881, %v1571
        %1629 = vst.msk [vmem:[%s1621 + $0x38] sm:$0xff] %vm881, %v1572
        %1630 = vst.msk [vmem:[%s1621 + $0x40] sm:$0xff] %vm881, %v1573
        %1631 = vst.msk [vmem:[%s1621 + $0x48] sm:$0xff] %vm881, %v1574
        %1632 = vst.msk [vmem:[%s1621 + $0x50] sm:$0xff] %vm881, %v1575
        %1633 = vst.msk [vmem:[%s1621 + $0x58] sm:$0xff] %vm881, %v1576
        %1634 = vst.msk [vmem:[%s1621 + $0x60] sm:$0xff] %vm881, %v1577
        %1635 = vst.msk [vmem:[%s1621 + $0x68] sm:$0xff] %vm881, %v1578
        %1636 = vst.msk [vmem:[%s1621 + $0x70] sm:$0xff] %vm881, %v1579
        %1637 = vst.msk [vmem:[%s1621 + $0x78] sm:$0xff] %vm881, %v1580
        %1638 = vst.msk [vmem:[%s1621 + $0x80] sm:$0xff] %vm881, %v1581
        %1639 = vst.msk [vmem:[%s1621 + $0x88] sm:$0xff] %vm881, %v1582
        %1640 = vst.msk [vmem:[%s1621 + $0x90] sm:$0xff] %vm881, %v1583
        %1641 = vst.msk [vmem:[%s1621 + $0x98] sm:$0xff] %vm881, %v1584
        %1642 = vst.msk [vmem:[%s1621 + $0xa0] sm:$0xff] %vm881, %v1585
        %1643 = vst.msk [vmem:[%s1621 + $0xa8] sm:$0xff] %vm881, %v1586
        %1644 = vst.msk [vmem:[%s1621 + $0xb0] sm:$0xff] %vm881, %v1587
        %1645 = vst.msk [vmem:[%s1621 + $0xb8] sm:$0xff] %vm881, %v1588
        %1646 = vst.msk [vmem:[%s1621 + $0xc0] sm:$0xff] %vm881, %v1589
        %1647 = vst.msk [vmem:[%s1621 + $0xc8] sm:$0xff] %vm881, %v1590
        %1648 = vst.msk [vmem:[%s1621 + $0xd0] sm:$0xff] %vm881, %v1591
        %1649 = vst.msk [vmem:[%s1621 + $0xd8] sm:$0xff] %vm881, %v1592
        %1650 = vmatprep.subr.bf16.mxu0 %v389
        %1651 = vmatpush1.bf16.msra.mxu0 %v388
        %1652 = vmatprep.subr.bf16.mxu0 0
        %1653 = vmatpush1.bf16.msra.mxu0 0
        %1654 = vmatprep.subr.bf16.mxu0 0
        %1655 = vmatpush1.bf16.msra.mxu0 0
        %1656 = vmatprep.subr.bf16.mxu0 0
        %1657 = vmatpush1.bf16.msra.mxu0 0
        %1658 = vmatprep.subr.bf16.mxu0 0
        %1659 = vmatpush1.bf16.msra.mxu0 0
        %1660 = vmatprep.subr.bf16.mxu0 0
        %1661 = vmatpush1.bf16.msra.mxu0 0
        %1662 = vmatprep.subr.bf16.mxu0 0
        %1663 = vmatpush1.bf16.msra.mxu0 0
        %1664 = vmatprep.subr.bf16.mxu0 0
        %1665 = vmatpush1.bf16.msra.mxu0 0
        %1666 = vmatprep.subr.bf16.mxu0 0
        %1667 = vmatpush1.bf16.msra.mxu0 0
        %1668 = vmatprep.subr.bf16.mxu0 0
        %1669 = vmatpush1.bf16.msra.mxu0 0
        %1670 = vmatprep.subr.bf16.mxu0 0
        %1671 = vmatpush1.bf16.msra.mxu0 0
        %1672 = vmatprep.subr.bf16.mxu0 0
        %1673 = vmatpush1.bf16.msra.mxu0 0
        %1674 = vmatprep.subr.bf16.mxu0 0
        %1675 = vmatpush1.bf16.msra.mxu0 0
        %1676 = vmatprep.subr.bf16.mxu0 0
        %1677 = vmatpush1.bf16.msra.mxu0 0
        %1678 = vmatprep.subr.bf16.mxu0 0
        %1679 = vmatpush1.bf16.msra.mxu0 0
        %1680 = vmatprep.subr.bf16.mxu0 0
        %1681 = vmatpush1.bf16.msra.mxu0 0
        %1682 = vmatprep.mubr.bf16.mxu0 0
        %1683 = vmatmul.mubr.bf16.gmra.mrb[0].mxu0 %v497
        %v1684 = vpop.f32.mrb[0].mxu0
        %v1685 = vadd.f32 0.0, %v1684
        %v1686 = vpop.f32.mrb[0].mxu0
        %v1687 = vadd.f32 0.0, %v1686
        %v1688 = vpop.f32.mrb[0].mxu0
        %v1689 = vadd.f32 0.0, %v1688
        %v1690 = vpop.f32.mrb[0].mxu0
        %v1691 = vadd.f32 0.0, %v1690
        %1692 = vmatprep.mubr.bf16.mxu0 0
        %1693 = vmatmul.mubr.bf16.gmra.mrb[0].mxu0 %v500
        %v1694 = vpop.f32.mrb[0].mxu0
        %v1695 = vadd.f32 0.0, %v1694
        %v1696 = vpop.f32.mrb[0].mxu0
        %v1697 = vadd.f32 0.0, %v1696
        %v1698 = vpop.f32.mrb[0].mxu0
        %v1699 = vadd.f32 0.0, %v1698
        %v1700 = vpop.f32.mrb[0].mxu0
        %v1701 = vadd.f32 0.0, %v1700
        %1702 = vmatprep.mubr.bf16.mxu0 0
        %1703 = vmatmul.mubr.bf16.gmra.mrb[0].mxu0 %v503
        %v1704 = vpop.f32.mrb[0].mxu0
        %v1705 = vadd.f32 0.0, %v1704
        %v1706 = vpop.f32.mrb[0].mxu0
        %v1707 = vadd.f32 0.0, %v1706
        %v1708 = vpop.f32.mrb[0].mxu0
        %v1709 = vadd.f32 0.0, %v1708
        %v1710 = vpop.f32.mrb[0].mxu0
        %v1711 = vadd.f32 0.0, %v1710
        %1712 = vmatprep.mubr.bf16.mxu0 0
        %1713 = vmatmul.mubr.bf16.gmra.mrb[0].mxu0 %v506
        %v1714 = vpop.f32.mrb[0].mxu0
        %v1715 = vadd.f32 0.0, %v1714
        %v1716 = vpop.f32.mrb[0].mxu0
        %v1717 = vadd.f32 0.0, %v1716
        %v1718 = vpop.f32.mrb[0].mxu0
        %v1719 = vadd.f32 0.0, %v1718
        %v1720 = vpop.f32.mrb[0].mxu0
        %v1721 = vadd.f32 0.0, %v1720
        %1722 = vmatprep.mubr.bf16.mxu0 0
        %1723 = vmatmul.mubr.bf16.gmra.mrb[0].mxu0 %v509
        %v1724 = vpop.f32.mrb[0].mxu0
        %v1725 = vadd.f32 0.0, %v1724
        %v1726 = vpop.f32.mrb[0].mxu0
        %v1727 = vadd.f32 0.0, %v1726
        %v1728 = vpop.f32.mrb[0].mxu0
        %v1729 = vadd.f32 0.0, %v1728
        %v1730 = vpop.f32.mrb[0].mxu0
        %v1731 = vadd.f32 0.0, %v1730
        %1732 = vmatprep.mubr.bf16.mxu0 0
        %1733 = vmatmul.mubr.bf16.gmra.mrb[0].mxu0 %v512
        %v1734 = vpop.f32.mrb[0].mxu0
        %v1735 = vadd.f32 0.0, %v1734
        %v1736 = vpop.f32.mrb[0].mxu0
        %v1737 = vadd.f32 0.0, %v1736
        %v1738 = vpop.f32.mrb[0].mxu0
        %v1739 = vadd.f32 0.0, %v1738
        %v1740 = vpop.f32.mrb[0].mxu0
        %v1741 = vadd.f32 0.0, %v1740
        %1742 = vmatprep.mubr.bf16.mxu0 0
        %1743 = vmatmul.mubr.bf16.gmra.mrb[0].mxu0 %v515
        %v1744 = vpop.f32.mrb[0].mxu0
        %v1745 = vadd.f32 0.0, %v1744
        %v1746 = vpop.f32.mrb[0].mxu0
        %v1747 = vadd.f32 0.0, %v1746
        %v1748 = vpop.f32.mrb[0].mxu0
        %v1749 = vadd.f32 0.0, %v1748
        %v1750 = vpop.f32.mrb[0].mxu0
        %v1751 = vadd.f32 0.0, %v1750
        %1752 = vmatprep.mubr.bf16.mxu0 0
        %1753 = vmatmul.mubr.bf16.gmra.mrb[0].mxu0 %v518
        %v1754 = vpop.f32.mrb[0].mxu0
        %v1755 = vadd.f32 0.0, %v1754
        %v1756 = vpop.f32.mrb[0].mxu0
        %v1757 = vadd.f32 0.0, %v1756
        %v1758 = vpop.f32.mrb[0].mxu0
        %v1759 = vadd.f32 0.0, %v1758
        %v1760 = vpop.f32.mrb[0].mxu0
        %v1761 = vadd.f32 0.0, %v1760
        %1762 = vmatprep.mubr.bf16.mxu0 0
        %1763 = vmatmul.mubr.bf16.gmra.mrb[0].mxu0 %v521
        %v1764 = vpop.f32.mrb[0].mxu0
        %v1765 = vadd.f32 0.0, %v1764
        %v1766 = vpop.f32.mrb[0].mxu0
        %v1767 = vadd.f32 0.0, %v1766
        %v1768 = vpop.f32.mrb[0].mxu0
        %v1769 = vadd.f32 0.0, %v1768
        %v1770 = vpop.f32.mrb[0].mxu0
        %v1771 = vadd.f32 0.0, %v1770
        %1772 = vmatprep.mubr.bf16.mxu0 0
        %1773 = vmatmul.mubr.bf16.gmra.mrb[0].mxu0 %v524
        %v1774 = vpop.f32.mrb[0].mxu0
        %v1775 = vadd.f32 0.0, %v1774
        %v1776 = vpop.f32.mrb[0].mxu0
        %v1777 = vadd.f32 0.0, %v1776
        %v1778 = vpop.f32.mrb[0].mxu0
        %v1779 = vadd.f32 0.0, %v1778
        %v1780 = vpop.f32.mrb[0].mxu0
        %v1781 = vadd.f32 0.0, %v1780
        %1782 = vmatprep.mubr.bf16.mxu0 0
        %1783 = vmatmul.mubr.bf16.gmra.mrb[0].mxu0 %v527
        %v1784 = vpop.f32.mrb[0].mxu0
        %v1785 = vadd.f32 0.0, %v1784
        %v1786 = vpop.f32.mrb[0].mxu0
        %v1787 = vadd.f32 0.0, %v1786
        %v1788 = vpop.f32.mrb[0].mxu0
        %v1789 = vadd.f32 0.0, %v1788
        %v1790 = vpop.f32.mrb[0].mxu0
        %v1791 = vadd.f32 0.0, %v1790
        %1792 = vmatprep.mubr.bf16.mxu0 0
        %1793 = vmatmul.mubr.bf16.gmra.mrb[0].mxu0 %v530
        %v1794 = vpop.f32.mrb[0].mxu0
        %v1795 = vadd.f32 0.0, %v1794
        %v1796 = vpop.f32.mrb[0].mxu0
        %v1797 = vadd.f32 0.0, %v1796
        %v1798 = vpop.f32.mrb[0].mxu0
        %v1799 = vadd.f32 0.0, %v1798
        %v1800 = vpop.f32.mrb[0].mxu0
        %v1801 = vadd.f32 0.0, %v1800
        %1802 = vmatprep.mubr.bf16.mxu0 0
        %1803 = vmatmul.mubr.bf16.gmra.mrb[0].mxu0 %v533
        %v1804 = vpop.f32.mrb[0].mxu0
        %v1805 = vadd.f32 0.0, %v1804
        %v1806 = vpop.f32.mrb[0].mxu0
        %v1807 = vadd.f32 0.0, %v1806
        %v1808 = vpop.f32.mrb[0].mxu0
        %v1809 = vadd.f32 0.0, %v1808
        %v1810 = vpop.f32.mrb[0].mxu0
        %v1811 = vadd.f32 0.0, %v1810
        %1812 = vmatprep.mubr.bf16.mxu0 0
        %1813 = vmatmul.mubr.bf16.gmra.mrb[0].mxu0 %v536
        %v1814 = vpop.f32.mrb[0].mxu0
        %v1815 = vadd.f32 0.0, %v1814
        %v1816 = vpop.f32.mrb[0].mxu0
        %v1817 = vadd.f32 0.0, %v1816
        %v1818 = vpop.f32.mrb[0].mxu0
        %v1819 = vadd.f32 0.0, %v1818
        %v1820 = vpop.f32.mrb[0].mxu0
        %v1821 = vadd.f32 0.0, %v1820
        %1822 = vdwg.mxu0
        %v1823 = vpack.c.bf16 %v1689, %v1685
        %v1824 = vpack.c.bf16 %v1691, %v1687
        %v1825 = vpack.c.bf16 %v1699, %v1695
        %v1826 = vpack.c.bf16 %v1701, %v1697
        %v1827 = vpack.c.bf16 %v1709, %v1705
        %v1828 = vpack.c.bf16 %v1711, %v1707
        %v1829 = vpack.c.bf16 %v1719, %v1715
        %v1830 = vpack.c.bf16 %v1721, %v1717
        %v1831 = vpack.c.bf16 %v1729, %v1725
        %v1832 = vpack.c.bf16 %v1731, %v1727
        %v1833 = vpack.c.bf16 %v1739, %v1735
        %v1834 = vpack.c.bf16 %v1741, %v1737
        %v1835 = vpack.c.bf16 %v1749, %v1745
        %v1836 = vpack.c.bf16 %v1751, %v1747
        %v1837 = vpack.c.bf16 %v1759, %v1755
        %v1838 = vpack.c.bf16 %v1761, %v1757
        %v1839 = vpack.c.bf16 %v1769, %v1765
        %v1840 = vpack.c.bf16 %v1771, %v1767
        %v1841 = vpack.c.bf16 %v1779, %v1775
        %v1842 = vpack.c.bf16 %v1781, %v1777
        %v1843 = vpack.c.bf16 %v1789, %v1785
        %v1844 = vpack.c.bf16 %v1791, %v1787
        %v1845 = vpack.c.bf16 %v1799, %v1795
        %v1846 = vpack.c.bf16 %v1801, %v1797
        %v1847 = vpack.c.bf16 %v1809, %v1805
        %v1848 = vpack.c.bf16 %v1811, %v1807
        %v1849 = vpack.c.bf16 %v1819, %v1815
        %v1850 = vpack.c.bf16 %v1821, %v1817
        %v1879 = vunpack.c.l.b16 %v1823
        %v1880 = vunpack.c.l.b16 %v1824
        %v1881 = vunpack.c.h.b16 %v1823
        %v1882 = vunpack.c.h.b16 %v1824
        %v1883 = vunpack.c.l.b16 %v1825
        %v1884 = vunpack.c.l.b16 %v1826
        %v1885 = vunpack.c.h.b16 %v1825
        %v1886 = vunpack.c.h.b16 %v1826
        %v1887 = vunpack.c.l.b16 %v1827
        %v1888 = vunpack.c.l.b16 %v1828
        %v1889 = vunpack.c.h.b16 %v1827
        %v1890 = vunpack.c.h.b16 %v1828
        %v1891 = vunpack.c.l.b16 %v1829
        %v1892 = vunpack.c.l.b16 %v1830
        %v1893 = vunpack.c.h.b16 %v1829
        %v1894 = vunpack.c.h.b16 %v1830
        %v1895 = vunpack.c.l.b16 %v1831
        %v1896 = vunpack.c.l.b16 %v1832
        %v1897 = vunpack.c.h.b16 %v1831
        %v1898 = vunpack.c.h.b16 %v1832
        %v1899 = vunpack.c.l.b16 %v1833
        %v1900 = vunpack.c.l.b16 %v1834
        %v1901 = vunpack.c.h.b16 %v1833
        %v1902 = vunpack.c.h.b16 %v1834
        %v1903 = vunpack.c.l.b16 %v1835
        %v1904 = vunpack.c.l.b16 %v1836
        %v1905 = vunpack.c.h.b16 %v1835
        %v1906 = vunpack.c.h.b16 %v1836
        %v1907 = vunpack.c.l.b16 %v1837
        %v1908 = vunpack.c.l.b16 %v1838
        %v1909 = vunpack.c.h.b16 %v1837
        %v1910 = vunpack.c.h.b16 %v1838
        %v1911 = vunpack.c.l.b16 %v1839
        %v1912 = vunpack.c.l.b16 %v1840
        %v1913 = vunpack.c.h.b16 %v1839
        %v1914 = vunpack.c.h.b16 %v1840
        %v1915 = vunpack.c.l.b16 %v1841
        %v1916 = vunpack.c.l.b16 %v1842
        %v1917 = vunpack.c.h.b16 %v1841
        %v1918 = vunpack.c.h.b16 %v1842
        %v1919 = vunpack.c.l.b16 %v1843
        %v1920 = vunpack.c.l.b16 %v1844
        %v1921 = vunpack.c.h.b16 %v1843
        %v1922 = vunpack.c.h.b16 %v1844
        %v1923 = vunpack.c.l.b16 %v1845
        %v1924 = vunpack.c.l.b16 %v1846
        %v1925 = vunpack.c.h.b16 %v1845
        %v1926 = vunpack.c.h.b16 %v1846
        %v1927 = vunpack.c.l.b16 %v1847
        %v1928 = vunpack.c.l.b16 %v1848
        %v1929 = vunpack.c.h.b16 %v1847
        %v1930 = vunpack.c.h.b16 %v1848
        %v1931 = vunpack.c.l.b16 %v1849
        %v1932 = vunpack.c.l.b16 %v1850
        %v1933 = vunpack.c.h.b16 %v1849
        %v1934 = vunpack.c.h.b16 %v1850
        %v1935 = vpack.c.b16 %v1880, %v1879
        %v1936 = vpack.c.b16 %v1882, %v1881
        %v1937 = vpack.c.b16 %v1884, %v1883
        %v1938 = vpack.c.b16 %v1886, %v1885
        %v1939 = vpack.c.b16 %v1888, %v1887
        %v1940 = vpack.c.b16 %v1890, %v1889
        %v1941 = vpack.c.b16 %v1892, %v1891
        %v1942 = vpack.c.b16 %v1894, %v1893
        %v1943 = vpack.c.b16 %v1896, %v1895
        %v1944 = vpack.c.b16 %v1898, %v1897
        %v1945 = vpack.c.b16 %v1900, %v1899
        %v1946 = vpack.c.b16 %v1902, %v1901
        %v1947 = vpack.c.b16 %v1904, %v1903
        %v1948 = vpack.c.b16 %v1906, %v1905
        %v1949 = vpack.c.b16 %v1908, %v1907
        %v1950 = vpack.c.b16 %v1910, %v1909
        %v1951 = vpack.c.b16 %v1912, %v1911
        %v1952 = vpack.c.b16 %v1914, %v1913
        %v1953 = vpack.c.b16 %v1916, %v1915
        %v1954 = vpack.c.b16 %v1918, %v1917
        %v1955 = vpack.c.b16 %v1920, %v1919
        %v1956 = vpack.c.b16 %v1922, %v1921
        %v1957 = vpack.c.b16 %v1924, %v1923
        %v1958 = vpack.c.b16 %v1926, %v1925
        %v1959 = vpack.c.b16 %v1928, %v1927
        %v1960 = vpack.c.b16 %v1930, %v1929
        %v1961 = vpack.c.b16 %v1932, %v1931
        %v1962 = vpack.c.b16 %v1934, %v1933
        %s1991 = scalar_lea.vmem %s204, 672 [#allocation7]
        %1992 = vst.msk [vmem:[%s1991] sm:$0xff] %vm881, %v1935
        %1993 = vst.msk [vmem:[%s1991 + $0x8] sm:$0xff] %vm881, %v1936
        %1994 = vst.msk [vmem:[%s1991 + $0x10] sm:$0xff] %vm881, %v1937
        %1995 = vst.msk [vmem:[%s1991 + $0x18] sm:$0xff] %vm881, %v1938
        %1996 = vst.msk [vmem:[%s1991 + $0x20] sm:$0xff] %vm881, %v1939
        %1997 = vst.msk [vmem:[%s1991 + $0x28] sm:$0xff] %vm881, %v1940
        %1998 = vst.msk [vmem:[%s1991 + $0x30] sm:$0xff] %vm881, %v1941
        %1999 = vst.msk [vmem:[%s1991 + $0x38] sm:$0xff] %vm881, %v1942
        %2000 = vst.msk [vmem:[%s1991 + $0x40] sm:$0xff] %vm881, %v1943
        %2001 = vst.msk [vmem:[%s1991 + $0x48] sm:$0xff] %vm881, %v1944
        %2002 = vst.msk [vmem:[%s1991 + $0x50] sm:$0xff] %vm881, %v1945
        %2003 = vst.msk [vmem:[%s1991 + $0x58] sm:$0xff] %vm881, %v1946
        %2004 = vst.msk [vmem:[%s1991 + $0x60] sm:$0xff] %vm881, %v1947
        %2005 = vst.msk [vmem:[%s1991 + $0x68] sm:$0xff] %vm881, %v1948
        %2006 = vst.msk [vmem:[%s1991 + $0x70] sm:$0xff] %vm881, %v1949
        %2007 = vst.msk [vmem:[%s1991 + $0x78] sm:$0xff] %vm881, %v1950
        %2008 = vst.msk [vmem:[%s1991 + $0x80] sm:$0xff] %vm881, %v1951
        %2009 = vst.msk [vmem:[%s1991 + $0x88] sm:$0xff] %vm881, %v1952
        %2010 = vst.msk [vmem:[%s1991 + $0x90] sm:$0xff] %vm881, %v1953
        %2011 = vst.msk [vmem:[%s1991 + $0x98] sm:$0xff] %vm881, %v1954
        %2012 = vst.msk [vmem:[%s1991 + $0xa0] sm:$0xff] %vm881, %v1955
        %2013 = vst.msk [vmem:[%s1991 + $0xa8] sm:$0xff] %vm881, %v1956
        %2014 = vst.msk [vmem:[%s1991 + $0xb0] sm:$0xff] %vm881, %v1957
        %2015 = vst.msk [vmem:[%s1991 + $0xb8] sm:$0xff] %vm881, %v1958
        %2016 = vst.msk [vmem:[%s1991 + $0xc0] sm:$0xff] %vm881, %v1959
        %2017 = vst.msk [vmem:[%s1991 + $0xc8] sm:$0xff] %vm881, %v1960
        %2018 = vst.msk [vmem:[%s1991 + $0xd0] sm:$0xff] %vm881, %v1961
        %2019 = vst.msk [vmem:[%s1991 + $0xd8] sm:$0xff] %vm881, %v1962
        %2020 = vmatprep.subr.bf16.mxu0 %v391
        %2021 = vmatpush1.bf16.msra.mxu0 %v390
        %2022 = vmatprep.subr.bf16.mxu0 0
        %2023 = vmatpush1.bf16.msra.mxu0 0
        %2024 = vmatprep.subr.bf16.mxu0 0
        %2025 = vmatpush1.bf16.msra.mxu0 0
        %2026 = vmatprep.subr.bf16.mxu0 0
        %2027 = vmatpush1.bf16.msra.mxu0 0
        %2028 = vmatprep.subr.bf16.mxu0 0
        %2029 = vmatpush1.bf16.msra.mxu0 0
        %2030 = vmatprep.subr.bf16.mxu0 0
        %2031 = vmatpush1.bf16.msra.mxu0 0
        %2032 = vmatprep.subr.bf16.mxu0 0
        %2033 = vmatpush1.bf16.msra.mxu0 0
        %2034 = vmatprep.subr.bf16.mxu0 0
        %2035 = vmatpush1.bf16.msra.mxu0 0
        %2036 = vmatprep.subr.bf16.mxu0 0
        %2037 = vmatpush1.bf16.msra.mxu0 0
        %2038 = vmatprep.subr.bf16.mxu0 0
        %2039 = vmatpush1.bf16.msra.mxu0 0
        %2040 = vmatprep.subr.bf16.mxu0 0
        %2041 = vmatpush1.bf16.msra.mxu0 0
        %2042 = vmatprep.subr.bf16.mxu0 0
        %2043 = vmatpush1.bf16.msra.mxu0 0
        %2044 = vmatprep.subr.bf16.mxu0 0
        %2045 = vmatpush1.bf16.msra.mxu0 0
        %2046 = vmatprep.subr.bf16.mxu0 0
        %2047 = vmatpush1.bf16.msra.mxu0 0
        %2048 = vmatprep.subr.bf16.mxu0 0
        %2049 = vmatpush1.bf16.msra.mxu0 0
        %2050 = vmatprep.subr.bf16.mxu0 0
        %2051 = vmatpush1.bf16.msra.mxu0 0
        %2052 = vmatprep.mubr.bf16.mxu0 0
        %2053 = vmatmul.mubr.bf16.gmra.mrb[0].mxu0 %v497
        %v2054 = vpop.f32.mrb[0].mxu0
        %v2055 = vadd.f32 0.0, %v2054
        %v2056 = vpop.f32.mrb[0].mxu0
        %v2057 = vadd.f32 0.0, %v2056
        %v2058 = vpop.f32.mrb[0].mxu0
        %v2059 = vadd.f32 0.0, %v2058
        %v2060 = vpop.f32.mrb[0].mxu0
        %v2061 = vadd.f32 0.0, %v2060
        %2062 = vmatprep.mubr.bf16.mxu0 0
        %2063 = vmatmul.mubr.bf16.gmra.mrb[0].mxu0 %v500
        %v2064 = vpop.f32.mrb[0].mxu0
        %v2065 = vadd.f32 0.0, %v2064
        %v2066 = vpop.f32.mrb[0].mxu0
        %v2067 = vadd.f32 0.0, %v2066
        %v2068 = vpop.f32.mrb[0].mxu0
        %v2069 = vadd.f32 0.0, %v2068
        %v2070 = vpop.f32.mrb[0].mxu0
        %v2071 = vadd.f32 0.0, %v2070
        %2072 = vmatprep.mubr.bf16.mxu0 0
        %2073 = vmatmul.mubr.bf16.gmra.mrb[0].mxu0 %v503
        %v2074 = vpop.f32.mrb[0].mxu0
        %v2075 = vadd.f32 0.0, %v2074
        %v2076 = vpop.f32.mrb[0].mxu0
        %v2077 = vadd.f32 0.0, %v2076
        %v2078 = vpop.f32.mrb[0].mxu0
        %v2079 = vadd.f32 0.0, %v2078
        %v2080 = vpop.f32.mrb[0].mxu0
        %v2081 = vadd.f32 0.0, %v2080
        %2082 = vmatprep.mubr.bf16.mxu0 0
        %2083 = vmatmul.mubr.bf16.gmra.mrb[0].mxu0 %v506
        %v2084 = vpop.f32.mrb[0].mxu0
        %v2085 = vadd.f32 0.0, %v2084
        %v2086 = vpop.f32.mrb[0].mxu0
        %v2087 = vadd.f32 0.0, %v2086
        %v2088 = vpop.f32.mrb[0].mxu0
        %v2089 = vadd.f32 0.0, %v2088
        %v2090 = vpop.f32.mrb[0].mxu0
        %v2091 = vadd.f32 0.0, %v2090
        %2092 = vmatprep.mubr.bf16.mxu0 0
        %2093 = vmatmul.mubr.bf16.gmra.mrb[0].mxu0 %v509
        %v2094 = vpop.f32.mrb[0].mxu0
        %v2095 = vadd.f32 0.0, %v2094
        %v2096 = vpop.f32.mrb[0].mxu0
        %v2097 = vadd.f32 0.0, %v2096
        %v2098 = vpop.f32.mrb[0].mxu0
        %v2099 = vadd.f32 0.0, %v2098
        %v2100 = vpop.f32.mrb[0].mxu0
        %v2101 = vadd.f32 0.0, %v2100
        %2102 = vmatprep.mubr.bf16.mxu0 0
        %2103 = vmatmul.mubr.bf16.gmra.mrb[0].mxu0 %v512
        %v2104 = vpop.f32.mrb[0].mxu0
        %v2105 = vadd.f32 0.0, %v2104
        %v2106 = vpop.f32.mrb[0].mxu0
        %v2107 = vadd.f32 0.0, %v2106
        %v2108 = vpop.f32.mrb[0].mxu0
        %v2109 = vadd.f32 0.0, %v2108
        %v2110 = vpop.f32.mrb[0].mxu0
        %v2111 = vadd.f32 0.0, %v2110
        %2112 = vmatprep.mubr.bf16.mxu0 0
        %2113 = vmatmul.mubr.bf16.gmra.mrb[0].mxu0 %v515
        %v2114 = vpop.f32.mrb[0].mxu0
        %v2115 = vadd.f32 0.0, %v2114
        %v2116 = vpop.f32.mrb[0].mxu0
        %v2117 = vadd.f32 0.0, %v2116
        %v2118 = vpop.f32.mrb[0].mxu0
        %v2119 = vadd.f32 0.0, %v2118
        %v2120 = vpop.f32.mrb[0].mxu0
        %v2121 = vadd.f32 0.0, %v2120
        %2122 = vmatprep.mubr.bf16.mxu0 0
        %2123 = vmatmul.mubr.bf16.gmra.mrb[0].mxu0 %v518
        %v2124 = vpop.f32.mrb[0].mxu0
        %v2125 = vadd.f32 0.0, %v2124
        %v2126 = vpop.f32.mrb[0].mxu0
        %v2127 = vadd.f32 0.0, %v2126
        %v2128 = vpop.f32.mrb[0].mxu0
        %v2129 = vadd.f32 0.0, %v2128
        %v2130 = vpop.f32.mrb[0].mxu0
        %v2131 = vadd.f32 0.0, %v2130
        %2132 = vmatprep.mubr.bf16.mxu0 0
        %2133 = vmatmul.mubr.bf16.gmra.mrb[0].mxu0 %v521
        %v2134 = vpop.f32.mrb[0].mxu0
        %v2135 = vadd.f32 0.0, %v2134
        %v2136 = vpop.f32.mrb[0].mxu0
        %v2137 = vadd.f32 0.0, %v2136
        %v2138 = vpop.f32.mrb[0].mxu0
        %v2139 = vadd.f32 0.0, %v2138
        %v2140 = vpop.f32.mrb[0].mxu0
        %v2141 = vadd.f32 0.0, %v2140
        %2142 = vmatprep.mubr.bf16.mxu0 0
        %2143 = vmatmul.mubr.bf16.gmra.mrb[0].mxu0 %v524
        %v2144 = vpop.f32.mrb[0].mxu0
        %v2145 = vadd.f32 0.0, %v2144
        %v2146 = vpop.f32.mrb[0].mxu0
        %v2147 = vadd.f32 0.0, %v2146
        %v2148 = vpop.f32.mrb[0].mxu0
        %v2149 = vadd.f32 0.0, %v2148
        %v2150 = vpop.f32.mrb[0].mxu0
        %v2151 = vadd.f32 0.0, %v2150
        %2152 = vmatprep.mubr.bf16.mxu0 0
        %2153 = vmatmul.mubr.bf16.gmra.mrb[0].mxu0 %v527
        %v2154 = vpop.f32.mrb[0].mxu0
        %v2155 = vadd.f32 0.0, %v2154
        %v2156 = vpop.f32.mrb[0].mxu0
        %v2157 = vadd.f32 0.0, %v2156
        %v2158 = vpop.f32.mrb[0].mxu0
        %v2159 = vadd.f32 0.0, %v2158
        %v2160 = vpop.f32.mrb[0].mxu0
        %v2161 = vadd.f32 0.0, %v2160
        %2162 = vmatprep.mubr.bf16.mxu0 0
        %2163 = vmatmul.mubr.bf16.gmra.mrb[0].mxu0 %v530
        %v2164 = vpop.f32.mrb[0].mxu0
        %v2165 = vadd.f32 0.0, %v2164
        %v2166 = vpop.f32.mrb[0].mxu0
        %v2167 = vadd.f32 0.0, %v2166
        %v2168 = vpop.f32.mrb[0].mxu0
        %v2169 = vadd.f32 0.0, %v2168
        %v2170 = vpop.f32.mrb[0].mxu0
        %v2171 = vadd.f32 0.0, %v2170
        %2172 = vmatprep.mubr.bf16.mxu0 0
        %2173 = vmatmul.mubr.bf16.gmra.mrb[0].mxu0 %v533
        %v2174 = vpop.f32.mrb[0].mxu0
        %v2175 = vadd.f32 0.0, %v2174
        %v2176 = vpop.f32.mrb[0].mxu0
        %v2177 = vadd.f32 0.0, %v2176
        %v2178 = vpop.f32.mrb[0].mxu0
        %v2179 = vadd.f32 0.0, %v2178
        %v2180 = vpop.f32.mrb[0].mxu0
        %v2181 = vadd.f32 0.0, %v2180
        %2182 = vmatprep.mubr.bf16.mxu0 0
        %2183 = vmatmul.mubr.bf16.gmra.mrb[0].mxu0 %v536
        %v2184 = vpop.f32.mrb[0].mxu0
        %v2185 = vadd.f32 0.0, %v2184
        %v2186 = vpop.f32.mrb[0].mxu0
        %v2187 = vadd.f32 0.0, %v2186
        %v2188 = vpop.f32.mrb[0].mxu0
        %v2189 = vadd.f32 0.0, %v2188
        %v2190 = vpop.f32.mrb[0].mxu0
        %v2191 = vadd.f32 0.0, %v2190
        %2192 = vdwg.mxu0
        %v2193 = vpack.c.bf16 %v2059, %v2055
        %v2194 = vpack.c.bf16 %v2061, %v2057
        %v2195 = vpack.c.bf16 %v2069, %v2065
        %v2196 = vpack.c.bf16 %v2071, %v2067
        %v2197 = vpack.c.bf16 %v2079, %v2075
        %v2198 = vpack.c.bf16 %v2081, %v2077
        %v2199 = vpack.c.bf16 %v2089, %v2085
        %v2200 = vpack.c.bf16 %v2091, %v2087
        %v2201 = vpack.c.bf16 %v2099, %v2095
        %v2202 = vpack.c.bf16 %v2101, %v2097
        %v2203 = vpack.c.bf16 %v2109, %v2105
        %v2204 = vpack.c.bf16 %v2111, %v2107
        %v2205 = vpack.c.bf16 %v2119, %v2115
        %v2206 = vpack.c.bf16 %v2121, %v2117
        %v2207 = vpack.c.bf16 %v2129, %v2125
        %v2208 = vpack.c.bf16 %v2131, %v2127
        %v2209 = vpack.c.bf16 %v2139, %v2135
        %v2210 = vpack.c.bf16 %v2141, %v2137
        %v2211 = vpack.c.bf16 %v2149, %v2145
        %v2212 = vpack.c.bf16 %v2151, %v2147
        %v2213 = vpack.c.bf16 %v2159, %v2155
        %v2214 = vpack.c.bf16 %v2161, %v2157
        %v2215 = vpack.c.bf16 %v2169, %v2165
        %v2216 = vpack.c.bf16 %v2171, %v2167
        %v2217 = vpack.c.bf16 %v2179, %v2175
        %v2218 = vpack.c.bf16 %v2181, %v2177
        %v2219 = vpack.c.bf16 %v2189, %v2185
        %v2220 = vpack.c.bf16 %v2191, %v2187
        %v2249 = vunpack.c.l.b16 %v2193
        %v2250 = vunpack.c.l.b16 %v2194
        %v2251 = vunpack.c.h.b16 %v2193
        %v2252 = vunpack.c.h.b16 %v2194
        %v2253 = vunpack.c.l.b16 %v2195
        %v2254 = vunpack.c.l.b16 %v2196
        %v2255 = vunpack.c.h.b16 %v2195
        %v2256 = vunpack.c.h.b16 %v2196
        %v2257 = vunpack.c.l.b16 %v2197
        %v2258 = vunpack.c.l.b16 %v2198
        %v2259 = vunpack.c.h.b16 %v2197
        %v2260 = vunpack.c.h.b16 %v2198
        %v2261 = vunpack.c.l.b16 %v2199
        %v2262 = vunpack.c.l.b16 %v2200
        %v2263 = vunpack.c.h.b16 %v2199
        %v2264 = vunpack.c.h.b16 %v2200
        %v2265 = vunpack.c.l.b16 %v2201
        %v2266 = vunpack.c.l.b16 %v2202
        %v2267 = vunpack.c.h.b16 %v2201
        %v2268 = vunpack.c.h.b16 %v2202
        %v2269 = vunpack.c.l.b16 %v2203
        %v2270 = vunpack.c.l.b16 %v2204
        %v2271 = vunpack.c.h.b16 %v2203
        %v2272 = vunpack.c.h.b16 %v2204
        %v2273 = vunpack.c.l.b16 %v2205
        %v2274 = vunpack.c.l.b16 %v2206
        %v2275 = vunpack.c.h.b16 %v2205
        %v2276 = vunpack.c.h.b16 %v2206
        %v2277 = vunpack.c.l.b16 %v2207
        %v2278 = vunpack.c.l.b16 %v2208
        %v2279 = vunpack.c.h.b16 %v2207
        %v2280 = vunpack.c.h.b16 %v2208
        %v2281 = vunpack.c.l.b16 %v2209
        %v2282 = vunpack.c.l.b16 %v2210
        %v2283 = vunpack.c.h.b16 %v2209
        %v2284 = vunpack.c.h.b16 %v2210
        %v2285 = vunpack.c.l.b16 %v2211
        %v2286 = vunpack.c.l.b16 %v2212
        %v2287 = vunpack.c.h.b16 %v2211
        %v2288 = vunpack.c.h.b16 %v2212
        %v2289 = vunpack.c.l.b16 %v2213
        %v2290 = vunpack.c.l.b16 %v2214
        %v2291 = vunpack.c.h.b16 %v2213
        %v2292 = vunpack.c.h.b16 %v2214
        %v2293 = vunpack.c.l.b16 %v2215
        %v2294 = vunpack.c.l.b16 %v2216
        %v2295 = vunpack.c.h.b16 %v2215
        %v2296 = vunpack.c.h.b16 %v2216
        %v2297 = vunpack.c.l.b16 %v2217
        %v2298 = vunpack.c.l.b16 %v2218
        %v2299 = vunpack.c.h.b16 %v2217
        %v2300 = vunpack.c.h.b16 %v2218
        %v2301 = vunpack.c.l.b16 %v2219
        %v2302 = vunpack.c.l.b16 %v2220
        %v2303 = vunpack.c.h.b16 %v2219
        %v2304 = vunpack.c.h.b16 %v2220
        %v2305 = vpack.c.b16 %v2250, %v2249
        %v2306 = vpack.c.b16 %v2252, %v2251
        %v2307 = vpack.c.b16 %v2254, %v2253
        %v2308 = vpack.c.b16 %v2256, %v2255
        %v2309 = vpack.c.b16 %v2258, %v2257
        %v2310 = vpack.c.b16 %v2260, %v2259
        %v2311 = vpack.c.b16 %v2262, %v2261
        %v2312 = vpack.c.b16 %v2264, %v2263
        %v2313 = vpack.c.b16 %v2266, %v2265
        %v2314 = vpack.c.b16 %v2268, %v2267
        %v2315 = vpack.c.b16 %v2270, %v2269
        %v2316 = vpack.c.b16 %v2272, %v2271
        %v2317 = vpack.c.b16 %v2274, %v2273
        %v2318 = vpack.c.b16 %v2276, %v2275
        %v2319 = vpack.c.b16 %v2278, %v2277
        %v2320 = vpack.c.b16 %v2280, %v2279
        %v2321 = vpack.c.b16 %v2282, %v2281
        %v2322 = vpack.c.b16 %v2284, %v2283
        %v2323 = vpack.c.b16 %v2286, %v2285
        %v2324 = vpack.c.b16 %v2288, %v2287
        %v2325 = vpack.c.b16 %v2290, %v2289
        %v2326 = vpack.c.b16 %v2292, %v2291
        %v2327 = vpack.c.b16 %v2294, %v2293
        %v2328 = vpack.c.b16 %v2296, %v2295
        %v2329 = vpack.c.b16 %v2298, %v2297
        %v2330 = vpack.c.b16 %v2300, %v2299
        %v2331 = vpack.c.b16 %v2302, %v2301
        %v2332 = vpack.c.b16 %v2304, %v2303
        %s2361 = scalar_lea.vmem %s204, 896 [#allocation7]
        %2362 = vst.msk [vmem:[%s2361] sm:$0xff] %vm881, %v2305
        %2363 = vst.msk [vmem:[%s2361 + $0x8] sm:$0xff] %vm881, %v2306
        %2364 = vst.msk [vmem:[%s2361 + $0x10] sm:$0xff] %vm881, %v2307
        %2365 = vst.msk [vmem:[%s2361 + $0x18] sm:$0xff] %vm881, %v2308
        %2366 = vst.msk [vmem:[%s2361 + $0x20] sm:$0xff] %vm881, %v2309
        %2367 = vst.msk [vmem:[%s2361 + $0x28] sm:$0xff] %vm881, %v2310
        %2368 = vst.msk [vmem:[%s2361 + $0x30] sm:$0xff] %vm881, %v2311
        %2369 = vst.msk [vmem:[%s2361 + $0x38] sm:$0xff] %vm881, %v2312
        %2370 = vst.msk [vmem:[%s2361 + $0x40] sm:$0xff] %vm881, %v2313
        %2371 = vst.msk [vmem:[%s2361 + $0x48] sm:$0xff] %vm881, %v2314
        %2372 = vst.msk [vmem:[%s2361 + $0x50] sm:$0xff] %vm881, %v2315
        %2373 = vst.msk [vmem:[%s2361 + $0x58] sm:$0xff] %vm881, %v2316
        %2374 = vst.msk [vmem:[%s2361 + $0x60] sm:$0xff] %vm881, %v2317
        %2375 = vst.msk [vmem:[%s2361 + $0x68] sm:$0xff] %vm881, %v2318
        %2376 = vst.msk [vmem:[%s2361 + $0x70] sm:$0xff] %vm881, %v2319
        %2377 = vst.msk [vmem:[%s2361 + $0x78] sm:$0xff] %vm881, %v2320
        %2378 = vst.msk [vmem:[%s2361 + $0x80] sm:$0xff] %vm881, %v2321
        %2379 = vst.msk [vmem:[%s2361 + $0x88] sm:$0xff] %vm881, %v2322
        %2380 = vst.msk [vmem:[%s2361 + $0x90] sm:$0xff] %vm881, %v2323
        %2381 = vst.msk [vmem:[%s2361 + $0x98] sm:$0xff] %vm881, %v2324
        %2382 = vst.msk [vmem:[%s2361 + $0xa0] sm:$0xff] %vm881, %v2325
        %2383 = vst.msk [vmem:[%s2361 + $0xa8] sm:$0xff] %vm881, %v2326
        %2384 = vst.msk [vmem:[%s2361 + $0xb0] sm:$0xff] %vm881, %v2327
        %2385 = vst.msk [vmem:[%s2361 + $0xb8] sm:$0xff] %vm881, %v2328
        %2386 = vst.msk [vmem:[%s2361 + $0xc0] sm:$0xff] %vm881, %v2329
        %2387 = vst.msk [vmem:[%s2361 + $0xc8] sm:$0xff] %vm881, %v2330
        %2388 = vst.msk [vmem:[%s2361 + $0xd0] sm:$0xff] %vm881, %v2331
        %2389 = vst.msk [vmem:[%s2361 + $0xd8] sm:$0xff] %vm881, %v2332
        %2390 = vmatprep.subr.bf16.mxu0 %v393
        %2391 = vmatpush1.bf16.msra.mxu0 %v392
        %2392 = vmatprep.subr.bf16.mxu0 0
        %2393 = vmatpush1.bf16.msra.mxu0 0
        %2394 = vmatprep.subr.bf16.mxu0 0
        %2395 = vmatpush1.bf16.msra.mxu0 0
        %2396 = vmatprep.subr.bf16.mxu0 0
        %2397 = vmatpush1.bf16.msra.mxu0 0
        %2398 = vmatprep.subr.bf16.mxu0 0
        %2399 = vmatpush1.bf16.msra.mxu0 0
        %2400 = vmatprep.subr.bf16.mxu0 0
        %2401 = vmatpush1.bf16.msra.mxu0 0
        %2402 = vmatprep.subr.bf16.mxu0 0
        %2403 = vmatpush1.bf16.msra.mxu0 0
        %2404 = vmatprep.subr.bf16.mxu0 0
        %2405 = vmatpush1.bf16.msra.mxu0 0
        %2406 = vmatprep.subr.bf16.mxu0 0
        %2407 = vmatpush1.bf16.msra.mxu0 0
        %2408 = vmatprep.subr.bf16.mxu0 0
        %2409 = vmatpush1.bf16.msra.mxu0 0
        %2410 = vmatprep.subr.bf16.mxu0 0
        %2411 = vmatpush1.bf16.msra.mxu0 0
        %2412 = vmatprep.subr.bf16.mxu0 0
        %2413 = vmatpush1.bf16.msra.mxu0 0
        %2414 = vmatprep.subr.bf16.mxu0 0
        %2415 = vmatpush1.bf16.msra.mxu0 0
        %2416 = vmatprep.subr.bf16.mxu0 0
        %2417 = vmatpush1.bf16.msra.mxu0 0
        %2418 = vmatprep.subr.bf16.mxu0 0
        %2419 = vmatpush1.bf16.msra.mxu0 0
        %2420 = vmatprep.subr.bf16.mxu0 0
        %2421 = vmatpush1.bf16.msra.mxu0 0
        %2422 = vmatprep.mubr.bf16.mxu0 0
        %2423 = vmatmul.mubr.bf16.gmra.mrb[0].mxu0 %v497
        %v2424 = vpop.f32.mrb[0].mxu0
        %v2425 = vadd.f32 0.0, %v2424
        %v2426 = vpop.f32.mrb[0].mxu0
        %v2427 = vadd.f32 0.0, %v2426
        %v2428 = vpop.f32.mrb[0].mxu0
        %v2429 = vadd.f32 0.0, %v2428
        %v2430 = vpop.f32.mrb[0].mxu0
        %v2431 = vadd.f32 0.0, %v2430
        %2432 = vmatprep.mubr.bf16.mxu0 0
        %2433 = vmatmul.mubr.bf16.gmra.mrb[0].mxu0 %v500
        %v2434 = vpop.f32.mrb[0].mxu0
        %v2435 = vadd.f32 0.0, %v2434
        %v2436 = vpop.f32.mrb[0].mxu0
        %v2437 = vadd.f32 0.0, %v2436
        %v2438 = vpop.f32.mrb[0].mxu0
        %v2439 = vadd.f32 0.0, %v2438
        %v2440 = vpop.f32.mrb[0].mxu0
        %v2441 = vadd.f32 0.0, %v2440
        %2442 = vmatprep.mubr.bf16.mxu0 0
        %2443 = vmatmul.mubr.bf16.gmra.mrb[0].mxu0 %v503
        %v2444 = vpop.f32.mrb[0].mxu0
        %v2445 = vadd.f32 0.0, %v2444
        %v2446 = vpop.f32.mrb[0].mxu0
        %v2447 = vadd.f32 0.0, %v2446
        %v2448 = vpop.f32.mrb[0].mxu0
        %v2449 = vadd.f32 0.0, %v2448
        %v2450 = vpop.f32.mrb[0].mxu0
        %v2451 = vadd.f32 0.0, %v2450
        %2452 = vmatprep.mubr.bf16.mxu0 0
        %2453 = vmatmul.mubr.bf16.gmra.mrb[0].mxu0 %v506
        %v2454 = vpop.f32.mrb[0].mxu0
        %v2455 = vadd.f32 0.0, %v2454
        %v2456 = vpop.f32.mrb[0].mxu0
        %v2457 = vadd.f32 0.0, %v2456
        %v2458 = vpop.f32.mrb[0].mxu0
        %v2459 = vadd.f32 0.0, %v2458
        %v2460 = vpop.f32.mrb[0].mxu0
        %v2461 = vadd.f32 0.0, %v2460
        %2462 = vmatprep.mubr.bf16.mxu0 0
        %2463 = vmatmul.mubr.bf16.gmra.mrb[0].mxu0 %v509
        %v2464 = vpop.f32.mrb[0].mxu0
        %v2465 = vadd.f32 0.0, %v2464
        %v2466 = vpop.f32.mrb[0].mxu0
        %v2467 = vadd.f32 0.0, %v2466
        %v2468 = vpop.f32.mrb[0].mxu0
        %v2469 = vadd.f32 0.0, %v2468
        %v2470 = vpop.f32.mrb[0].mxu0
        %v2471 = vadd.f32 0.0, %v2470
        %2472 = vmatprep.mubr.bf16.mxu0 0
        %2473 = vmatmul.mubr.bf16.gmra.mrb[0].mxu0 %v512
        %v2474 = vpop.f32.mrb[0].mxu0
        %v2475 = vadd.f32 0.0, %v2474
        %v2476 = vpop.f32.mrb[0].mxu0
        %v2477 = vadd.f32 0.0, %v2476
        %v2478 = vpop.f32.mrb[0].mxu0
        %v2479 = vadd.f32 0.0, %v2478
        %v2480 = vpop.f32.mrb[0].mxu0
        %v2481 = vadd.f32 0.0, %v2480
        %2482 = vmatprep.mubr.bf16.mxu0 0
        %2483 = vmatmul.mubr.bf16.gmra.mrb[0].mxu0 %v515
        %v2484 = vpop.f32.mrb[0].mxu0
        %v2485 = vadd.f32 0.0, %v2484
        %v2486 = vpop.f32.mrb[0].mxu0
        %v2487 = vadd.f32 0.0, %v2486
        %v2488 = vpop.f32.mrb[0].mxu0
        %v2489 = vadd.f32 0.0, %v2488
        %v2490 = vpop.f32.mrb[0].mxu0
        %v2491 = vadd.f32 0.0, %v2490
        %2492 = vmatprep.mubr.bf16.mxu0 0
        %2493 = vmatmul.mubr.bf16.gmra.mrb[0].mxu0 %v518
        %v2494 = vpop.f32.mrb[0].mxu0
        %v2495 = vadd.f32 0.0, %v2494
        %v2496 = vpop.f32.mrb[0].mxu0
        %v2497 = vadd.f32 0.0, %v2496
        %v2498 = vpop.f32.mrb[0].mxu0
        %v2499 = vadd.f32 0.0, %v2498
        %v2500 = vpop.f32.mrb[0].mxu0
        %v2501 = vadd.f32 0.0, %v2500
        %2502 = vmatprep.mubr.bf16.mxu0 0
        %2503 = vmatmul.mubr.bf16.gmra.mrb[0].mxu0 %v521
        %v2504 = vpop.f32.mrb[0].mxu0
        %v2505 = vadd.f32 0.0, %v2504
        %v2506 = vpop.f32.mrb[0].mxu0
        %v2507 = vadd.f32 0.0, %v2506
        %v2508 = vpop.f32.mrb[0].mxu0
        %v2509 = vadd.f32 0.0, %v2508
        %v2510 = vpop.f32.mrb[0].mxu0
        %v2511 = vadd.f32 0.0, %v2510
        %2512 = vmatprep.mubr.bf16.mxu0 0
        %2513 = vmatmul.mubr.bf16.gmra.mrb[0].mxu0 %v524
        %v2514 = vpop.f32.mrb[0].mxu0
        %v2515 = vadd.f32 0.0, %v2514
        %v2516 = vpop.f32.mrb[0].mxu0
        %v2517 = vadd.f32 0.0, %v2516
        %v2518 = vpop.f32.mrb[0].mxu0
        %v2519 = vadd.f32 0.0, %v2518
        %v2520 = vpop.f32.mrb[0].mxu0
        %v2521 = vadd.f32 0.0, %v2520
        %2522 = vmatprep.mubr.bf16.mxu0 0
        %2523 = vmatmul.mubr.bf16.gmra.mrb[0].mxu0 %v527
        %v2524 = vpop.f32.mrb[0].mxu0
        %v2525 = vadd.f32 0.0, %v2524
        %v2526 = vpop.f32.mrb[0].mxu0
        %v2527 = vadd.f32 0.0, %v2526
        %v2528 = vpop.f32.mrb[0].mxu0
        %v2529 = vadd.f32 0.0, %v2528
        %v2530 = vpop.f32.mrb[0].mxu0
        %v2531 = vadd.f32 0.0, %v2530
        %2532 = vmatprep.mubr.bf16.mxu0 0
        %2533 = vmatmul.mubr.bf16.gmra.mrb[0].mxu0 %v530
        %v2534 = vpop.f32.mrb[0].mxu0
        %v2535 = vadd.f32 0.0, %v2534
        %v2536 = vpop.f32.mrb[0].mxu0
        %v2537 = vadd.f32 0.0, %v2536
        %v2538 = vpop.f32.mrb[0].mxu0
        %v2539 = vadd.f32 0.0, %v2538
        %v2540 = vpop.f32.mrb[0].mxu0
        %v2541 = vadd.f32 0.0, %v2540
        %2542 = vmatprep.mubr.bf16.mxu0 0
        %2543 = vmatmul.mubr.bf16.gmra.mrb[0].mxu0 %v533
        %v2544 = vpop.f32.mrb[0].mxu0
        %v2545 = vadd.f32 0.0, %v2544
        %v2546 = vpop.f32.mrb[0].mxu0
        %v2547 = vadd.f32 0.0, %v2546
        %v2548 = vpop.f32.mrb[0].mxu0
        %v2549 = vadd.f32 0.0, %v2548
        %v2550 = vpop.f32.mrb[0].mxu0
        %v2551 = vadd.f32 0.0, %v2550
        %2552 = vmatprep.mubr.bf16.mxu0 0
        %2553 = vmatmul.mubr.bf16.gmra.mrb[0].mxu0 %v536
        %v2554 = vpop.f32.mrb[0].mxu0
        %v2555 = vadd.f32 0.0, %v2554
        %v2556 = vpop.f32.mrb[0].mxu0
        %v2557 = vadd.f32 0.0, %v2556
        %v2558 = vpop.f32.mrb[0].mxu0
        %v2559 = vadd.f32 0.0, %v2558
        %v2560 = vpop.f32.mrb[0].mxu0
        %v2561 = vadd.f32 0.0, %v2560
        %2562 = vdwg.mxu0
        %v2563 = vpack.c.bf16 %v2429, %v2425
        %v2564 = vpack.c.bf16 %v2431, %v2427
        %v2565 = vpack.c.bf16 %v2439, %v2435
        %v2566 = vpack.c.bf16 %v2441, %v2437
        %v2567 = vpack.c.bf16 %v2449, %v2445
        %v2568 = vpack.c.bf16 %v2451, %v2447
        %v2569 = vpack.c.bf16 %v2459, %v2455
        %v2570 = vpack.c.bf16 %v2461, %v2457
        %v2571 = vpack.c.bf16 %v2469, %v2465
        %v2572 = vpack.c.bf16 %v2471, %v2467
        %v2573 = vpack.c.bf16 %v2479, %v2475
        %v2574 = vpack.c.bf16 %v2481, %v2477
        %v2575 = vpack.c.bf16 %v2489, %v2485
        %v2576 = vpack.c.bf16 %v2491, %v2487
        %v2577 = vpack.c.bf16 %v2499, %v2495
        %v2578 = vpack.c.bf16 %v2501, %v2497
        %v2579 = vpack.c.bf16 %v2509, %v2505
        %v2580 = vpack.c.bf16 %v2511, %v2507
        %v2581 = vpack.c.bf16 %v2519, %v2515
        %v2582 = vpack.c.bf16 %v2521, %v2517
        %v2583 = vpack.c.bf16 %v2529, %v2525
        %v2584 = vpack.c.bf16 %v2531, %v2527
        %v2585 = vpack.c.bf16 %v2539, %v2535
        %v2586 = vpack.c.bf16 %v2541, %v2537
        %v2587 = vpack.c.bf16 %v2549, %v2545
        %v2588 = vpack.c.bf16 %v2551, %v2547
        %v2589 = vpack.c.bf16 %v2559, %v2555
        %v2590 = vpack.c.bf16 %v2561, %v2557
        %v2619 = vunpack.c.l.b16 %v2563
        %v2620 = vunpack.c.l.b16 %v2564
        %v2621 = vunpack.c.h.b16 %v2563
        %v2622 = vunpack.c.h.b16 %v2564
        %v2623 = vunpack.c.l.b16 %v2565
        %v2624 = vunpack.c.l.b16 %v2566
        %v2625 = vunpack.c.h.b16 %v2565
        %v2626 = vunpack.c.h.b16 %v2566
        %v2627 = vunpack.c.l.b16 %v2567
        %v2628 = vunpack.c.l.b16 %v2568
        %v2629 = vunpack.c.h.b16 %v2567
        %v2630 = vunpack.c.h.b16 %v2568
        %v2631 = vunpack.c.l.b16 %v2569
        %v2632 = vunpack.c.l.b16 %v2570
        %v2633 = vunpack.c.h.b16 %v2569
        %v2634 = vunpack.c.h.b16 %v2570
        %v2635 = vunpack.c.l.b16 %v2571
        %v2636 = vunpack.c.l.b16 %v2572
        %v2637 = vunpack.c.h.b16 %v2571
        %v2638 = vunpack.c.h.b16 %v2572
        %v2639 = vunpack.c.l.b16 %v2573
        %v2640 = vunpack.c.l.b16 %v2574
        %v2641 = vunpack.c.h.b16 %v2573
        %v2642 = vunpack.c.h.b16 %v2574
        %v2643 = vunpack.c.l.b16 %v2575
        %v2644 = vunpack.c.l.b16 %v2576
        %v2645 = vunpack.c.h.b16 %v2575
        %v2646 = vunpack.c.h.b16 %v2576
        %v2647 = vunpack.c.l.b16 %v2577
        %v2648 = vunpack.c.l.b16 %v2578
        %v2649 = vunpack.c.h.b16 %v2577
        %v2650 = vunpack.c.h.b16 %v2578
        %v2651 = vunpack.c.l.b16 %v2579
        %v2652 = vunpack.c.l.b16 %v2580
        %v2653 = vunpack.c.h.b16 %v2579
        %v2654 = vunpack.c.h.b16 %v2580
        %v2655 = vunpack.c.l.b16 %v2581
        %v2656 = vunpack.c.l.b16 %v2582
        %v2657 = vunpack.c.h.b16 %v2581
        %v2658 = vunpack.c.h.b16 %v2582
        %v2659 = vunpack.c.l.b16 %v2583
        %v2660 = vunpack.c.l.b16 %v2584
        %v2661 = vunpack.c.h.b16 %v2583
        %v2662 = vunpack.c.h.b16 %v2584
        %v2663 = vunpack.c.l.b16 %v2585
        %v2664 = vunpack.c.l.b16 %v2586
        %v2665 = vunpack.c.h.b16 %v2585
        %v2666 = vunpack.c.h.b16 %v2586
        %v2667 = vunpack.c.l.b16 %v2587
        %v2668 = vunpack.c.l.b16 %v2588
        %v2669 = vunpack.c.h.b16 %v2587
        %v2670 = vunpack.c.h.b16 %v2588
        %v2671 = vunpack.c.l.b16 %v2589
        %v2672 = vunpack.c.l.b16 %v2590
        %v2673 = vunpack.c.h.b16 %v2589
        %v2674 = vunpack.c.h.b16 %v2590
        %v2675 = vpack.c.b16 %v2620, %v2619
        %v2676 = vpack.c.b16 %v2622, %v2621
        %v2677 = vpack.c.b16 %v2624, %v2623
        %v2678 = vpack.c.b16 %v2626, %v2625
        %v2679 = vpack.c.b16 %v2628, %v2627
        %v2680 = vpack.c.b16 %v2630, %v2629
        %v2681 = vpack.c.b16 %v2632, %v2631
        %v2682 = vpack.c.b16 %v2634, %v2633
        %v2683 = vpack.c.b16 %v2636, %v2635
        %v2684 = vpack.c.b16 %v2638, %v2637
        %v2685 = vpack.c.b16 %v2640, %v2639
        %v2686 = vpack.c.b16 %v2642, %v2641
        %v2687 = vpack.c.b16 %v2644, %v2643
        %v2688 = vpack.c.b16 %v2646, %v2645
        %v2689 = vpack.c.b16 %v2648, %v2647
        %v2690 = vpack.c.b16 %v2650, %v2649
        %v2691 = vpack.c.b16 %v2652, %v2651
        %v2692 = vpack.c.b16 %v2654, %v2653
        %v2693 = vpack.c.b16 %v2656, %v2655
        %v2694 = vpack.c.b16 %v2658, %v2657
        %v2695 = vpack.c.b16 %v2660, %v2659
        %v2696 = vpack.c.b16 %v2662, %v2661
        %v2697 = vpack.c.b16 %v2664, %v2663
        %v2698 = vpack.c.b16 %v2666, %v2665
        %v2699 = vpack.c.b16 %v2668, %v2667
        %v2700 = vpack.c.b16 %v2670, %v2669
        %v2701 = vpack.c.b16 %v2672, %v2671
        %v2702 = vpack.c.b16 %v2674, %v2673
        %s2731 = scalar_lea.vmem %s204, 1120 [#allocation7]
        %2732 = vst.msk [vmem:[%s2731] sm:$0xff] %vm881, %v2675
        %2733 = vst.msk [vmem:[%s2731 + $0x8] sm:$0xff] %vm881, %v2676
        %2734 = vst.msk [vmem:[%s2731 + $0x10] sm:$0xff] %vm881, %v2677
        %2735 = vst.msk [vmem:[%s2731 + $0x18] sm:$0xff] %vm881, %v2678
        %2736 = vst.msk [vmem:[%s2731 + $0x20] sm:$0xff] %vm881, %v2679
        %2737 = vst.msk [vmem:[%s2731 + $0x28] sm:$0xff] %vm881, %v2680
        %2738 = vst.msk [vmem:[%s2731 + $0x30] sm:$0xff] %vm881, %v2681
        %2739 = vst.msk [vmem:[%s2731 + $0x38] sm:$0xff] %vm881, %v2682
        %2740 = vst.msk [vmem:[%s2731 + $0x40] sm:$0xff] %vm881, %v2683
        %2741 = vst.msk [vmem:[%s2731 + $0x48] sm:$0xff] %vm881, %v2684
        %2742 = vst.msk [vmem:[%s2731 + $0x50] sm:$0xff] %vm881, %v2685
        %2743 = vst.msk [vmem:[%s2731 + $0x58] sm:$0xff] %vm881, %v2686
        %2744 = vst.msk [vmem:[%s2731 + $0x60] sm:$0xff] %vm881, %v2687
        %2745 = vst.msk [vmem:[%s2731 + $0x68] sm:$0xff] %vm881, %v2688
        %2746 = vst.msk [vmem:[%s2731 + $0x70] sm:$0xff] %vm881, %v2689
        %2747 = vst.msk [vmem:[%s2731 + $0x78] sm:$0xff] %vm881, %v2690
        %2748 = vst.msk [vmem:[%s2731 + $0x80] sm:$0xff] %vm881, %v2691
        %2749 = vst.msk [vmem:[%s2731 + $0x88] sm:$0xff] %vm881, %v2692
        %2750 = vst.msk [vmem:[%s2731 + $0x90] sm:$0xff] %vm881, %v2693
        %2751 = vst.msk [vmem:[%s2731 + $0x98] sm:$0xff] %vm881, %v2694
        %2752 = vst.msk [vmem:[%s2731 + $0xa0] sm:$0xff] %vm881, %v2695
        %2753 = vst.msk [vmem:[%s2731 + $0xa8] sm:$0xff] %vm881, %v2696
        %2754 = vst.msk [vmem:[%s2731 + $0xb0] sm:$0xff] %vm881, %v2697
        %2755 = vst.msk [vmem:[%s2731 + $0xb8] sm:$0xff] %vm881, %v2698
        %2756 = vst.msk [vmem:[%s2731 + $0xc0] sm:$0xff] %vm881, %v2699
        %2757 = vst.msk [vmem:[%s2731 + $0xc8] sm:$0xff] %vm881, %v2700
        %2758 = vst.msk [vmem:[%s2731 + $0xd0] sm:$0xff] %vm881, %v2701
        %2759 = vst.msk [vmem:[%s2731 + $0xd8] sm:$0xff] %vm881, %v2702
        %2760 = vmatprep.subr.bf16.mxu0 %v395
        %2761 = vmatpush1.bf16.msra.mxu0 %v394
        %2762 = vmatprep.subr.bf16.mxu0 0
        %2763 = vmatpush1.bf16.msra.mxu0 0
        %2764 = vmatprep.subr.bf16.mxu0 0
        %2765 = vmatpush1.bf16.msra.mxu0 0
        %2766 = vmatprep.subr.bf16.mxu0 0
        %2767 = vmatpush1.bf16.msra.mxu0 0
        %2768 = vmatprep.subr.bf16.mxu0 0
        %2769 = vmatpush1.bf16.msra.mxu0 0
        %2770 = vmatprep.subr.bf16.mxu0 0
        %2771 = vmatpush1.bf16.msra.mxu0 0
        %2772 = vmatprep.subr.bf16.mxu0 0
        %2773 = vmatpush1.bf16.msra.mxu0 0
        %2774 = vmatprep.subr.bf16.mxu0 0
        %2775 = vmatpush1.bf16.msra.mxu0 0
        %2776 = vmatprep.subr.bf16.mxu0 0
        %2777 = vmatpush1.bf16.msra.mxu0 0
        %2778 = vmatprep.subr.bf16.mxu0 0
        %2779 = vmatpush1.bf16.msra.mxu0 0
        %2780 = vmatprep.subr.bf16.mxu0 0
        %2781 = vmatpush1.bf16.msra.mxu0 0
        %2782 = vmatprep.subr.bf16.mxu0 0
        %2783 = vmatpush1.bf16.msra.mxu0 0
        %2784 = vmatprep.subr.bf16.mxu0 0
        %2785 = vmatpush1.bf16.msra.mxu0 0
        %2786 = vmatprep.subr.bf16.mxu0 0
        %2787 = vmatpush1.bf16.msra.mxu0 0
        %2788 = vmatprep.subr.bf16.mxu0 0
        %2789 = vmatpush1.bf16.msra.mxu0 0
        %2790 = vmatprep.subr.bf16.mxu0 0
        %2791 = vmatpush1.bf16.msra.mxu0 0
        %2792 = vmatprep.mubr.bf16.mxu0 0
        %2793 = vmatmul.mubr.bf16.gmra.mrb[0].mxu0 %v497
        %v2794 = vpop.f32.mrb[0].mxu0
        %v2795 = vadd.f32 0.0, %v2794
        %v2796 = vpop.f32.mrb[0].mxu0
        %v2797 = vadd.f32 0.0, %v2796
        %v2798 = vpop.f32.mrb[0].mxu0
        %v2799 = vadd.f32 0.0, %v2798
        %v2800 = vpop.f32.mrb[0].mxu0
        %v2801 = vadd.f32 0.0, %v2800
        %2802 = vmatprep.mubr.bf16.mxu0 0
        %2803 = vmatmul.mubr.bf16.gmra.mrb[0].mxu0 %v500
        %v2804 = vpop.f32.mrb[0].mxu0
        %v2805 = vadd.f32 0.0, %v2804
        %v2806 = vpop.f32.mrb[0].mxu0
        %v2807 = vadd.f32 0.0, %v2806
        %v2808 = vpop.f32.mrb[0].mxu0
        %v2809 = vadd.f32 0.0, %v2808
        %v2810 = vpop.f32.mrb[0].mxu0
        %v2811 = vadd.f32 0.0, %v2810
        %2812 = vmatprep.mubr.bf16.mxu0 0
        %2813 = vmatmul.mubr.bf16.gmra.mrb[0].mxu0 %v503
        %v2814 = vpop.f32.mrb[0].mxu0
        %v2815 = vadd.f32 0.0, %v2814
        %v2816 = vpop.f32.mrb[0].mxu0
        %v2817 = vadd.f32 0.0, %v2816
        %v2818 = vpop.f32.mrb[0].mxu0
        %v2819 = vadd.f32 0.0, %v2818
        %v2820 = vpop.f32.mrb[0].mxu0
        %v2821 = vadd.f32 0.0, %v2820
        %2822 = vmatprep.mubr.bf16.mxu0 0
        %2823 = vmatmul.mubr.bf16.gmra.mrb[0].mxu0 %v506
        %v2824 = vpop.f32.mrb[0].mxu0
        %v2825 = vadd.f32 0.0, %v2824
        %v2826 = vpop.f32.mrb[0].mxu0
        %v2827 = vadd.f32 0.0, %v2826
        %v2828 = vpop.f32.mrb[0].mxu0
        %v2829 = vadd.f32 0.0, %v2828
        %v2830 = vpop.f32.mrb[0].mxu0
        %v2831 = vadd.f32 0.0, %v2830
        %2832 = vmatprep.mubr.bf16.mxu0 0
        %2833 = vmatmul.mubr.bf16.gmra.mrb[0].mxu0 %v509
        %v2834 = vpop.f32.mrb[0].mxu0
        %v2835 = vadd.f32 0.0, %v2834
        %v2836 = vpop.f32.mrb[0].mxu0
        %v2837 = vadd.f32 0.0, %v2836
        %v2838 = vpop.f32.mrb[0].mxu0
        %v2839 = vadd.f32 0.0, %v2838
        %v2840 = vpop.f32.mrb[0].mxu0
        %v2841 = vadd.f32 0.0, %v2840
        %2842 = vmatprep.mubr.bf16.mxu0 0
        %2843 = vmatmul.mubr.bf16.gmra.mrb[0].mxu0 %v512
        %v2844 = vpop.f32.mrb[0].mxu0
        %v2845 = vadd.f32 0.0, %v2844
        %v2846 = vpop.f32.mrb[0].mxu0
        %v2847 = vadd.f32 0.0, %v2846
        %v2848 = vpop.f32.mrb[0].mxu0
        %v2849 = vadd.f32 0.0, %v2848
        %v2850 = vpop.f32.mrb[0].mxu0
        %v2851 = vadd.f32 0.0, %v2850
        %2852 = vmatprep.mubr.bf16.mxu0 0
        %2853 = vmatmul.mubr.bf16.gmra.mrb[0].mxu0 %v515
        %v2854 = vpop.f32.mrb[0].mxu0
        %v2855 = vadd.f32 0.0, %v2854
        %v2856 = vpop.f32.mrb[0].mxu0
        %v2857 = vadd.f32 0.0, %v2856
        %v2858 = vpop.f32.mrb[0].mxu0
        %v2859 = vadd.f32 0.0, %v2858
        %v2860 = vpop.f32.mrb[0].mxu0
        %v2861 = vadd.f32 0.0, %v2860
        %2862 = vmatprep.mubr.bf16.mxu0 0
        %2863 = vmatmul.mubr.bf16.gmra.mrb[0].mxu0 %v518
        %v2864 = vpop.f32.mrb[0].mxu0
        %v2865 = vadd.f32 0.0, %v2864
        %v2866 = vpop.f32.mrb[0].mxu0
        %v2867 = vadd.f32 0.0, %v2866
        %v2868 = vpop.f32.mrb[0].mxu0
        %v2869 = vadd.f32 0.0, %v2868
        %v2870 = vpop.f32.mrb[0].mxu0
        %v2871 = vadd.f32 0.0, %v2870
        %2872 = vmatprep.mubr.bf16.mxu0 0
        %2873 = vmatmul.mubr.bf16.gmra.mrb[0].mxu0 %v521
        %v2874 = vpop.f32.mrb[0].mxu0
        %v2875 = vadd.f32 0.0, %v2874
        %v2876 = vpop.f32.mrb[0].mxu0
        %v2877 = vadd.f32 0.0, %v2876
        %v2878 = vpop.f32.mrb[0].mxu0
        %v2879 = vadd.f32 0.0, %v2878
        %v2880 = vpop.f32.mrb[0].mxu0
        %v2881 = vadd.f32 0.0, %v2880
        %2882 = vmatprep.mubr.bf16.mxu0 0
        %2883 = vmatmul.mubr.bf16.gmra.mrb[0].mxu0 %v524
        %v2884 = vpop.f32.mrb[0].mxu0
        %v2885 = vadd.f32 0.0, %v2884
        %v2886 = vpop.f32.mrb[0].mxu0
        %v2887 = vadd.f32 0.0, %v2886
        %v2888 = vpop.f32.mrb[0].mxu0
        %v2889 = vadd.f32 0.0, %v2888
        %v2890 = vpop.f32.mrb[0].mxu0
        %v2891 = vadd.f32 0.0, %v2890
        %2892 = vmatprep.mubr.bf16.mxu0 0
        %2893 = vmatmul.mubr.bf16.gmra.mrb[0].mxu0 %v527
        %v2894 = vpop.f32.mrb[0].mxu0
        %v2895 = vadd.f32 0.0, %v2894
        %v2896 = vpop.f32.mrb[0].mxu0
        %v2897 = vadd.f32 0.0, %v2896
        %v2898 = vpop.f32.mrb[0].mxu0
        %v2899 = vadd.f32 0.0, %v2898
        %v2900 = vpop.f32.mrb[0].mxu0
        %v2901 = vadd.f32 0.0, %v2900
        %2902 = vmatprep.mubr.bf16.mxu0 0
        %2903 = vmatmul.mubr.bf16.gmra.mrb[0].mxu0 %v530
        %v2904 = vpop.f32.mrb[0].mxu0
        %v2905 = vadd.f32 0.0, %v2904
        %v2906 = vpop.f32.mrb[0].mxu0
        %v2907 = vadd.f32 0.0, %v2906
        %v2908 = vpop.f32.mrb[0].mxu0
        %v2909 = vadd.f32 0.0, %v2908
        %v2910 = vpop.f32.mrb[0].mxu0
        %v2911 = vadd.f32 0.0, %v2910
        %2912 = vmatprep.mubr.bf16.mxu0 0
        %2913 = vmatmul.mubr.bf16.gmra.mrb[0].mxu0 %v533
        %v2914 = vpop.f32.mrb[0].mxu0
        %v2915 = vadd.f32 0.0, %v2914
        %v2916 = vpop.f32.mrb[0].mxu0
        %v2917 = vadd.f32 0.0, %v2916
        %v2918 = vpop.f32.mrb[0].mxu0
        %v2919 = vadd.f32 0.0, %v2918
        %v2920 = vpop.f32.mrb[0].mxu0
        %v2921 = vadd.f32 0.0, %v2920
        %2922 = vmatprep.mubr.bf16.mxu0 0
        %2923 = vmatmul.mubr.bf16.gmra.mrb[0].mxu0 %v536
        %v2924 = vpop.f32.mrb[0].mxu0
        %v2925 = vadd.f32 0.0, %v2924
        %v2926 = vpop.f32.mrb[0].mxu0
        %v2927 = vadd.f32 0.0, %v2926
        %v2928 = vpop.f32.mrb[0].mxu0
        %v2929 = vadd.f32 0.0, %v2928
        %v2930 = vpop.f32.mrb[0].mxu0
        %v2931 = vadd.f32 0.0, %v2930
        %2932 = vdwg.mxu0
        %v2933 = vpack.c.bf16 %v2799, %v2795
        %v2934 = vpack.c.bf16 %v2801, %v2797
        %v2935 = vpack.c.bf16 %v2809, %v2805
        %v2936 = vpack.c.bf16 %v2811, %v2807
        %v2937 = vpack.c.bf16 %v2819, %v2815
        %v2938 = vpack.c.bf16 %v2821, %v2817
        %v2939 = vpack.c.bf16 %v2829, %v2825
        %v2940 = vpack.c.bf16 %v2831, %v2827
        %v2941 = vpack.c.bf16 %v2839, %v2835
        %v2942 = vpack.c.bf16 %v2841, %v2837
        %v2943 = vpack.c.bf16 %v2849, %v2845
        %v2944 = vpack.c.bf16 %v2851, %v2847
        %v2945 = vpack.c.bf16 %v2859, %v2855
        %v2946 = vpack.c.bf16 %v2861, %v2857
        %v2947 = vpack.c.bf16 %v2869, %v2865
        %v2948 = vpack.c.bf16 %v2871, %v2867
        %v2949 = vpack.c.bf16 %v2879, %v2875
        %v2950 = vpack.c.bf16 %v2881, %v2877
        %v2951 = vpack.c.bf16 %v2889, %v2885
        %v2952 = vpack.c.bf16 %v2891, %v2887
        %v2953 = vpack.c.bf16 %v2899, %v2895
        %v2954 = vpack.c.bf16 %v2901, %v2897
        %v2955 = vpack.c.bf16 %v2909, %v2905
        %v2956 = vpack.c.bf16 %v2911, %v2907
        %v2957 = vpack.c.bf16 %v2919, %v2915
        %v2958 = vpack.c.bf16 %v2921, %v2917
        %v2959 = vpack.c.bf16 %v2929, %v2925
        %v2960 = vpack.c.bf16 %v2931, %v2927
        %v2989 = vunpack.c.l.b16 %v2933
        %v2990 = vunpack.c.l.b16 %v2934
        %v2991 = vunpack.c.h.b16 %v2933
        %v2992 = vunpack.c.h.b16 %v2934
        %v2993 = vunpack.c.l.b16 %v2935
        %v2994 = vunpack.c.l.b16 %v2936
        %v2995 = vunpack.c.h.b16 %v2935
        %v2996 = vunpack.c.h.b16 %v2936
        %v2997 = vunpack.c.l.b16 %v2937
        %v2998 = vunpack.c.l.b16 %v2938
        %v2999 = vunpack.c.h.b16 %v2937
        %v3000 = vunpack.c.h.b16 %v2938
        %v3001 = vunpack.c.l.b16 %v2939
        %v3002 = vunpack.c.l.b16 %v2940
        %v3003 = vunpack.c.h.b16 %v2939
        %v3004 = vunpack.c.h.b16 %v2940
        %v3005 = vunpack.c.l.b16 %v2941
        %v3006 = vunpack.c.l.b16 %v2942
        %v3007 = vunpack.c.h.b16 %v2941
        %v3008 = vunpack.c.h.b16 %v2942
        %v3009 = vunpack.c.l.b16 %v2943
        %v3010 = vunpack.c.l.b16 %v2944
        %v3011 = vunpack.c.h.b16 %v2943
        %v3012 = vunpack.c.h.b16 %v2944
        %v3013 = vunpack.c.l.b16 %v2945
        %v3014 = vunpack.c.l.b16 %v2946
        %v3015 = vunpack.c.h.b16 %v2945
        %v3016 = vunpack.c.h.b16 %v2946
        %v3017 = vunpack.c.l.b16 %v2947
        %v3018 = vunpack.c.l.b16 %v2948
        %v3019 = vunpack.c.h.b16 %v2947
        %v3020 = vunpack.c.h.b16 %v2948
        %v3021 = vunpack.c.l.b16 %v2949
        %v3022 = vunpack.c.l.b16 %v2950
        %v3023 = vunpack.c.h.b16 %v2949
        %v3024 = vunpack.c.h.b16 %v2950
        %v3025 = vunpack.c.l.b16 %v2951
        %v3026 = vunpack.c.l.b16 %v2952
        %v3027 = vunpack.c.h.b16 %v2951
        %v3028 = vunpack.c.h.b16 %v2952
        %v3029 = vunpack.c.l.b16 %v2953
        %v3030 = vunpack.c.l.b16 %v2954
        %v3031 = vunpack.c.h.b16 %v2953
        %v3032 = vunpack.c.h.b16 %v2954
        %v3033 = vunpack.c.l.b16 %v2955
        %v3034 = vunpack.c.l.b16 %v2956
        %v3035 = vunpack.c.h.b16 %v2955
        %v3036 = vunpack.c.h.b16 %v2956
        %v3037 = vunpack.c.l.b16 %v2957
        %v3038 = vunpack.c.l.b16 %v2958
        %v3039 = vunpack.c.h.b16 %v2957
        %v3040 = vunpack.c.h.b16 %v2958
        %v3041 = vunpack.c.l.b16 %v2959
        %v3042 = vunpack.c.l.b16 %v2960
        %v3043 = vunpack.c.h.b16 %v2959
        %v3044 = vunpack.c.h.b16 %v2960
        %v3045 = vpack.c.b16 %v2990, %v2989
        %v3046 = vpack.c.b16 %v2992, %v2991
        %v3047 = vpack.c.b16 %v2994, %v2993
        %v3048 = vpack.c.b16 %v2996, %v2995
        %v3049 = vpack.c.b16 %v2998, %v2997
        %v3050 = vpack.c.b16 %v3000, %v2999
        %v3051 = vpack.c.b16 %v3002, %v3001
        %v3052 = vpack.c.b16 %v3004, %v3003
        %v3053 = vpack.c.b16 %v3006, %v3005
        %v3054 = vpack.c.b16 %v3008, %v3007
        %v3055 = vpack.c.b16 %v3010, %v3009
        %v3056 = vpack.c.b16 %v3012, %v3011
        %v3057 = vpack.c.b16 %v3014, %v3013
        %v3058 = vpack.c.b16 %v3016, %v3015
        %v3059 = vpack.c.b16 %v3018, %v3017
        %v3060 = vpack.c.b16 %v3020, %v3019
        %v3061 = vpack.c.b16 %v3022, %v3021
        %v3062 = vpack.c.b16 %v3024, %v3023
        %v3063 = vpack.c.b16 %v3026, %v3025
        %v3064 = vpack.c.b16 %v3028, %v3027
        %v3065 = vpack.c.b16 %v3030, %v3029
        %v3066 = vpack.c.b16 %v3032, %v3031
        %v3067 = vpack.c.b16 %v3034, %v3033
        %v3068 = vpack.c.b16 %v3036, %v3035
        %v3069 = vpack.c.b16 %v3038, %v3037
        %v3070 = vpack.c.b16 %v3040, %v3039
        %v3071 = vpack.c.b16 %v3042, %v3041
        %v3072 = vpack.c.b16 %v3044, %v3043
        %s3101 = scalar_lea.vmem %s204, 1344 [#allocation7]
        %3102 = vst.msk [vmem:[%s3101] sm:$0xff] %vm881, %v3045
        %3103 = vst.msk [vmem:[%s3101 + $0x8] sm:$0xff] %vm881, %v3046
        %3104 = vst.msk [vmem:[%s3101 + $0x10] sm:$0xff] %vm881, %v3047
        %3105 = vst.msk [vmem:[%s3101 + $0x18] sm:$0xff] %vm881, %v3048
        %3106 = vst.msk [vmem:[%s3101 + $0x20] sm:$0xff] %vm881, %v3049
        %3107 = vst.msk [vmem:[%s3101 + $0x28] sm:$0xff] %vm881, %v3050
        %3108 = vst.msk [vmem:[%s3101 + $0x30] sm:$0xff] %vm881, %v3051
        %3109 = vst.msk [vmem:[%s3101 + $0x38] sm:$0xff] %vm881, %v3052
        %3110 = vst.msk [vmem:[%s3101 + $0x40] sm:$0xff] %vm881, %v3053
        %3111 = vst.msk [vmem:[%s3101 + $0x48] sm:$0xff] %vm881, %v3054
        %3112 = vst.msk [vmem:[%s3101 + $0x50] sm:$0xff] %vm881, %v3055
        %3113 = vst.msk [vmem:[%s3101 + $0x58] sm:$0xff] %vm881, %v3056
        %3114 = vst.msk [vmem:[%s3101 + $0x60] sm:$0xff] %vm881, %v3057
        %3115 = vst.msk [vmem:[%s3101 + $0x68] sm:$0xff] %vm881, %v3058
        %3116 = vst.msk [vmem:[%s3101 + $0x70] sm:$0xff] %vm881, %v3059
        %3117 = vst.msk [vmem:[%s3101 + $0x78] sm:$0xff] %vm881, %v3060
        %3118 = vst.msk [vmem:[%s3101 + $0x80] sm:$0xff] %vm881, %v3061
        %3119 = vst.msk [vmem:[%s3101 + $0x88] sm:$0xff] %vm881, %v3062
        %3120 = vst.msk [vmem:[%s3101 + $0x90] sm:$0xff] %vm881, %v3063
        %3121 = vst.msk [vmem:[%s3101 + $0x98] sm:$0xff] %vm881, %v3064
        %3122 = vst.msk [vmem:[%s3101 + $0xa0] sm:$0xff] %vm881, %v3065
        %3123 = vst.msk [vmem:[%s3101 + $0xa8] sm:$0xff] %vm881, %v3066
        %3124 = vst.msk [vmem:[%s3101 + $0xb0] sm:$0xff] %vm881, %v3067
        %3125 = vst.msk [vmem:[%s3101 + $0xb8] sm:$0xff] %vm881, %v3068
        %3126 = vst.msk [vmem:[%s3101 + $0xc0] sm:$0xff] %vm881, %v3069
        %3127 = vst.msk [vmem:[%s3101 + $0xc8] sm:$0xff] %vm881, %v3070
        %3128 = vst.msk [vmem:[%s3101 + $0xd0] sm:$0xff] %vm881, %v3071
        %3129 = vst.msk [vmem:[%s3101 + $0xd8] sm:$0xff] %vm881, %v3072
        %3130 = vmatprep.subr.bf16.mxu0 %v397
        %3131 = vmatpush1.bf16.msra.mxu0 %v396
        %3132 = vmatprep.subr.bf16.mxu0 0
        %3133 = vmatpush1.bf16.msra.mxu0 0
        %3134 = vmatprep.subr.bf16.mxu0 0
        %3135 = vmatpush1.bf16.msra.mxu0 0
        %3136 = vmatprep.subr.bf16.mxu0 0
        %3137 = vmatpush1.bf16.msra.mxu0 0
        %3138 = vmatprep.subr.bf16.mxu0 0
        %3139 = vmatpush1.bf16.msra.mxu0 0
        %3140 = vmatprep.subr.bf16.mxu0 0
        %3141 = vmatpush1.bf16.msra.mxu0 0
        %3142 = vmatprep.subr.bf16.mxu0 0
        %3143 = vmatpush1.bf16.msra.mxu0 0
        %3144 = vmatprep.subr.bf16.mxu0 0
        %3145 = vmatpush1.bf16.msra.mxu0 0
        %3146 = vmatprep.subr.bf16.mxu0 0
        %3147 = vmatpush1.bf16.msra.mxu0 0
        %3148 = vmatprep.subr.bf16.mxu0 0
        %3149 = vmatpush1.bf16.msra.mxu0 0
        %3150 = vmatprep.subr.bf16.mxu0 0
        %3151 = vmatpush1.bf16.msra.mxu0 0
        %3152 = vmatprep.subr.bf16.mxu0 0
        %3153 = vmatpush1.bf16.msra.mxu0 0
        %3154 = vmatprep.subr.bf16.mxu0 0
        %3155 = vmatpush1.bf16.msra.mxu0 0
        %3156 = vmatprep.subr.bf16.mxu0 0
        %3157 = vmatpush1.bf16.msra.mxu0 0
        %3158 = vmatprep.subr.bf16.mxu0 0
        %3159 = vmatpush1.bf16.msra.mxu0 0
        %3160 = vmatprep.subr.bf16.mxu0 0
        %3161 = vmatpush1.bf16.msra.mxu0 0
        %3162 = vmatprep.mubr.bf16.mxu0 0
        %3163 = vmatmul.mubr.bf16.gmra.mrb[0].mxu0 %v497
        %v3164 = vpop.f32.mrb[0].mxu0
        %v3165 = vadd.f32 0.0, %v3164
        %v3166 = vpop.f32.mrb[0].mxu0
        %v3167 = vadd.f32 0.0, %v3166
        %v3168 = vpop.f32.mrb[0].mxu0
        %v3169 = vadd.f32 0.0, %v3168
        %v3170 = vpop.f32.mrb[0].mxu0
        %v3171 = vadd.f32 0.0, %v3170
        %3172 = vmatprep.mubr.bf16.mxu0 0
        %3173 = vmatmul.mubr.bf16.gmra.mrb[0].mxu0 %v500
        %v3174 = vpop.f32.mrb[0].mxu0
        %v3175 = vadd.f32 0.0, %v3174
        %v3176 = vpop.f32.mrb[0].mxu0
        %v3177 = vadd.f32 0.0, %v3176
        %v3178 = vpop.f32.mrb[0].mxu0
        %v3179 = vadd.f32 0.0, %v3178
        %v3180 = vpop.f32.mrb[0].mxu0
        %v3181 = vadd.f32 0.0, %v3180
        %3182 = vmatprep.mubr.bf16.mxu0 0
        %3183 = vmatmul.mubr.bf16.gmra.mrb[0].mxu0 %v503
        %v3184 = vpop.f32.mrb[0].mxu0
        %v3185 = vadd.f32 0.0, %v3184
        %v3186 = vpop.f32.mrb[0].mxu0
        %v3187 = vadd.f32 0.0, %v3186
        %v3188 = vpop.f32.mrb[0].mxu0
        %v3189 = vadd.f32 0.0, %v3188
        %v3190 = vpop.f32.mrb[0].mxu0
        %v3191 = vadd.f32 0.0, %v3190
        %3192 = vmatprep.mubr.bf16.mxu0 0
        %3193 = vmatmul.mubr.bf16.gmra.mrb[0].mxu0 %v506
        %v3194 = vpop.f32.mrb[0].mxu0
        %v3195 = vadd.f32 0.0, %v3194
        %v3196 = vpop.f32.mrb[0].mxu0
        %v3197 = vadd.f32 0.0, %v3196
        %v3198 = vpop.f32.mrb[0].mxu0
        %v3199 = vadd.f32 0.0, %v3198
        %v3200 = vpop.f32.mrb[0].mxu0
        %v3201 = vadd.f32 0.0, %v3200
        %3202 = vmatprep.mubr.bf16.mxu0 0
        %3203 = vmatmul.mubr.bf16.gmra.mrb[0].mxu0 %v509
        %v3204 = vpop.f32.mrb[0].mxu0
        %v3205 = vadd.f32 0.0, %v3204
        %v3206 = vpop.f32.mrb[0].mxu0
        %v3207 = vadd.f32 0.0, %v3206
        %v3208 = vpop.f32.mrb[0].mxu0
        %v3209 = vadd.f32 0.0, %v3208
        %v3210 = vpop.f32.mrb[0].mxu0
        %v3211 = vadd.f32 0.0, %v3210
        %3212 = vmatprep.mubr.bf16.mxu0 0
        %3213 = vmatmul.mubr.bf16.gmra.mrb[0].mxu0 %v512
        %v3214 = vpop.f32.mrb[0].mxu0
        %v3215 = vadd.f32 0.0, %v3214
        %v3216 = vpop.f32.mrb[0].mxu0
        %v3217 = vadd.f32 0.0, %v3216
        %v3218 = vpop.f32.mrb[0].mxu0
        %v3219 = vadd.f32 0.0, %v3218
        %v3220 = vpop.f32.mrb[0].mxu0
        %v3221 = vadd.f32 0.0, %v3220
        %3222 = vmatprep.mubr.bf16.mxu0 0
        %3223 = vmatmul.mubr.bf16.gmra.mrb[0].mxu0 %v515
        %v3224 = vpop.f32.mrb[0].mxu0
        %v3225 = vadd.f32 0.0, %v3224
        %v3226 = vpop.f32.mrb[0].mxu0
        %v3227 = vadd.f32 0.0, %v3226
        %v3228 = vpop.f32.mrb[0].mxu0
        %v3229 = vadd.f32 0.0, %v3228
        %v3230 = vpop.f32.mrb[0].mxu0
        %v3231 = vadd.f32 0.0, %v3230
        %3232 = vmatprep.mubr.bf16.mxu0 0
        %3233 = vmatmul.mubr.bf16.gmra.mrb[0].mxu0 %v518
        %v3234 = vpop.f32.mrb[0].mxu0
        %v3235 = vadd.f32 0.0, %v3234
        %v3236 = vpop.f32.mrb[0].mxu0
        %v3237 = vadd.f32 0.0, %v3236
        %v3238 = vpop.f32.mrb[0].mxu0
        %v3239 = vadd.f32 0.0, %v3238
        %v3240 = vpop.f32.mrb[0].mxu0
        %v3241 = vadd.f32 0.0, %v3240
        %3242 = vmatprep.mubr.bf16.mxu0 0
        %3243 = vmatmul.mubr.bf16.gmra.mrb[0].mxu0 %v521
        %v3244 = vpop.f32.mrb[0].mxu0
        %v3245 = vadd.f32 0.0, %v3244
        %v3246 = vpop.f32.mrb[0].mxu0
        %v3247 = vadd.f32 0.0, %v3246
        %v3248 = vpop.f32.mrb[0].mxu0
        %v3249 = vadd.f32 0.0, %v3248
        %v3250 = vpop.f32.mrb[0].mxu0
        %v3251 = vadd.f32 0.0, %v3250
        %3252 = vmatprep.mubr.bf16.mxu0 0
        %3253 = vmatmul.mubr.bf16.gmra.mrb[0].mxu0 %v524
        %v3254 = vpop.f32.mrb[0].mxu0
        %v3255 = vadd.f32 0.0, %v3254
        %v3256 = vpop.f32.mrb[0].mxu0
        %v3257 = vadd.f32 0.0, %v3256
        %v3258 = vpop.f32.mrb[0].mxu0
        %v3259 = vadd.f32 0.0, %v3258
        %v3260 = vpop.f32.mrb[0].mxu0
        %v3261 = vadd.f32 0.0, %v3260
        %3262 = vmatprep.mubr.bf16.mxu0 0
        %3263 = vmatmul.mubr.bf16.gmra.mrb[0].mxu0 %v527
        %v3264 = vpop.f32.mrb[0].mxu0
        %v3265 = vadd.f32 0.0, %v3264
        %v3266 = vpop.f32.mrb[0].mxu0
        %v3267 = vadd.f32 0.0, %v3266
        %v3268 = vpop.f32.mrb[0].mxu0
        %v3269 = vadd.f32 0.0, %v3268
        %v3270 = vpop.f32.mrb[0].mxu0
        %v3271 = vadd.f32 0.0, %v3270
        %3272 = vmatprep.mubr.bf16.mxu0 0
        %3273 = vmatmul.mubr.bf16.gmra.mrb[0].mxu0 %v530
        %v3274 = vpop.f32.mrb[0].mxu0
        %v3275 = vadd.f32 0.0, %v3274
        %v3276 = vpop.f32.mrb[0].mxu0
        %v3277 = vadd.f32 0.0, %v3276
        %v3278 = vpop.f32.mrb[0].mxu0
        %v3279 = vadd.f32 0.0, %v3278
        %v3280 = vpop.f32.mrb[0].mxu0
        %v3281 = vadd.f32 0.0, %v3280
        %3282 = vmatprep.mubr.bf16.mxu0 0
        %3283 = vmatmul.mubr.bf16.gmra.mrb[0].mxu0 %v533
        %v3284 = vpop.f32.mrb[0].mxu0
        %v3285 = vadd.f32 0.0, %v3284
        %v3286 = vpop.f32.mrb[0].mxu0
        %v3287 = vadd.f32 0.0, %v3286
        %v3288 = vpop.f32.mrb[0].mxu0
        %v3289 = vadd.f32 0.0, %v3288
        %v3290 = vpop.f32.mrb[0].mxu0
        %v3291 = vadd.f32 0.0, %v3290
        %3292 = vmatprep.mubr.bf16.mxu0 0
        %3293 = vmatmul.mubr.bf16.gmra.mrb[0].mxu0 %v536
        %v3294 = vpop.f32.mrb[0].mxu0
        %v3295 = vadd.f32 0.0, %v3294
        %v3296 = vpop.f32.mrb[0].mxu0
        %v3297 = vadd.f32 0.0, %v3296
        %v3298 = vpop.f32.mrb[0].mxu0
        %v3299 = vadd.f32 0.0, %v3298
        %v3300 = vpop.f32.mrb[0].mxu0
        %v3301 = vadd.f32 0.0, %v3300
        %3302 = vdwg.mxu0
        %v3303 = vpack.c.bf16 %v3169, %v3165
        %v3304 = vpack.c.bf16 %v3171, %v3167
        %v3305 = vpack.c.bf16 %v3179, %v3175
        %v3306 = vpack.c.bf16 %v3181, %v3177
        %v3307 = vpack.c.bf16 %v3189, %v3185
        %v3308 = vpack.c.bf16 %v3191, %v3187
        %v3309 = vpack.c.bf16 %v3199, %v3195
        %v3310 = vpack.c.bf16 %v3201, %v3197
        %v3311 = vpack.c.bf16 %v3209, %v3205
        %v3312 = vpack.c.bf16 %v3211, %v3207
        %v3313 = vpack.c.bf16 %v3219, %v3215
        %v3314 = vpack.c.bf16 %v3221, %v3217
        %v3315 = vpack.c.bf16 %v3229, %v3225
        %v3316 = vpack.c.bf16 %v3231, %v3227
        %v3317 = vpack.c.bf16 %v3239, %v3235
        %v3318 = vpack.c.bf16 %v3241, %v3237
        %v3319 = vpack.c.bf16 %v3249, %v3245
        %v3320 = vpack.c.bf16 %v3251, %v3247
        %v3321 = vpack.c.bf16 %v3259, %v3255
        %v3322 = vpack.c.bf16 %v3261, %v3257
        %v3323 = vpack.c.bf16 %v3269, %v3265
        %v3324 = vpack.c.bf16 %v3271, %v3267
        %v3325 = vpack.c.bf16 %v3279, %v3275
        %v3326 = vpack.c.bf16 %v3281, %v3277
        %v3327 = vpack.c.bf16 %v3289, %v3285
        %v3328 = vpack.c.bf16 %v3291, %v3287
        %v3329 = vpack.c.bf16 %v3299, %v3295
        %v3330 = vpack.c.bf16 %v3301, %v3297
        %v3359 = vunpack.c.l.b16 %v3303
        %v3360 = vunpack.c.l.b16 %v3304
        %v3361 = vunpack.c.h.b16 %v3303
        %v3362 = vunpack.c.h.b16 %v3304
        %v3363 = vunpack.c.l.b16 %v3305
        %v3364 = vunpack.c.l.b16 %v3306
        %v3365 = vunpack.c.h.b16 %v3305
        %v3366 = vunpack.c.h.b16 %v3306
        %v3367 = vunpack.c.l.b16 %v3307
        %v3368 = vunpack.c.l.b16 %v3308
        %v3369 = vunpack.c.h.b16 %v3307
        %v3370 = vunpack.c.h.b16 %v3308
        %v3371 = vunpack.c.l.b16 %v3309
        %v3372 = vunpack.c.l.b16 %v3310
        %v3373 = vunpack.c.h.b16 %v3309
        %v3374 = vunpack.c.h.b16 %v3310
        %v3375 = vunpack.c.l.b16 %v3311
        %v3376 = vunpack.c.l.b16 %v3312
        %v3377 = vunpack.c.h.b16 %v3311
        %v3378 = vunpack.c.h.b16 %v3312
        %v3379 = vunpack.c.l.b16 %v3313
        %v3380 = vunpack.c.l.b16 %v3314
        %v3381 = vunpack.c.h.b16 %v3313
        %v3382 = vunpack.c.h.b16 %v3314
        %v3383 = vunpack.c.l.b16 %v3315
        %v3384 = vunpack.c.l.b16 %v3316
        %v3385 = vunpack.c.h.b16 %v3315
        %v3386 = vunpack.c.h.b16 %v3316
        %v3387 = vunpack.c.l.b16 %v3317
        %v3388 = vunpack.c.l.b16 %v3318
        %v3389 = vunpack.c.h.b16 %v3317
        %v3390 = vunpack.c.h.b16 %v3318
        %v3391 = vunpack.c.l.b16 %v3319
        %v3392 = vunpack.c.l.b16 %v3320
        %v3393 = vunpack.c.h.b16 %v3319
        %v3394 = vunpack.c.h.b16 %v3320
        %v3395 = vunpack.c.l.b16 %v3321
        %v3396 = vunpack.c.l.b16 %v3322
        %v3397 = vunpack.c.h.b16 %v3321
        %v3398 = vunpack.c.h.b16 %v3322
        %v3399 = vunpack.c.l.b16 %v3323
        %v3400 = vunpack.c.l.b16 %v3324
        %v3401 = vunpack.c.h.b16 %v3323
        %v3402 = vunpack.c.h.b16 %v3324
        %v3403 = vunpack.c.l.b16 %v3325
        %v3404 = vunpack.c.l.b16 %v3326
        %v3405 = vunpack.c.h.b16 %v3325
        %v3406 = vunpack.c.h.b16 %v3326
        %v3407 = vunpack.c.l.b16 %v3327
        %v3408 = vunpack.c.l.b16 %v3328
        %v3409 = vunpack.c.h.b16 %v3327
        %v3410 = vunpack.c.h.b16 %v3328
        %v3411 = vunpack.c.l.b16 %v3329
        %v3412 = vunpack.c.l.b16 %v3330
        %v3413 = vunpack.c.h.b16 %v3329
        %v3414 = vunpack.c.h.b16 %v3330
        %v3415 = vpack.c.b16 %v3360, %v3359
        %v3416 = vpack.c.b16 %v3362, %v3361
        %v3417 = vpack.c.b16 %v3364, %v3363
        %v3418 = vpack.c.b16 %v3366, %v3365
        %v3419 = vpack.c.b16 %v3368, %v3367
        %v3420 = vpack.c.b16 %v3370, %v3369
        %v3421 = vpack.c.b16 %v3372, %v3371
        %v3422 = vpack.c.b16 %v3374, %v3373
        %v3423 = vpack.c.b16 %v3376, %v3375
        %v3424 = vpack.c.b16 %v3378, %v3377
        %v3425 = vpack.c.b16 %v3380, %v3379
        %v3426 = vpack.c.b16 %v3382, %v3381
        %v3427 = vpack.c.b16 %v3384, %v3383
        %v3428 = vpack.c.b16 %v3386, %v3385
        %v3429 = vpack.c.b16 %v3388, %v3387
        %v3430 = vpack.c.b16 %v3390, %v3389
        %v3431 = vpack.c.b16 %v3392, %v3391
        %v3432 = vpack.c.b16 %v3394, %v3393
        %v3433 = vpack.c.b16 %v3396, %v3395
        %v3434 = vpack.c.b16 %v3398, %v3397
        %v3435 = vpack.c.b16 %v3400, %v3399
        %v3436 = vpack.c.b16 %v3402, %v3401
        %v3437 = vpack.c.b16 %v3404, %v3403
        %v3438 = vpack.c.b16 %v3406, %v3405
        %v3439 = vpack.c.b16 %v3408, %v3407
        %v3440 = vpack.c.b16 %v3410, %v3409
        %v3441 = vpack.c.b16 %v3412, %v3411
        %v3442 = vpack.c.b16 %v3414, %v3413
        %s3471 = scalar_lea.vmem %s204, 1568 [#allocation7]
        %3472 = vst.msk [vmem:[%s3471] sm:$0xff] %vm881, %v3415
        %3473 = vst.msk [vmem:[%s3471 + $0x8] sm:$0xff] %vm881, %v3416
        %3474 = vst.msk [vmem:[%s3471 + $0x10] sm:$0xff] %vm881, %v3417
        %3475 = vst.msk [vmem:[%s3471 + $0x18] sm:$0xff] %vm881, %v3418
        %3476 = vst.msk [vmem:[%s3471 + $0x20] sm:$0xff] %vm881, %v3419
        %3477 = vst.msk [vmem:[%s3471 + $0x28] sm:$0xff] %vm881, %v3420
        %3478 = vst.msk [vmem:[%s3471 + $0x30] sm:$0xff] %vm881, %v3421
        %3479 = vst.msk [vmem:[%s3471 + $0x38] sm:$0xff] %vm881, %v3422
        %3480 = vst.msk [vmem:[%s3471 + $0x40] sm:$0xff] %vm881, %v3423
        %3481 = vst.msk [vmem:[%s3471 + $0x48] sm:$0xff] %vm881, %v3424
        %3482 = vst.msk [vmem:[%s3471 + $0x50] sm:$0xff] %vm881, %v3425
        %3483 = vst.msk [vmem:[%s3471 + $0x58] sm:$0xff] %vm881, %v3426
        %3484 = vst.msk [vmem:[%s3471 + $0x60] sm:$0xff] %vm881, %v3427
        %3485 = vst.msk [vmem:[%s3471 + $0x68] sm:$0xff] %vm881, %v3428
        %3486 = vst.msk [vmem:[%s3471 + $0x70] sm:$0xff] %vm881, %v3429
        %3487 = vst.msk [vmem:[%s3471 + $0x78] sm:$0xff] %vm881, %v3430
        %3488 = vst.msk [vmem:[%s3471 + $0x80] sm:$0xff] %vm881, %v3431
        %3489 = vst.msk [vmem:[%s3471 + $0x88] sm:$0xff] %vm881, %v3432
        %3490 = vst.msk [vmem:[%s3471 + $0x90] sm:$0xff] %vm881, %v3433
        %3491 = vst.msk [vmem:[%s3471 + $0x98] sm:$0xff] %vm881, %v3434
        %3492 = vst.msk [vmem:[%s3471 + $0xa0] sm:$0xff] %vm881, %v3435
        %3493 = vst.msk [vmem:[%s3471 + $0xa8] sm:$0xff] %vm881, %v3436
        %3494 = vst.msk [vmem:[%s3471 + $0xb0] sm:$0xff] %vm881, %v3437
        %3495 = vst.msk [vmem:[%s3471 + $0xb8] sm:$0xff] %vm881, %v3438
        %3496 = vst.msk [vmem:[%s3471 + $0xc0] sm:$0xff] %vm881, %v3439
        %3497 = vst.msk [vmem:[%s3471 + $0xc8] sm:$0xff] %vm881, %v3440
        %3498 = vst.msk [vmem:[%s3471 + $0xd0] sm:$0xff] %vm881, %v3441
        %3499 = vst.msk [vmem:[%s3471 + $0xd8] sm:$0xff] %vm881, %v3442
        %s3500 = sand.u32 %s97, 1
        %s3501 = scalar_lea.sflag [#allocation4], %s3500
        %s3502 = sand.u32 %s97, 1
        %s3503 = smul.addr %s3502, 1792
        %s3504 = scalar_lea.vmem [#allocation7], %s3503
        // Predicated region
        $region41: #{tpu_custom_call.1} parent=31 // pred_check
          %p3505 = pneg %p107
        $region42: #{tpu_custom_call.1} parent=31 // pred_check_branch
          %3507 = sbr.rel (%p3505) target = $region44
        $region43: #{tpu_custom_call.1} parent=31 // pred_region
          %s3508 = smul.u32 8, %s21
          %s3510 = ssub.s32 28672, 28672
          %3511 = vsyncadd %s3501, %s3510
          %s3512 = smul.addr %s3508, 56
          %s3513 = smul.addr %s3512, 64
          %s3514 = scalar_lea.hbm %s3, %s3513
          %s3515 = sshll.u32 %s3504, 4
          %s3516 = int_to_ptr.vmem [resolvable:$true] %s3515
          %3521 = dma.vmem_to_hbm [thread:$0]  %s3516, 28672, %s3514, %s3501, 128, 128, 8
        $region44: #{tpu_custom_call.1} parent=31 // pred_fallthru
          _
      $region32: #{tpu_custom_call.1} parent=5 // pred_fallthru
        _
      %p3522 = scmp.le.s32.totalorder 2, %s16
      // Predicated region
      $region45: #{tpu_custom_call.1} parent=5 // pred_check
        %p3523 = pneg %p3522
      $region46: #{tpu_custom_call.1} parent=5 // pred_check_branch
        %3525 = sbr.rel (%p3523) target = $region48
      $region47: #{tpu_custom_call.1} parent=5 // pred_region
        %s3526 = ssub.s32 %s16, 2
        // Predicated region
        $region49: #{tpu_custom_call.1} parent=47 // pred_check
          %p3527 = pneg %p113
        $region50: #{tpu_custom_call.1} parent=47 // pred_check_branch
          %3529 = sbr.rel (%p3527) target = $region52
        $region51: #{tpu_custom_call.1} parent=47 // pred_region
          %s3530 = sand.u32 %s98, 1
          %s3531 = scalar_lea.sflag [#allocation4], %s3530
          %s3532 = sand.u32 %s98, 1
          %s3533 = smul.addr %s3532, 1792
          %s3534 = scalar_lea.vmem [#allocation7], %s3533
          %3535 = dma.done %s3531, 28672
        $region52: #{tpu_custom_call.1} parent=47 // pred_fallthru
          _
      $region48: #{tpu_custom_call.1} parent=5 // pred_fallthru
        _
    $region6: #{tpu_custom_call.1} parent=1 // loop_footer
      %s20 = sadd.s32 1, %s16
    $region7: #{tpu_custom_call.1} parent=1 // loop_footer_branch
      %15 = sbr.rel target = $region3
    $region8: #{tpu_custom_call.1} parent=1 // loop_exit
      _
    %3536 = vsyncpa [#allocation3], 1
    %s3537 = scalar_lea.sflag [#allocation3], 1
    %3538 = vsyncpa %s3537, 1
    %3539 = vsyncpa [#allocation6], 1
    %s3540 = scalar_lea.sflag [#allocation6], 1
    %3541 = vsyncpa %s3540, 1
    %3542 = vsyncpa [#allocation4], 1
    %s3543 = scalar_lea.sflag [#allocation4], 1
    %3544 = vsyncpa %s3543, 1

</llo_original>
